<compile_context>
chip_gen: v5e
topology: v5e:2x2
jax: 0.10.0
libtpu: 0.0.40
codegen_flags: <defaults>
</compile_context>

<pallas_src>
import functools

import jax
import jax.numpy as jnp
from jax.experimental import pallas as pl
from jax.experimental.pallas import tpu as pltpu

INPUT_DIM = 8
D_MODEL = 32
NUM_HEADS = 4
NUM_LAYERS = 2
OUTPUT_DIM = 4
DIM_FF = 2048          # PyTorch TransformerEncoderLayer default dim_feedforward
LN_EPS = 1e-5
BATCH = 2
SEQ = 8
HEAD_DIM = D_MODEL // NUM_HEADS


def _layer_norm(y, g, b):
    mu = jnp.mean(y, axis=-1, keepdims=True)
    var = jnp.mean((y - mu) ** 2, axis=-1, keepdims=True)
    return (y - mu) * jax.lax.rsqrt(var + LN_EPS) * g + b


# ---------------------------------------------------------------------------
# Kernel: one grid step == one encoder layer; embed on first step, head on last.
# ---------------------------------------------------------------------------
def _fused_transformer_kernel(
    x_ref,            # (M, IN)  f32, M = B*S              (constant block)
    emb_w_ref,        # (IN, D)  bf16                      (constant block)
    emb_b_ref,        # (1, D)   f32                       (constant block)
    fc_w_ref,         # (D, OUT) bf16                      (constant block)
    fc_b_ref,         # (1, OUT) f32                       (constant block)
    wq_ref, wk_ref, wv_ref,   # (1, D, D) bf16 per layer (wq pre-scaled by 1/sqrt(hd))
    wo_ref,           # (1, D, D) bf16 per layer
    w1_ref,           # (1, D, F) bf16 per layer
    w2t_ref,          # (1, D, F) bf16 per layer (w2 transposed -> lane-dense)
    slab_ref,         # (1, 8, F) f32 per layer: packed b1 / biases / LN params
    o_ref,            # (B, OUT) f32
    h_ref,            # VMEM scratch (M, D) f32: residual stream carried across layers
    *, batch, seq, num_heads,
):
    B, S, H = batch, seq, num_heads
    M = B * S
    l = pl.program_id(0)

    # --- embedding: only on the first grid step ---
    @pl.when(l == 0)
    def _embed():
        h_ref[...] = (
            jnp.dot(x_ref[...], emb_w_ref[...].astype(jnp.float32),
                    preferred_element_type=jnp.float32)
            + emb_b_ref[...])

    h = h_ref[...]                                   # (M, D) f32
    D = h.shape[-1]
    hd = D // H

    # --- this layer's weights (bf16 in HBM/VMEM, widened once per layer) ---
    wq = wq_ref[0].astype(jnp.float32)
    wk = wk_ref[0].astype(jnp.float32)
    wv = wv_ref[0].astype(jnp.float32)
    wo = wo_ref[0].astype(jnp.float32)
    w1 = w1_ref[0].astype(jnp.float32)
    w2t = w2t_ref[0].astype(jnp.float32)

    # --- packed small params: row0=b1, row1=[bq|bk|bv|bo], row2=[g1|be1|b2|g2], row3=[be2] ---
    slab = slab_ref[0]                               # (8, F) f32
    b1 = slab[0:1, :]                                # (1, F)
    r1 = slab[1:2, 0:4 * D]
    bq, bk, bv, bo = (r1[:, 0:D], r1[:, D:2 * D], r1[:, 2 * D:3 * D], r1[:, 3 * D:4 * D])
    r2 = slab[2:3, 0:4 * D]
    g1, be1, b2, g2 = (r2[:, 0:D], r2[:, D:2 * D], r2[:, 2 * D:3 * D], r2[:, 3 * D:4 * D])
    be2 = slab[3:4, 0:D]

    # --- self-attention: separate q/k/v projections (scale folded into wq/bq) ---
    q = jnp.dot(h, wq, preferred_element_type=jnp.float32) + bq
    k = jnp.dot(h, wk, preferred_element_type=jnp.float32) + bk
    v = jnp.dot(h, wv, preferred_element_type=jnp.float32) + bv
    qb = q.reshape(B, S, D)
    kb = k.reshape(B, S, D)
    vb = v.reshape(B, S, D)

    # Per-head softmax(QK^T)V with the out-projection accumulated per head
    # (no head concat).  Static 4-iteration loop.
    attn = None
    for hh in range(H):
        sl = slice(hh * hd, (hh + 1) * hd)
        s = jnp.einsum("bqc,bkc->bqk", qb[:, :, sl], kb[:, :, sl],
                       preferred_element_type=jnp.float32)          # (B,S,S)
        m = jnp.max(s, axis=-1, keepdims=True)
        e = jnp.exp(s - m)
        p = e * pl.reciprocal(jnp.sum(e, axis=-1, keepdims=True), approx=False)
        oh = jnp.einsum("bqk,bkc->bqc", p, vb[:, :, sl],
                        preferred_element_type=jnp.float32)         # (B,S,hd)
        contrib = jnp.dot(oh.reshape(M, hd), wo[sl, :],
                          preferred_element_type=jnp.float32)       # (M, D)
        attn = contrib if attn is None else attn + contrib
    attn = attn + bo

    # --- post-LN residual 1 ---
    x1 = _layer_norm(h + attn, g1, be1)

    # --- feed-forward: (M,D)@(D,F) relu, then NT dot with transposed w2 ---
    ff = jnp.maximum(jnp.dot(x1, w1, preferred_element_type=jnp.float32) + b1, 0.0)
    ff2 = jax.lax.dot_general(ff, w2t, (((1,), (1,)), ((), ())),
                              preferred_element_type=jnp.float32) + b2

    # --- post-LN residual 2; carry to next layer ---
    h_new = _layer_norm(x1 + ff2, g2, be2)
    h_ref[...] = h_new

    # --- final head: only on the last grid step ---
    @pl.when(l == pl.num_programs(0) - 1)
    def _head():
        last = h_new.reshape(B, S, D)[:, S - 1, :]                  # (B, D)
        y = (jnp.dot(last, fc_w_ref[...].astype(jnp.float32),
                     preferred_element_type=jnp.float32)
             + fc_b_ref[...])
        o_ref[...] = jax.nn.sigmoid(y)


# ---------------------------------------------------------------------------
# Wrapper: single pallas_call with a layer grid (per-layer weight DMA pipelined)
# ---------------------------------------------------------------------------
def transformer_forward(x, params):
    (emb_w, emb_b, fc_w, fc_b, wq, wk, wv, wo, w1, w2t, slab) = params
    B, S, IN = x.shape
    M = B * S
    x2d = x.reshape(M, IN)                      # flatten (B,S) -> M rows

    kernel = functools.partial(
        _fused_transformer_kernel, batch=B, seq=S, num_heads=NUM_HEADS)

    def const_spec(a):                          # fetched once, resident across layers
        return pl.BlockSpec(a.shape, lambda l: (0, 0))

    def layer_spec(a):                          # one layer's block per grid step
        return pl.BlockSpec((1,) + a.shape[1:], lambda l: (l, 0, 0))

    inputs = (x2d, emb_w, emb_b, fc_w, fc_b, wq, wk, wv, wo, w1, w2t, slab)
    in_specs = [
        const_spec(x2d), const_spec(emb_w), const_spec(emb_b),
        const_spec(fc_w), const_spec(fc_b),
        layer_spec(wq), layer_spec(wk), layer_spec(wv), layer_spec(wo),
        layer_spec(w1), layer_spec(w2t), layer_spec(slab),
    ]

    # Advisory cost estimate so XLA schedules neighbors sensibly.
    flops = (
        2 * M * IN * D_MODEL
        + NUM_LAYERS * (
            3 * 2 * M * D_MODEL * D_MODEL            # q/k/v projections
            + NUM_HEADS * 4 * B * S * S * HEAD_DIM   # scores + p@v
            + 2 * M * D_MODEL * D_MODEL              # out-projection
            + 2 * 2 * M * D_MODEL * DIM_FF)          # FFN
        + 2 * B * D_MODEL * OUTPUT_DIM)
    transcendentals = NUM_LAYERS * NUM_HEADS * B * S * S + B * OUTPUT_DIM
    bytes_accessed = int(sum(int(a.nbytes) for a in inputs)) + B * OUTPUT_DIM * 4
    cost = pl.CostEstimate(flops=flops, transcendentals=transcendentals,
                           bytes_accessed=bytes_accessed)

    return pl.pallas_call(
        kernel,
        grid=(NUM_LAYERS,),
        out_shape=jax.ShapeDtypeStruct((B, OUTPUT_DIM), jnp.float32),
        in_specs=in_specs,
        out_specs=pl.BlockSpec((B, OUTPUT_DIM), lambda l: (0, 0)),
        scratch_shapes=[pltpu.VMEM((M, D_MODEL), jnp.float32)],
        compiler_params=pltpu.CompilerParams(
            dimension_semantics=("arbitrary",)),     # layers are sequential
        cost_estimate=cost,
    )(*inputs)


# ---------------------------------------------------------------------------
# Deterministic synthetic parameters (shapes follow the nn.Module __init__).
# Matmul weights -> bf16; biases / LayerNorm params stay f32 and are packed
# into one lane-dense slab per layer.  Attention scale folded into wq/bq.
# ---------------------------------------------------------------------------
def init_params(key):
    std = 0.05
    scale = 1.0 / float(HEAD_DIM) ** 0.5
    keys = jax.random.split(key, 2 + NUM_LAYERS)

    emb_w = (std * jax.random.normal(keys[0], (INPUT_DIM, D_MODEL), jnp.float32)
             ).astype(jnp.bfloat16)
    emb_b = jnp.zeros((1, D_MODEL), jnp.float32)
    fc_w = (std * jax.random.normal(keys[1], (D_MODEL, OUTPUT_DIM), jnp.float32)
            ).astype(jnp.bfloat16)
    fc_b = jnp.zeros((1, OUTPUT_DIM), jnp.float32)

    wq_l, wk_l, wv_l, wo_l, w1_l, w2t_l, slab_l = ([] for _ in range(7))
    for i in range(NUM_LAYERS):
        lk = jax.random.split(keys[2 + i], 6)
        wq = std * jax.random.normal(lk[0], (D_MODEL, D_MODEL), jnp.float32)
        wk = std * jax.random.normal(lk[1], (D_MODEL, D_MODEL), jnp.float32)
        wv = std * jax.random.normal(lk[2], (D_MODEL, D_MODEL), jnp.float32)
        wo = std * jax.random.normal(lk[3], (D_MODEL, D_MODEL), jnp.float32)
        w1 = std * jax.random.normal(lk[4], (D_MODEL, DIM_FF), jnp.float32)
        w2 = std * jax.random.normal(lk[5], (DIM_FF, D_MODEL), jnp.float32)

        bq = jnp.zeros((D_MODEL,), jnp.float32)
        bk = jnp.zeros((D_MODEL,), jnp.float32)
        bv = jnp.zeros((D_MODEL,), jnp.float32)
        bo = jnp.zeros((D_MODEL,), jnp.float32)
        b1 = jnp.zeros((DIM_FF,), jnp.float32)
        b2 = jnp.zeros((D_MODEL,), jnp.float32)
        g1 = jnp.ones((D_MODEL,), jnp.float32)
        be1 = jnp.zeros((D_MODEL,), jnp.float32)
        g2 = jnp.ones((D_MODEL,), jnp.float32)
        be2 = jnp.zeros((D_MODEL,), jnp.float32)

        # Fold the 1/sqrt(head_dim) attention scale into the q projection (free).
        wq = wq * scale
        bq = bq * scale

        slab = jnp.zeros((8, DIM_FF), jnp.float32)
        slab = slab.at[0, :].set(b1)
        slab = slab.at[1, 0:4 * D_MODEL].set(jnp.concatenate([bq, bk, bv, bo]))
        slab = slab.at[2, 0:4 * D_MODEL].set(jnp.concatenate([g1, be1, b2, g2]))
        slab = slab.at[3, 0:D_MODEL].set(be2)

        wq_l.append(wq.astype(jnp.bfloat16))
        wk_l.append(wk.astype(jnp.bfloat16))
        wv_l.append(wv.astype(jnp.bfloat16))
        wo_l.append(wo.astype(jnp.bfloat16))
        w1_l.append(w1.astype(jnp.bfloat16))
        w2t_l.append(w2.T.astype(jnp.bfloat16))   # transposed: lane-dense (D, F)
        slab_l.append(slab)

    stack = lambda xs: jnp.stack(xs, axis=0)
    return (emb_w, emb_b, fc_w, fc_b,
            stack(wq_l), stack(wk_l), stack(wv_l), stack(wo_l),
            stack(w1_l), stack(w2t_l), stack(slab_l))


if __name__ == "__main__":
    key = jax.random.PRNGKey(0)
    pkey, xkey = jax.random.split(key)
    params = init_params(pkey)
    x = jax.random.normal(xkey, (BATCH, SEQ, INPUT_DIM), dtype=jnp.float32)

    out = transformer_forward(x, params)
    out = jax.block_until_ready(out)
    assert out.shape == (BATCH, OUTPUT_DIM)
    assert bool(jnp.all(jnp.isfinite(out)))
    assert bool(jnp.all((out >= 0.0) & (out <= 1.0)))   # sigmoid output range
    print("KERNEL_OK")
</pallas_src>

<mosaic_0001>
module attributes {stable_mosaic.version = 11 : i64} {
  func.func @_fused_transformer_kernel(%arg0: i32, %arg1: memref<16x8xf32, #tpu.memory_space<vmem>>, %arg2: memref<8x32xbf16, #tpu.memory_space<vmem>>, %arg3: memref<1x32xf32, #tpu.memory_space<vmem>>, %arg4: memref<32x4xbf16, #tpu.memory_space<vmem>>, %arg5: memref<1x4xf32, #tpu.memory_space<vmem>>, %arg6: memref<1x32x32xbf16, #tpu.memory_space<vmem>>, %arg7: memref<1x32x32xbf16, #tpu.memory_space<vmem>>, %arg8: memref<1x32x32xbf16, #tpu.memory_space<vmem>>, %arg9: memref<1x32x32xbf16, #tpu.memory_space<vmem>>, %arg10: memref<1x32x2048xbf16, #tpu.memory_space<vmem>>, %arg11: memref<1x32x2048xbf16, #tpu.memory_space<vmem>>, %arg12: memref<1x8x2048xf32, #tpu.memory_space<vmem>>, %arg13: memref<2x4xf32, #tpu.memory_space<vmem>>, %arg14: memref<16x32xf32, #tpu.memory_space<vmem>>) attributes {dimension_semantics = [#tpu.dimension_semantics<arbitrary>], iteration_bounds = array<i64: 2>, scalar_prefetch = 0 : i64, scratch_operands = 1 : i64, tpu.core_type = #tpu.core_type<tc>, window_params = [{pipeline_mode = #tpu.pipeline_mode<synchronous>, transform_indices = @transform_0, window_bounds = array<i64: 16, 8>}, {pipeline_mode = #tpu.pipeline_mode<synchronous>, transform_indices = @transform_1, window_bounds = array<i64: 8, 32>}, {pipeline_mode = #tpu.pipeline_mode<synchronous>, transform_indices = @transform_2, window_bounds = array<i64: 1, 32>}, {pipeline_mode = #tpu.pipeline_mode<synchronous>, transform_indices = @transform_3, window_bounds = array<i64: 32, 4>}, {pipeline_mode = #tpu.pipeline_mode<synchronous>, transform_indices = @transform_4, window_bounds = array<i64: 1, 4>}, {transform_indices = @transform_5, window_bounds = array<i64: 1, 32, 32>}, {transform_indices = @transform_6, window_bounds = array<i64: 1, 32, 32>}, {transform_indices = @transform_7, window_bounds = array<i64: 1, 32, 32>}, {transform_indices = @transform_8, window_bounds = array<i64: 1, 32, 32>}, {transform_indices = @transform_9, window_bounds = array<i64: 1, 32, 2048>}, {transform_indices = @transform_10, window_bounds = array<i64: 1, 32, 2048>}, {transform_indices = @transform_11, window_bounds = array<i64: 1, 8, 2048>}, {pipeline_mode = #tpu.pipeline_mode<synchronous>, transform_indices = @transform_12, window_bounds = array<i64: 2, 4>}]} {
    %c0_i32 = arith.constant 0 : i32
    %0 = arith.cmpi eq, %arg0, %c0_i32 : i32
    %1 = arith.extui %0 : i1 to i32
    %c0_i32_0 = arith.constant 0 : i32
    %2 = arith.cmpi ne, %1, %c0_i32_0 : i32
    scf.if %2 {
      %c0_61 = arith.constant 0 : index
      %c0_62 = arith.constant 0 : index
      %183 = vector.load %arg1[%c0_61, %c0_62] : memref<16x8xf32, #tpu.memory_space<vmem>>, vector<16x8xf32>
      %c0_63 = arith.constant 0 : index
      %c0_64 = arith.constant 0 : index
      %184 = vector.load %arg2[%c0_63, %c0_64] : memref<8x32xbf16, #tpu.memory_space<vmem>>, vector<8x32xbf16>
      %185 = arith.extf %184 : vector<8x32xbf16> to vector<8x32xf32>
      %cst_65 = arith.constant dense<0.000000e+00> : vector<16x32xf32>
      %186 = tpu.matmul %183, %185, %cst_65 {dimension_numbers = #tpu.dot_dimension_numbers<[1], [0], [0], [1], [0, 0, 1, 1], [], []>} : vector<16x8xf32>, vector<8x32xf32>, vector<16x32xf32> -> vector<16x32xf32>
      %c0_66 = arith.constant 0 : index
      %c0_67 = arith.constant 0 : index
      %187 = vector.load %arg3[%c0_66, %c0_67] : memref<1x32xf32, #tpu.memory_space<vmem>>, vector<1x32xf32>
      %188 = vector.broadcast %187 : vector<1x32xf32> to vector<16x32xf32>
      %189 = arith.addf %186, %188 : vector<16x32xf32>
      %c0_68 = arith.constant 0 : index
      %c0_69 = arith.constant 0 : index
      %190 = vector.load %arg14[%c0_68, %c0_69] : memref<16x32xf32, #tpu.memory_space<vmem>>, vector<16x32xf32>
      tpu.vector_store %arg14[%c0_68, %c0_69], %189 {strides = array<i32>} : memref<16x32xf32, #tpu.memory_space<vmem>>, vector<16x32xf32>,
    } else {
    }
    %c0 = arith.constant 0 : index
    %c0_1 = arith.constant 0 : index
    %3 = vector.load %arg14[%c0, %c0_1] : memref<16x32xf32, #tpu.memory_space<vmem>>, vector<16x32xf32>
    %c0_2 = arith.constant 0 : index
    %c0_3 = arith.constant 0 : index
    %c0_4 = arith.constant 0 : index
    %4 = vector.load %arg6[%c0_2, %c0_3, %c0_4] : memref<1x32x32xbf16, #tpu.memory_space<vmem>>, vector<1x32x32xbf16>
    %5 = vector.shape_cast %4 : vector<1x32x32xbf16> to vector<32x32xbf16>
    %6 = arith.extf %5 : vector<32x32xbf16> to vector<32x32xf32>
    %c0_5 = arith.constant 0 : index
    %c0_6 = arith.constant 0 : index
    %c0_7 = arith.constant 0 : index
    %7 = vector.load %arg7[%c0_5, %c0_6, %c0_7] : memref<1x32x32xbf16, #tpu.memory_space<vmem>>, vector<1x32x32xbf16>
    %8 = vector.shape_cast %7 : vector<1x32x32xbf16> to vector<32x32xbf16>
    %9 = arith.extf %8 : vector<32x32xbf16> to vector<32x32xf32>
    %c0_8 = arith.constant 0 : index
    %c0_9 = arith.constant 0 : index
    %c0_10 = arith.constant 0 : index
    %10 = vector.load %arg8[%c0_8, %c0_9, %c0_10] : memref<1x32x32xbf16, #tpu.memory_space<vmem>>, vector<1x32x32xbf16>
    %11 = vector.shape_cast %10 : vector<1x32x32xbf16> to vector<32x32xbf16>
    %12 = arith.extf %11 : vector<32x32xbf16> to vector<32x32xf32>
    %c0_11 = arith.constant 0 : index
    %c0_12 = arith.constant 0 : index
    %c0_13 = arith.constant 0 : index
    %13 = vector.load %arg9[%c0_11, %c0_12, %c0_13] : memref<1x32x32xbf16, #tpu.memory_space<vmem>>, vector<1x32x32xbf16>
    %14 = vector.shape_cast %13 : vector<1x32x32xbf16> to vector<32x32xbf16>
    %15 = arith.extf %14 : vector<32x32xbf16> to vector<32x32xf32>
    %c0_14 = arith.constant 0 : index
    %c0_15 = arith.constant 0 : index
    %c0_16 = arith.constant 0 : index
    %16 = vector.load %arg10[%c0_14, %c0_15, %c0_16] : memref<1x32x2048xbf16, #tpu.memory_space<vmem>>, vector<1x32x2048xbf16>
    %17 = vector.shape_cast %16 : vector<1x32x2048xbf16> to vector<32x2048xbf16>
    %18 = arith.extf %17 : vector<32x2048xbf16> to vector<32x2048xf32>
    %c0_17 = arith.constant 0 : index
    %c0_18 = arith.constant 0 : index
    %c0_19 = arith.constant 0 : index
    %19 = vector.load %arg11[%c0_17, %c0_18, %c0_19] : memref<1x32x2048xbf16, #tpu.memory_space<vmem>>, vector<1x32x2048xbf16>
    %20 = vector.shape_cast %19 : vector<1x32x2048xbf16> to vector<32x2048xbf16>
    %21 = arith.extf %20 : vector<32x2048xbf16> to vector<32x2048xf32>
    %c0_20 = arith.constant 0 : index
    %c0_21 = arith.constant 0 : index
    %c0_22 = arith.constant 0 : index
    %22 = vector.load %arg12[%c0_20, %c0_21, %c0_22] : memref<1x8x2048xf32, #tpu.memory_space<vmem>>, vector<1x8x2048xf32>
    %23 = vector.shape_cast %22 : vector<1x8x2048xf32> to vector<8x2048xf32>
    %24 = vector.extract_strided_slice %23 {offsets = [0, 0], sizes = [1, 2048], strides = [1, 1]} : vector<8x2048xf32> to vector<1x2048xf32>
    %25 = vector.extract_strided_slice %23 {offsets = [1, 0], sizes = [1, 128], strides = [1, 1]} : vector<8x2048xf32> to vector<1x128xf32>
    %26 = vector.extract_strided_slice %25 {offsets = [0, 0], sizes = [1, 32], strides = [1, 1]} : vector<1x128xf32> to vector<1x32xf32>
    %27 = vector.extract_strided_slice %25 {offsets = [0, 32], sizes = [1, 32], strides = [1, 1]} : vector<1x128xf32> to vector<1x32xf32>
    %28 = vector.extract_strided_slice %25 {offsets = [0, 64], sizes = [1, 32], strides = [1, 1]} : vector<1x128xf32> to vector<1x32xf32>
    %29 = vector.extract_strided_slice %25 {offsets = [0, 96], sizes = [1, 32], strides = [1, 1]} : vector<1x128xf32> to vector<1x32xf32>
    %30 = vector.extract_strided_slice %23 {offsets = [2, 0], sizes = [1, 128], strides = [1, 1]} : vector<8x2048xf32> to vector<1x128xf32>
    %31 = vector.extract_strided_slice %30 {offsets = [0, 0], sizes = [1, 32], strides = [1, 1]} : vector<1x128xf32> to vector<1x32xf32>
    %32 = vector.extract_strided_slice %30 {offsets = [0, 32], sizes = [1, 32], strides = [1, 1]} : vector<1x128xf32> to vector<1x32xf32>
    %33 = vector.extract_strided_slice %30 {offsets = [0, 64], sizes = [1, 32], strides = [1, 1]} : vector<1x128xf32> to vector<1x32xf32>
    %34 = vector.extract_strided_slice %30 {offsets = [0, 96], sizes = [1, 32], strides = [1, 1]} : vector<1x128xf32> to vector<1x32xf32>
    %35 = vector.extract_strided_slice %23 {offsets = [3, 0], sizes = [1, 32], strides = [1, 1]} : vector<8x2048xf32> to vector<1x32xf32>
    %cst = arith.constant dense<0.000000e+00> : vector<16x32xf32>
    %36 = tpu.matmul %3, %6, %cst {dimension_numbers = #tpu.dot_dimension_numbers<[1], [0], [0], [1], [0, 0, 1, 1], [], []>} : vector<16x32xf32>, vector<32x32xf32>, vector<16x32xf32> -> vector<16x32xf32>
    %37 = vector.broadcast %26 : vector<1x32xf32> to vector<16x32xf32>
    %38 = arith.addf %36, %37 : vector<16x32xf32>
    %cst_23 = arith.constant dense<0.000000e+00> : vector<16x32xf32>
    %39 = tpu.matmul %3, %9, %cst_23 {dimension_numbers = #tpu.dot_dimension_numbers<[1], [0], [0], [1], [0, 0, 1, 1], [], []>} : vector<16x32xf32>, vector<32x32xf32>, vector<16x32xf32> -> vector<16x32xf32>
    %40 = vector.broadcast %27 : vector<1x32xf32> to vector<16x32xf32>
    %41 = arith.addf %39, %40 : vector<16x32xf32>
    %cst_24 = arith.constant dense<0.000000e+00> : vector<16x32xf32>
    %42 = tpu.matmul %3, %12, %cst_24 {dimension_numbers = #tpu.dot_dimension_numbers<[1], [0], [0], [1], [0, 0, 1, 1], [], []>} : vector<16x32xf32>, vector<32x32xf32>, vector<16x32xf32> -> vector<16x32xf32>
    %43 = vector.broadcast %28 : vector<1x32xf32> to vector<16x32xf32>
    %44 = arith.addf %42, %43 : vector<16x32xf32>
    %45 = vector.shape_cast %38 : vector<16x32xf32> to vector<2x8x32xf32>
    %46 = vector.shape_cast %41 : vector<16x32xf32> to vector<2x8x32xf32>
    %47 = vector.shape_cast %44 : vector<16x32xf32> to vector<2x8x32xf32>
    %48 = vector.extract_strided_slice %45 {offsets = [0, 0, 0], sizes = [2, 8, 8], strides = [1, 1, 1]} : vector<2x8x32xf32> to vector<2x8x8xf32>
    %49 = vector.extract_strided_slice %46 {offsets = [0, 0, 0], sizes = [2, 8, 8], strides = [1, 1, 1]} : vector<2x8x32xf32> to vector<2x8x8xf32>
    "tpu.trace_start"() <{level = 10 : i32, message = "bqc,bkc->bqk"}> : () -> ()
    %cst_25 = arith.constant dense<0.000000e+00> : vector<2x8x8xf32>
    %50 = tpu.matmul %48, %49, %cst_25 {dimension_numbers = #tpu.dot_dimension_numbers<[2], [2], [1], [1], [0, 0, 0, 1, 1, 1], [0], [0]>} : vector<2x8x8xf32>, vector<2x8x8xf32>, vector<2x8x8xf32> -> vector<2x8x8xf32>
    "tpu.trace_stop"() : () -> ()
    %cst_26 = arith.constant dense<0xFF800000> : vector<2x8xf32>
    %51 = vector.multi_reduction <maximumf>, %50, %cst_26 [2] : vector<2x8x8xf32> to vector<2x8xf32>
    %52 = vector.shape_cast %51 : vector<2x8xf32> to vector<2x8x1xf32>
    %53 = vector.broadcast %52 : vector<2x8x1xf32> to vector<2x8x8xf32>
    %54 = arith.subf %50, %53 : vector<2x8x8xf32>
    %55 = math.exp %54 : vector<2x8x8xf32>
    %cst_27 = arith.constant dense<0.000000e+00> : vector<2x8xf32>
    %56 = vector.multi_reduction <add>, %55, %cst_27 [2] : vector<2x8x8xf32> to vector<2x8xf32>
    %57 = vector.shape_cast %56 : vector<2x8xf32> to vector<2x8x1xf32>
    %58 = tpu.reciprocal %57 : vector<2x8x1xf32> -> vector<2x8x1xf32>
    %59 = vector.broadcast %58 : vector<2x8x1xf32> to vector<2x8x8xf32>
    %60 = arith.mulf %55, %59 : vector<2x8x8xf32>
    %61 = vector.extract_strided_slice %47 {offsets = [0, 0, 0], sizes = [2, 8, 8], strides = [1, 1, 1]} : vector<2x8x32xf32> to vector<2x8x8xf32>
    "tpu.trace_start"() <{level = 10 : i32, message = "bqk,bkc->bqc"}> : () -> ()
    %cst_28 = arith.constant dense<0.000000e+00> : vector<2x8x8xf32>
    %62 = tpu.matmul %60, %61, %cst_28 {dimension_numbers = #tpu.dot_dimension_numbers<[2], [1], [1], [2], [0, 0, 0, 1, 1, 2], [0], [0]>} : vector<2x8x8xf32>, vector<2x8x8xf32>, vector<2x8x8xf32> -> vector<2x8x8xf32>
    "tpu.trace_stop"() : () -> ()
    %63 = vector.shape_cast %62 : vector<2x8x8xf32> to vector<16x8xf32>
    %64 = vector.extract_strided_slice %15 {offsets = [0, 0], sizes = [8, 32], strides = [1, 1]} : vector<32x32xf32> to vector<8x32xf32>
    %cst_29 = arith.constant dense<0.000000e+00> : vector<16x32xf32>
    %65 = tpu.matmul %63, %64, %cst_29 {dimension_numbers = #tpu.dot_dimension_numbers<[1], [0], [0], [1], [0, 0, 1, 1], [], []>} : vector<16x8xf32>, vector<8x32xf32>, vector<16x32xf32> -> vector<16x32xf32>
    %66 = vector.extract_strided_slice %45 {offsets = [0, 0, 8], sizes = [2, 8, 8], strides = [1, 1, 1]} : vector<2x8x32xf32> to vector<2x8x8xf32>
    %67 = vector.extract_strided_slice %46 {offsets = [0, 0, 8], sizes = [2, 8, 8], strides = [1, 1, 1]} : vector<2x8x32xf32> to vector<2x8x8xf32>
    "tpu.trace_start"() <{level = 10 : i32, message = "bqc,bkc->bqk"}> : () -> ()
    %cst_30 = arith.constant dense<0.000000e+00> : vector<2x8x8xf32>
    %68 = tpu.matmul %66, %67, %cst_30 {dimension_numbers = #tpu.dot_dimension_numbers<[2], [2], [1], [1], [0, 0, 0, 1, 1, 1], [0], [0]>} : vector<2x8x8xf32>, vector<2x8x8xf32>, vector<2x8x8xf32> -> vector<2x8x8xf32>
    "tpu.trace_stop"() : () -> ()
    %cst_31 = arith.constant dense<0xFF800000> : vector<2x8xf32>
    %69 = vector.multi_reduction <maximumf>, %68, %cst_31 [2] : vector<2x8x8xf32> to vector<2x8xf32>
    %70 = vector.shape_cast %69 : vector<2x8xf32> to vector<2x8x1xf32>
    %71 = vector.broadcast %70 : vector<2x8x1xf32> to vector<2x8x8xf32>
    %72 = arith.subf %68, %71 : vector<2x8x8xf32>
    %73 = math.exp %72 : vector<2x8x8xf32>
    %cst_32 = arith.constant dense<0.000000e+00> : vector<2x8xf32>
    %74 = vector.multi_reduction <add>, %73, %cst_32 [2] : vector<2x8x8xf32> to vector<2x8xf32>
    %75 = vector.shape_cast %74 : vector<2x8xf32> to vector<2x8x1xf32>
    %76 = tpu.reciprocal %75 : vector<2x8x1xf32> -> vector<2x8x1xf32>
    %77 = vector.broadcast %76 : vector<2x8x1xf32> to vector<2x8x8xf32>
    %78 = arith.mulf %73, %77 : vector<2x8x8xf32>
    %79 = vector.extract_strided_slice %47 {offsets = [0, 0, 8], sizes = [2, 8, 8], strides = [1, 1, 1]} : vector<2x8x32xf32> to vector<2x8x8xf32>
    "tpu.trace_start"() <{level = 10 : i32, message = "bqk,bkc->bqc"}> : () -> ()
    %cst_33 = arith.constant dense<0.000000e+00> : vector<2x8x8xf32>
    %80 = tpu.matmul %78, %79, %cst_33 {dimension_numbers = #tpu.dot_dimension_numbers<[2], [1], [1], [2], [0, 0, 0, 1, 1, 2], [0], [0]>} : vector<2x8x8xf32>, vector<2x8x8xf32>, vector<2x8x8xf32> -> vector<2x8x8xf32>
    "tpu.trace_stop"() : () -> ()
    %81 = vector.shape_cast %80 : vector<2x8x8xf32> to vector<16x8xf32>
    %82 = vector.extract_strided_slice %15 {offsets = [8, 0], sizes = [8, 32], strides = [1, 1]} : vector<32x32xf32> to vector<8x32xf32>
    %cst_34 = arith.constant dense<0.000000e+00> : vector<16x32xf32>
    %83 = tpu.matmul %81, %82, %cst_34 {dimension_numbers = #tpu.dot_dimension_numbers<[1], [0], [0], [1], [0, 0, 1, 1], [], []>} : vector<16x8xf32>, vector<8x32xf32>, vector<16x32xf32> -> vector<16x32xf32>
    %84 = arith.addf %65, %83 : vector<16x32xf32>
    %85 = vector.extract_strided_slice %45 {offsets = [0, 0, 16], sizes = [2, 8, 8], strides = [1, 1, 1]} : vector<2x8x32xf32> to vector<2x8x8xf32>
    %86 = vector.extract_strided_slice %46 {offsets = [0, 0, 16], sizes = [2, 8, 8], strides = [1, 1, 1]} : vector<2x8x32xf32> to vector<2x8x8xf32>
    "tpu.trace_start"() <{level = 10 : i32, message = "bqc,bkc->bqk"}> : () -> ()
    %cst_35 = arith.constant dense<0.000000e+00> : vector<2x8x8xf32>
    %87 = tpu.matmul %85, %86, %cst_35 {dimension_numbers = #tpu.dot_dimension_numbers<[2], [2], [1], [1], [0, 0, 0, 1, 1, 1], [0], [0]>} : vector<2x8x8xf32>, vector<2x8x8xf32>, vector<2x8x8xf32> -> vector<2x8x8xf32>
    "tpu.trace_stop"() : () -> ()
    %cst_36 = arith.constant dense<0xFF800000> : vector<2x8xf32>
    %88 = vector.multi_reduction <maximumf>, %87, %cst_36 [2] : vector<2x8x8xf32> to vector<2x8xf32>
    %89 = vector.shape_cast %88 : vector<2x8xf32> to vector<2x8x1xf32>
    %90 = vector.broadcast %89 : vector<2x8x1xf32> to vector<2x8x8xf32>
    %91 = arith.subf %87, %90 : vector<2x8x8xf32>
    %92 = math.exp %91 : vector<2x8x8xf32>
    %cst_37 = arith.constant dense<0.000000e+00> : vector<2x8xf32>
    %93 = vector.multi_reduction <add>, %92, %cst_37 [2] : vector<2x8x8xf32> to vector<2x8xf32>
    %94 = vector.shape_cast %93 : vector<2x8xf32> to vector<2x8x1xf32>
    %95 = tpu.reciprocal %94 : vector<2x8x1xf32> -> vector<2x8x1xf32>
    %96 = vector.broadcast %95 : vector<2x8x1xf32> to vector<2x8x8xf32>
    %97 = arith.mulf %92, %96 : vector<2x8x8xf32>
    %98 = vector.extract_strided_slice %47 {offsets = [0, 0, 16], sizes = [2, 8, 8], strides = [1, 1, 1]} : vector<2x8x32xf32> to vector<2x8x8xf32>
    "tpu.trace_start"() <{level = 10 : i32, message = "bqk,bkc->bqc"}> : () -> ()
    %cst_38 = arith.constant dense<0.000000e+00> : vector<2x8x8xf32>
    %99 = tpu.matmul %97, %98, %cst_38 {dimension_numbers = #tpu.dot_dimension_numbers<[2], [1], [1], [2], [0, 0, 0, 1, 1, 2], [0], [0]>} : vector<2x8x8xf32>, vector<2x8x8xf32>, vector<2x8x8xf32> -> vector<2x8x8xf32>
    "tpu.trace_stop"() : () -> ()
    %100 = vector.shape_cast %99 : vector<2x8x8xf32> to vector<16x8xf32>
    %101 = vector.extract_strided_slice %15 {offsets = [16, 0], sizes = [8, 32], strides = [1, 1]} : vector<32x32xf32> to vector<8x32xf32>
    %cst_39 = arith.constant dense<0.000000e+00> : vector<16x32xf32>
    %102 = tpu.matmul %100, %101, %cst_39 {dimension_numbers = #tpu.dot_dimension_numbers<[1], [0], [0], [1], [0, 0, 1, 1], [], []>} : vector<16x8xf32>, vector<8x32xf32>, vector<16x32xf32> -> vector<16x32xf32>
    %103 = arith.addf %84, %102 : vector<16x32xf32>
    %104 = vector.extract_strided_slice %45 {offsets = [0, 0, 24], sizes = [2, 8, 8], strides = [1, 1, 1]} : vector<2x8x32xf32> to vector<2x8x8xf32>
    %105 = vector.extract_strided_slice %46 {offsets = [0, 0, 24], sizes = [2, 8, 8], strides = [1, 1, 1]} : vector<2x8x32xf32> to vector<2x8x8xf32>
    "tpu.trace_start"() <{level = 10 : i32, message = "bqc,bkc->bqk"}> : () -> ()
    %cst_40 = arith.constant dense<0.000000e+00> : vector<2x8x8xf32>
    %106 = tpu.matmul %104, %105, %cst_40 {dimension_numbers = #tpu.dot_dimension_numbers<[2], [2], [1], [1], [0, 0, 0, 1, 1, 1], [0], [0]>} : vector<2x8x8xf32>, vector<2x8x8xf32>, vector<2x8x8xf32> -> vector<2x8x8xf32>
    "tpu.trace_stop"() : () -> ()
    %cst_41 = arith.constant dense<0xFF800000> : vector<2x8xf32>
    %107 = vector.multi_reduction <maximumf>, %106, %cst_41 [2] : vector<2x8x8xf32> to vector<2x8xf32>
    %108 = vector.shape_cast %107 : vector<2x8xf32> to vector<2x8x1xf32>
    %109 = vector.broadcast %108 : vector<2x8x1xf32> to vector<2x8x8xf32>
    %110 = arith.subf %106, %109 : vector<2x8x8xf32>
    %111 = math.exp %110 : vector<2x8x8xf32>
    %cst_42 = arith.constant dense<0.000000e+00> : vector<2x8xf32>
    %112 = vector.multi_reduction <add>, %111, %cst_42 [2] : vector<2x8x8xf32> to vector<2x8xf32>
    %113 = vector.shape_cast %112 : vector<2x8xf32> to vector<2x8x1xf32>
    %114 = tpu.reciprocal %113 : vector<2x8x1xf32> -> vector<2x8x1xf32>
    %115 = vector.broadcast %114 : vector<2x8x1xf32> to vector<2x8x8xf32>
    %116 = arith.mulf %111, %115 : vector<2x8x8xf32>
    %117 = vector.extract_strided_slice %47 {offsets = [0, 0, 24], sizes = [2, 8, 8], strides = [1, 1, 1]} : vector<2x8x32xf32> to vector<2x8x8xf32>
    "tpu.trace_start"() <{level = 10 : i32, message = "bqk,bkc->bqc"}> : () -> ()
    %cst_43 = arith.constant dense<0.000000e+00> : vector<2x8x8xf32>
    %118 = tpu.matmul %116, %117, %cst_43 {dimension_numbers = #tpu.dot_dimension_numbers<[2], [1], [1], [2], [0, 0, 0, 1, 1, 2], [0], [0]>} : vector<2x8x8xf32>, vector<2x8x8xf32>, vector<2x8x8xf32> -> vector<2x8x8xf32>
    "tpu.trace_stop"() : () -> ()
    %119 = vector.shape_cast %118 : vector<2x8x8xf32> to vector<16x8xf32>
    %120 = vector.extract_strided_slice %15 {offsets = [24, 0], sizes = [8, 32], strides = [1, 1]} : vector<32x32xf32> to vector<8x32xf32>
    %cst_44 = arith.constant dense<0.000000e+00> : vector<16x32xf32>
    %121 = tpu.matmul %119, %120, %cst_44 {dimension_numbers = #tpu.dot_dimension_numbers<[1], [0], [0], [1], [0, 0, 1, 1], [], []>} : vector<16x8xf32>, vector<8x32xf32>, vector<16x32xf32> -> vector<16x32xf32>
    %122 = arith.addf %103, %121 : vector<16x32xf32>
    %123 = vector.broadcast %29 : vector<1x32xf32> to vector<16x32xf32>
    %124 = arith.addf %122, %123 : vector<16x32xf32>
    %125 = arith.addf %3, %124 : vector<16x32xf32>
    %cst_45 = arith.constant dense<0.000000e+00> : vector<16xf32>
    %126 = vector.multi_reduction <add>, %125, %cst_45 [1] : vector<16x32xf32> to vector<16xf32>
    %127 = vector.shape_cast %126 : vector<16xf32> to vector<16x1xf32>
    %cst_46 = arith.constant 3.200000e+01 : f32
    %128 = vector.broadcast %cst_46 : f32 to vector<16x1xf32>
    %129 = arith.divf %127, %128 : vector<16x1xf32>
    %130 = vector.broadcast %129 : vector<16x1xf32> to vector<16x32xf32>
    %131 = arith.subf %125, %130 : vector<16x32xf32>
    %132 = arith.mulf %131, %131 : vector<16x32xf32>
    %cst_47 = arith.constant dense<0.000000e+00> : vector<16xf32>
    %133 = vector.multi_reduction <add>, %132, %cst_47 [1] : vector<16x32xf32> to vector<16xf32>
    %134 = vector.shape_cast %133 : vector<16xf32> to vector<16x1xf32>
    %cst_48 = arith.constant 3.200000e+01 : f32
    %135 = vector.broadcast %cst_48 : f32 to vector<16x1xf32>
    %136 = arith.divf %134, %135 : vector<16x1xf32>
    %137 = vector.broadcast %129 : vector<16x1xf32> to vector<16x32xf32>
    %138 = arith.subf %125, %137 : vector<16x32xf32>
    %cst_49 = arith.constant 9.99999974E-6 : f32
    %139 = vector.broadcast %cst_49 : f32 to vector<16x1xf32>
    %140 = arith.addf %136, %139 : vector<16x1xf32>
    %141 = math.rsqrt %140 : vector<16x1xf32>
    %142 = vector.broadcast %141 : vector<16x1xf32> to vector<16x32xf32>
    %143 = arith.mulf %138, %142 : vector<16x32xf32>
    %144 = vector.broadcast %31 : vector<1x32xf32> to vector<16x32xf32>
    %145 = arith.mulf %143, %144 : vector<16x32xf32>
    %146 = vector.broadcast %32 : vector<1x32xf32> to vector<16x32xf32>
    %147 = arith.addf %145, %146 : vector<16x32xf32>
    %cst_50 = arith.constant dense<0.000000e+00> : vector<16x2048xf32>
    %148 = tpu.matmul %147, %18, %cst_50 {dimension_numbers = #tpu.dot_dimension_numbers<[1], [0], [0], [1], [0, 0, 1, 1], [], []>} : vector<16x32xf32>, vector<32x2048xf32>, vector<16x2048xf32> -> vector<16x2048xf32>
    %149 = vector.broadcast %24 : vector<1x2048xf32> to vector<16x2048xf32>
    %150 = arith.addf %148, %149 : vector<16x2048xf32>
    %cst_51 = arith.constant 0.000000e+00 : f32
    %151 = vector.broadcast %cst_51 : f32 to vector<16x2048xf32>
    %152 = arith.maximumf %150, %151 : vector<16x2048xf32>
    %cst_52 = arith.constant dense<0.000000e+00> : vector<16x32xf32>
    %153 = tpu.matmul %152, %21, %cst_52 {dimension_numbers = #tpu.dot_dimension_numbers<[1], [1], [0], [0], [0, 0, 1, 0], [], []>} : vector<16x2048xf32>, vector<32x2048xf32>, vector<16x32xf32> -> vector<16x32xf32>
    %154 = vector.broadcast %33 : vector<1x32xf32> to vector<16x32xf32>
    %155 = arith.addf %153, %154 : vector<16x32xf32>
    %156 = arith.addf %147, %155 : vector<16x32xf32>
    %cst_53 = arith.constant dense<0.000000e+00> : vector<16xf32>
    %157 = vector.multi_reduction <add>, %156, %cst_53 [1] : vector<16x32xf32> to vector<16xf32>
    %158 = vector.shape_cast %157 : vector<16xf32> to vector<16x1xf32>
    %cst_54 = arith.constant 3.200000e+01 : f32
    %159 = vector.broadcast %cst_54 : f32 to vector<16x1xf32>
    %160 = arith.divf %158, %159 : vector<16x1xf32>
    %161 = vector.broadcast %160 : vector<16x1xf32> to vector<16x32xf32>
    %162 = arith.subf %156, %161 : vector<16x32xf32>
    %163 = arith.mulf %162, %162 : vector<16x32xf32>
    %cst_55 = arith.constant dense<0.000000e+00> : vector<16xf32>
    %164 = vector.multi_reduction <add>, %163, %cst_55 [1] : vector<16x32xf32> to vector<16xf32>
    %165 = vector.shape_cast %164 : vector<16xf32> to vector<16x1xf32>
    %cst_56 = arith.constant 3.200000e+01 : f32
    %166 = vector.broadcast %cst_56 : f32 to vector<16x1xf32>
    %167 = arith.divf %165, %166 : vector<16x1xf32>
    %168 = vector.broadcast %160 : vector<16x1xf32> to vector<16x32xf32>
    %169 = arith.subf %156, %168 : vector<16x32xf32>
    %cst_57 = arith.constant 9.99999974E-6 : f32
    %170 = vector.broadcast %cst_57 : f32 to vector<16x1xf32>
    %171 = arith.addf %167, %170 : vector<16x1xf32>
    %172 = math.rsqrt %171 : vector<16x1xf32>
    %173 = vector.broadcast %172 : vector<16x1xf32> to vector<16x32xf32>
    %174 = arith.mulf %169, %173 : vector<16x32xf32>
    %175 = vector.broadcast %34 : vector<1x32xf32> to vector<16x32xf32>
    %176 = arith.mulf %174, %175 : vector<16x32xf32>
    %177 = vector.broadcast %35 : vector<1x32xf32> to vector<16x32xf32>
    %178 = arith.addf %176, %177 : vector<16x32xf32>
    %c0_58 = arith.constant 0 : index
    %c0_59 = arith.constant 0 : index
    %179 = vector.load %arg14[%c0_58, %c0_59] : memref<16x32xf32, #tpu.memory_space<vmem>>, vector<16x32xf32>
    tpu.vector_store %arg14[%c0_58, %c0_59], %178 {strides = array<i32>} : memref<16x32xf32, #tpu.memory_space<vmem>>, vector<16x32xf32>,
    %c1_i32 = arith.constant 1 : i32
    %180 = arith.cmpi eq, %arg0, %c1_i32 : i32
    %181 = arith.extui %180 : i1 to i32
    %c0_i32_60 = arith.constant 0 : i32
    %182 = arith.cmpi ne, %181, %c0_i32_60 : i32
    scf.if %182 {
      %183 = vector.shape_cast %178 : vector<16x32xf32> to vector<2x8x32xf32>
      %184 = vector.extract_strided_slice %183 {offsets = [0, 7, 0], sizes = [2, 1, 32], strides = [1, 1, 1]} : vector<2x8x32xf32> to vector<2x1x32xf32>
      %185 = vector.shape_cast %184 : vector<2x1x32xf32> to vector<2x32xf32>
      %c0_61 = arith.constant 0 : index
      %c0_62 = arith.constant 0 : index
      %186 = vector.load %arg4[%c0_61, %c0_62] : memref<32x4xbf16, #tpu.memory_space<vmem>>, vector<32x4xbf16>
      %187 = arith.extf %186 : vector<32x4xbf16> to vector<32x4xf32>
      %cst_63 = arith.constant dense<0.000000e+00> : vector<2x4xf32>
      %188 = tpu.matmul %185, %187, %cst_63 {dimension_numbers = #tpu.dot_dimension_numbers<[1], [0], [0], [1], [0, 0, 1, 1], [], []>} : vector<2x32xf32>, vector<32x4xf32>, vector<2x4xf32> -> vector<2x4xf32>
      %c0_64 = arith.constant 0 : index
      %c0_65 = arith.constant 0 : index
      %189 = vector.load %arg5[%c0_64, %c0_65] : memref<1x4xf32, #tpu.memory_space<vmem>>, vector<1x4xf32>
      %190 = vector.broadcast %189 : vector<1x4xf32> to vector<2x4xf32>
      %191 = arith.addf %188, %190 : vector<2x4xf32>
      %192 = arith.negf %191 : vector<2x4xf32>
      %193 = math.exp %192 : vector<2x4xf32>
      %cst_66 = arith.constant 1.000000e+00 : f32
      %194 = vector.broadcast %cst_66 : f32 to vector<2x4xf32>
      %195 = arith.addf %194, %193 : vector<2x4xf32>
      %196 = arith.divf %194, %195 : vector<2x4xf32>
      %c0_67 = arith.constant 0 : index
      %c0_68 = arith.constant 0 : index
      %197 = vector.load %arg13[%c0_67, %c0_68] : memref<2x4xf32, #tpu.memory_space<vmem>>, vector<2x4xf32>
      tpu.vector_store %arg13[%c0_67, %c0_68], %196 {strides = array<i32>} : memref<2x4xf32, #tpu.memory_space<vmem>>, vector<2x4xf32>,
    } else {
    }
    return
  }
  func.func @transform_0(%arg0: i32) -> (i32, i32) {
    %c0_i32 = arith.constant 0 : i32
    %c0_i32_0 = arith.constant 0 : i32
    %c0_i32_1 = arith.constant 0 : i32
    return %c0_i32, %c0_i32_0 : i32, i32
  }
  func.func @transform_1(%arg0: i32) -> (i32, i32) {
    %c0_i32 = arith.constant 0 : i32
    %c0_i32_0 = arith.constant 0 : i32
    %c0_i32_1 = arith.constant 0 : i32
    return %c0_i32, %c0_i32_0 : i32, i32
  }
  func.func @transform_2(%arg0: i32) -> (i32, i32) {
    %c0_i32 = arith.constant 0 : i32
    %c0_i32_0 = arith.constant 0 : i32
    %c0_i32_1 = arith.constant 0 : i32
    return %c0_i32, %c0_i32_0 : i32, i32
  }
  func.func @transform_3(%arg0: i32) -> (i32, i32) {
    %c0_i32 = arith.constant 0 : i32
    %c0_i32_0 = arith.constant 0 : i32
    %c0_i32_1 = arith.constant 0 : i32
    return %c0_i32, %c0_i32_0 : i32, i32
  }
  func.func @transform_4(%arg0: i32) -> (i32, i32) {
    %c0_i32 = arith.constant 0 : i32
    %c0_i32_0 = arith.constant 0 : i32
    %c0_i32_1 = arith.constant 0 : i32
    return %c0_i32, %c0_i32_0 : i32, i32
  }
  func.func @transform_5(%arg0: i32) -> (i32, i32, i32) {
    %c0_i32 = arith.constant 0 : i32
    %c0_i32_0 = arith.constant 0 : i32
    %c0_i32_1 = arith.constant 0 : i32
    return %arg0, %c0_i32, %c0_i32_0 : i32, i32, i32
  }
  func.func @transform_6(%arg0: i32) -> (i32, i32, i32) {
    %c0_i32 = arith.constant 0 : i32
    %c0_i32_0 = arith.constant 0 : i32
    %c0_i32_1 = arith.constant 0 : i32
    return %arg0, %c0_i32, %c0_i32_0 : i32, i32, i32
  }
  func.func @transform_7(%arg0: i32) -> (i32, i32, i32) {
    %c0_i32 = arith.constant 0 : i32
    %c0_i32_0 = arith.constant 0 : i32
    %c0_i32_1 = arith.constant 0 : i32
    return %arg0, %c0_i32, %c0_i32_0 : i32, i32, i32
  }
  func.func @transform_8(%arg0: i32) -> (i32, i32, i32) {
    %c0_i32 = arith.constant 0 : i32
    %c0_i32_0 = arith.constant 0 : i32
    %c0_i32_1 = arith.constant 0 : i32
    return %arg0, %c0_i32, %c0_i32_0 : i32, i32, i32
  }
  func.func @transform_9(%arg0: i32) -> (i32, i32, i32) {
    %c0_i32 = arith.constant 0 : i32
    %c0_i32_0 = arith.constant 0 : i32
    %c0_i32_1 = arith.constant 0 : i32
    return %arg0, %c0_i32, %c0_i32_0 : i32, i32, i32
  }
  func.func @transform_10(%arg0: i32) -> (i32, i32, i32) {
    %c0_i32 = arith.constant 0 : i32
    %c0_i32_0 = arith.constant 0 : i32
    %c0_i32_1 = arith.constant 0 : i32
    return %arg0, %c0_i32, %c0_i32_0 : i32, i32, i32
  }
  func.func @transform_11(%arg0: i32) -> (i32, i32, i32) {
    %c0_i32 = arith.constant 0 : i32
    %c0_i32_0 = arith.constant 0 : i32
    %c0_i32_1 = arith.constant 0 : i32
    return %arg0, %c0_i32, %c0_i32_0 : i32, i32, i32
  }
  func.func @transform_12(%arg0: i32) -> (i32, i32) {
    %c0_i32 = arith.constant 0 : i32
    %c0_i32_0 = arith.constant 0 : i32
    %c0_i32_1 = arith.constant 0 : i32
    return %c0_i32, %c0_i32_0 : i32, i32
  }
}

</mosaic_0001>

<llo_original>
// kernel: tpu_custom_call.1
$region0: #{tpu_custom_call.1}
  #allocation0 [shape = 'u32[]', space=smem, size = 0x4, offset = 0x4, fixed_abs, tag = 'smem constant byte address 0x4 - core index']
  #allocation1 [shape = 'u32[72,128]{1,0:T(1,128)}', space=vmem, size = 0x9000, scoped, tag = 'internal scratch']
  #allocation2 [shape = 'f32[16,32]{1,0:T(8,128)}', space=vmem, size = 0x2000, scoped, tag = 'scratch operand']
  %s0 = inlined_call_operand.vmem [shape: f32[16,8], index: 0, kind: input, shape index: {}]
  %s1 = inlined_call_operand.vmem [shape: bf16[8,32], index: 1, kind: input, shape index: {}]
  %s2 = inlined_call_operand.vmem [shape: f32[1,32], index: 2, kind: input, shape index: {}]
  %s3 = inlined_call_operand.vmem [shape: bf16[32,4], index: 3, kind: input, shape index: {}]
  %s4 = inlined_call_operand.vmem [shape: f32[1,4], index: 4, kind: input, shape index: {}]
  %s5 = inlined_call_operand.vmem [shape: bf16[2,32,32], index: 5, kind: input, shape index: {}]
  %s6 = inlined_call_operand.hbm [shape: bf16[2,32,32], index: 6, kind: input, shape index: {}]
  %s7 = inlined_call_operand.hbm [shape: bf16[2,32,32], index: 7, kind: input, shape index: {}]
  %s8 = inlined_call_operand.hbm [shape: bf16[2,32,32], index: 8, kind: input, shape index: {}]
  %s9 = inlined_call_operand.hbm [shape: bf16[2,32,2048], index: 9, kind: input, shape index: {}]
  %s10 = inlined_call_operand.hbm [shape: bf16[2,32,2048], index: 10, kind: input, shape index: {}]
  %s11 = inlined_call_operand.hbm [shape: f32[2,8,2048], index: 11, kind: input, shape index: {}]
  %s12 = inlined_call_operand.hbm [shape: f32[2,4], index: 12, kind: output, shape index: {}]
  %s13 = sld [smem:[#allocation0]]
  $region113: #{tpu_custom_call.1} parent=0
    _
  %s15 = ssub.s32 1, %s13
  %s16 = scalar_select 0, %s15, %s13
  $region1: #{tpu_custom_call.1} parent=0
    #allocation3 [shape = 'u8[16384]{0}', space=vmem, size = 0x4000, scoped, tag = 'input window, operand 6']
    #allocation4 [shape = 's32[2]{0}', space=sflag, size = 0x8, scoped, tag = 'scoped memory for tpu_custom_call.1']
    #allocation5 [shape = 's32[2]{0}', space=sflag, size = 0x8, scoped, tag = 'scoped memory for tpu_custom_call.1']
    #allocation6 [shape = 'u8[16384]{0}', space=vmem, size = 0x4000, scoped, tag = 'input window, operand 7']
    #allocation7 [shape = 's32[2]{0}', space=sflag, size = 0x8, scoped, tag = 'scoped memory for tpu_custom_call.1']
    #allocation8 [shape = 'u8[16384]{0}', space=vmem, size = 0x4000, scoped, tag = 'input window, operand 8']
    #allocation9 [shape = 'u8[262144]{0}', space=vmem, size = 0x40000, scoped, tag = 'input window, operand 9']
    #allocation10 [shape = 's32[2]{0}', space=sflag, size = 0x8, scoped, tag = 'scoped memory for tpu_custom_call.1']
    #allocation11 [shape = 'u8[262144]{0}', space=vmem, size = 0x40000, scoped, tag = 'input window, operand 10']
    #allocation12 [shape = 'u8[131072]{0}', space=vmem, size = 0x20000, scoped, tag = 'input window, operand 11']
    #allocation13 [shape = 's32[2]{0}', space=sflag, size = 0x8, scoped, tag = 'scoped memory for tpu_custom_call.1']
    #allocation14 [shape = 'u8[1024]{0}', space=vmem, size = 0x400, scoped, tag = 'output window, operand 0, single buffered']
    %17 = vsyncpa [#allocation4], 0
    %s18 = scalar_lea.sflag [#allocation4], 1
    %19 = vsyncpa %s18, 0
    %20 = vsyncpa [#allocation7], 0
    %s21 = scalar_lea.sflag [#allocation7], 1
    %22 = vsyncpa %s21, 0
    %23 = vsyncpa [#allocation10], 0
    %s24 = scalar_lea.sflag [#allocation10], 1
    %25 = vsyncpa %s24, 0
    %26 = vsyncpa [#allocation13], 0
    %s27 = scalar_lea.sflag [#allocation13], 1
    %28 = vsyncpa %s27, 0
    %29 = vsyncpa [#allocation5], 0
    loop: start=0, step=1, limit=4
    $region2: #{tpu_custom_call.1} parent=1 // loop_pre_header
      _
    $region3: #{tpu_custom_call.1} parent=1 // loop_header
      %s31 = sphi 0, %s35
      %p32 = scmp.ge.s32.totalorder %s31, 4
      %s39 = sphi 0, %s39
      %s41 = sphi 0, %s39
      %s42 = sphi 0, %s41
      %s56 = sphi 0, %s42
      %s60 = sphi 0, %s60
      %s62 = sphi 0, %s60
      %s63 = sphi 0, %s62
      %s77 = sphi 0, %s63
      %s81 = sphi 0, %s81
      %s83 = sphi 0, %s81
      %s84 = sphi 0, %s83
      %s98 = sphi 0, %s84
      %s102 = sphi 0, %s102
      %s104 = sphi 0, %s102
      %s105 = sphi 0, %s104
      %s119 = sphi 0, %s105
      %s123 = sphi 0, %s123
      %s125 = sphi 0, %s123
      %s126 = sphi 0, %s125
      %s140 = sphi 0, %s126
      %s146 = sphi 0, %s148
      %s149 = sphi 0, %s146
      %s150 = sphi 0, %s149
      %s166 = sphi 0, %s150
      %s172 = sphi 0, %s174
      %s175 = sphi 0, %s172
      %s176 = sphi 0, %s175
      %s192 = sphi 0, %s176
      %s198 = sphi 0, %s200
      %s201 = sphi 0, %s198
      %s202 = sphi 0, %s201
      %s218 = sphi 0, %s202
      %s224 = sphi 0, %s226
      %s227 = sphi 0, %s224
      %s228 = sphi 0, %s227
      %s244 = sphi 0, %s228
      %s250 = sphi 0, %s252
      %s253 = sphi 0, %s250
      %s254 = sphi 0, %s253
      %s270 = sphi 0, %s254
      %s276 = sphi 0, %s278
      %s279 = sphi 0, %s276
      %s280 = sphi 0, %s279
      %s296 = sphi 0, %s280
      %s302 = sphi 0, %s304
      %s305 = sphi 0, %s302
      %s306 = sphi 0, %s305
      %s322 = sphi 0, %s306
      %s326 = sphi 0, %s326
      %s328 = sphi 0, %s326
      %s329 = sphi 0, %s328
      %s343 = sphi 0, %s329
    $region4: #{tpu_custom_call.1} parent=1 // loop_header_branch
      %34 = sbr.rel (%p32) target = $region8
    $region5: #{tpu_custom_call.1} parent=1 // loop_body
      %s36 = ssub.s32 %s31, 1
      %s37 = ssub.s32 %s31, 2
      %s38 = sadd.s32 %s31, 1
      %s40 = sadd.s32 %s39, 1
      %p43 = scmp.eq.s32.totalorder %s31, 1
      %p44 = scmp.ne.s32.totalorder %s39, %s41
      %p45 = scmp.eq.s32.totalorder %s31, 0
      %p46 = por %p44, %p45
      %p47 = scmp.ne.s32.totalorder %s39, %s41
      %p48 = scmp.eq.s32.totalorder %s36, 1
      %p49 = por %p47, %p48
      %p50 = scmp.ne.s32.totalorder %s41, %s42
      %p51 = scmp.eq.s32.totalorder %s36, 0
      %p52 = por %p50, %p51
      %p53 = scmp.ne.s32.totalorder %s41, %s42
      %p54 = scmp.eq.s32.totalorder %s37, 1
      %p55 = por %p53, %p54
      %p57 = scmp.ne.s32.totalorder %s42, %s56
      %p58 = scmp.eq.s32.totalorder %s37, 0
      %p59 = por %p57, %p58
      %s61 = sadd.s32 %s60, 1
      %p64 = scmp.eq.s32.totalorder %s31, 1
      %p65 = scmp.ne.s32.totalorder %s60, %s62
      %p66 = scmp.eq.s32.totalorder %s31, 0
      %p67 = por %p65, %p66
      %p68 = scmp.ne.s32.totalorder %s60, %s62
      %p69 = scmp.eq.s32.totalorder %s36, 1
      %p70 = por %p68, %p69
      %p71 = scmp.ne.s32.totalorder %s62, %s63
      %p72 = scmp.eq.s32.totalorder %s36, 0
      %p73 = por %p71, %p72
      %p74 = scmp.ne.s32.totalorder %s62, %s63
      %p75 = scmp.eq.s32.totalorder %s37, 1
      %p76 = por %p74, %p75
      %p78 = scmp.ne.s32.totalorder %s63, %s77
      %p79 = scmp.eq.s32.totalorder %s37, 0
      %p80 = por %p78, %p79
      %s82 = sadd.s32 %s81, 1
      %p85 = scmp.eq.s32.totalorder %s31, 1
      %p86 = scmp.ne.s32.totalorder %s81, %s83
      %p87 = scmp.eq.s32.totalorder %s31, 0
      %p88 = por %p86, %p87
      %p89 = scmp.ne.s32.totalorder %s81, %s83
      %p90 = scmp.eq.s32.totalorder %s36, 1
      %p91 = por %p89, %p90
      %p92 = scmp.ne.s32.totalorder %s83, %s84
      %p93 = scmp.eq.s32.totalorder %s36, 0
      %p94 = por %p92, %p93
      %p95 = scmp.ne.s32.totalorder %s83, %s84
      %p96 = scmp.eq.s32.totalorder %s37, 1
      %p97 = por %p95, %p96
      %p99 = scmp.ne.s32.totalorder %s84, %s98
      %p100 = scmp.eq.s32.totalorder %s37, 0
      %p101 = por %p99, %p100
      %s103 = sadd.s32 %s102, 1
      %p106 = scmp.eq.s32.totalorder %s31, 1
      %p107 = scmp.ne.s32.totalorder %s102, %s104
      %p108 = scmp.eq.s32.totalorder %s31, 0
      %p109 = por %p107, %p108
      %p110 = scmp.ne.s32.totalorder %s102, %s104
      %p111 = scmp.eq.s32.totalorder %s36, 1
      %p112 = por %p110, %p111
      %p113 = scmp.ne.s32.totalorder %s104, %s105
      %p114 = scmp.eq.s32.totalorder %s36, 0
      %p115 = por %p113, %p114
      %p116 = scmp.ne.s32.totalorder %s104, %s105
      %p117 = scmp.eq.s32.totalorder %s37, 1
      %p118 = por %p116, %p117
      %p120 = scmp.ne.s32.totalorder %s105, %s119
      %p121 = scmp.eq.s32.totalorder %s37, 0
      %p122 = por %p120, %p121
      %s124 = sadd.s32 %s123, 1
      %p127 = scmp.eq.s32.totalorder %s31, 1
      %p128 = scmp.ne.s32.totalorder %s123, %s125
      %p129 = scmp.eq.s32.totalorder %s31, 0
      %p130 = por %p128, %p129
      %p131 = scmp.ne.s32.totalorder %s123, %s125
      %p132 = scmp.eq.s32.totalorder %s36, 1
      %p133 = por %p131, %p132
      %p134 = scmp.ne.s32.totalorder %s125, %s126
      %p135 = scmp.eq.s32.totalorder %s36, 0
      %p136 = por %p134, %p135
      %p137 = scmp.ne.s32.totalorder %s125, %s126
      %p138 = scmp.eq.s32.totalorder %s37, 1
      %p139 = por %p137, %p138
      %p141 = scmp.ne.s32.totalorder %s126, %s140
      %p142 = scmp.eq.s32.totalorder %s37, 0
      %p143 = por %p141, %p142
      %s144 = ssub.s32 %s31, %s38
      %p145 = scmp.eq.s32.totalorder %s144, 0
      %s147 = sadd.s32 %s146, 1
      %s148 = scalar_select %p145, %s146, %s147
      %p151 = pneg %p145
      %p152 = scmp.eq.s32.totalorder %s31, 1
      %p153 = por %p151, %p152
      %p154 = scmp.ne.s32.totalorder %s146, %s149
      %p155 = scmp.eq.s32.totalorder %s31, 0
      %p156 = por %p154, %p155
      %p157 = scmp.ne.s32.totalorder %s146, %s149
      %p158 = scmp.eq.s32.totalorder %s36, 1
      %p159 = por %p157, %p158
      %p160 = scmp.ne.s32.totalorder %s149, %s150
      %p161 = scmp.eq.s32.totalorder %s36, 0
      %p162 = por %p160, %p161
      %p163 = scmp.ne.s32.totalorder %s149, %s150
      %p164 = scmp.eq.s32.totalorder %s37, 1
      %p165 = por %p163, %p164
      %p167 = scmp.ne.s32.totalorder %s150, %s166
      %p168 = scmp.eq.s32.totalorder %s37, 0
      %p169 = por %p167, %p168
      %s170 = ssub.s32 %s31, %s38
      %p171 = scmp.eq.s32.totalorder %s170, 0
      %s173 = sadd.s32 %s172, 1
      %s174 = scalar_select %p171, %s172, %s173
      %p177 = pneg %p171
      %p178 = scmp.eq.s32.totalorder %s31, 1
      %p179 = por %p177, %p178
      %p180 = scmp.ne.s32.totalorder %s172, %s175
      %p181 = scmp.eq.s32.totalorder %s31, 0
      %p182 = por %p180, %p181
      %p183 = scmp.ne.s32.totalorder %s172, %s175
      %p184 = scmp.eq.s32.totalorder %s36, 1
      %p185 = por %p183, %p184
      %p186 = scmp.ne.s32.totalorder %s175, %s176
      %p187 = scmp.eq.s32.totalorder %s36, 0
      %p188 = por %p186, %p187
      %p189 = scmp.ne.s32.totalorder %s175, %s176
      %p190 = scmp.eq.s32.totalorder %s37, 1
      %p191 = por %p189, %p190
      %p193 = scmp.ne.s32.totalorder %s176, %s192
      %p194 = scmp.eq.s32.totalorder %s37, 0
      %p195 = por %p193, %p194
      %s196 = ssub.s32 %s31, %s38
      %p197 = scmp.eq.s32.totalorder %s196, 0
      %s199 = sadd.s32 %s198, 1
      %s200 = scalar_select %p197, %s198, %s199
      %p203 = pneg %p197
      %p204 = scmp.eq.s32.totalorder %s31, 1
      %p205 = por %p203, %p204
      %p206 = scmp.ne.s32.totalorder %s198, %s201
      %p207 = scmp.eq.s32.totalorder %s31, 0
      %p208 = por %p206, %p207
      %p209 = scmp.ne.s32.totalorder %s198, %s201
      %p210 = scmp.eq.s32.totalorder %s36, 1
      %p211 = por %p209, %p210
      %p212 = scmp.ne.s32.totalorder %s201, %s202
      %p213 = scmp.eq.s32.totalorder %s36, 0
      %p214 = por %p212, %p213
      %p215 = scmp.ne.s32.totalorder %s201, %s202
      %p216 = scmp.eq.s32.totalorder %s37, 1
      %p217 = por %p215, %p216
      %p219 = scmp.ne.s32.totalorder %s202, %s218
      %p220 = scmp.eq.s32.totalorder %s37, 0
      %p221 = por %p219, %p220
      %s222 = ssub.s32 %s31, %s38
      %p223 = scmp.eq.s32.totalorder %s222, 0
      %s225 = sadd.s32 %s224, 1
      %s226 = scalar_select %p223, %s224, %s225
      %p229 = pneg %p223
      %p230 = scmp.eq.s32.totalorder %s31, 1
      %p231 = por %p229, %p230
      %p232 = scmp.ne.s32.totalorder %s224, %s227
      %p233 = scmp.eq.s32.totalorder %s31, 0
      %p234 = por %p232, %p233
      %p235 = scmp.ne.s32.totalorder %s224, %s227
      %p236 = scmp.eq.s32.totalorder %s36, 1
      %p237 = por %p235, %p236
      %p238 = scmp.ne.s32.totalorder %s227, %s228
      %p239 = scmp.eq.s32.totalorder %s36, 0
      %p240 = por %p238, %p239
      %p241 = scmp.ne.s32.totalorder %s227, %s228
      %p242 = scmp.eq.s32.totalorder %s37, 1
      %p243 = por %p241, %p242
      %p245 = scmp.ne.s32.totalorder %s228, %s244
      %p246 = scmp.eq.s32.totalorder %s37, 0
      %p247 = por %p245, %p246
      %s248 = ssub.s32 %s31, %s38
      %p249 = scmp.eq.s32.totalorder %s248, 0
      %s251 = sadd.s32 %s250, 1
      %s252 = scalar_select %p249, %s250, %s251
      %p255 = pneg %p249
      %p256 = scmp.eq.s32.totalorder %s31, 1
      %p257 = por %p255, %p256
      %p258 = scmp.ne.s32.totalorder %s250, %s253
      %p259 = scmp.eq.s32.totalorder %s31, 0
      %p260 = por %p258, %p259
      %p261 = scmp.ne.s32.totalorder %s250, %s253
      %p262 = scmp.eq.s32.totalorder %s36, 1
      %p263 = por %p261, %p262
      %p264 = scmp.ne.s32.totalorder %s253, %s254
      %p265 = scmp.eq.s32.totalorder %s36, 0
      %p266 = por %p264, %p265
      %p267 = scmp.ne.s32.totalorder %s253, %s254
      %p268 = scmp.eq.s32.totalorder %s37, 1
      %p269 = por %p267, %p268
      %p271 = scmp.ne.s32.totalorder %s254, %s270
      %p272 = scmp.eq.s32.totalorder %s37, 0
      %p273 = por %p271, %p272
      %s274 = ssub.s32 %s31, %s38
      %p275 = scmp.eq.s32.totalorder %s274, 0
      %s277 = sadd.s32 %s276, 1
      %s278 = scalar_select %p275, %s276, %s277
      %p281 = pneg %p275
      %p282 = scmp.eq.s32.totalorder %s31, 1
      %p283 = por %p281, %p282
      %p284 = scmp.ne.s32.totalorder %s276, %s279
      %p285 = scmp.eq.s32.totalorder %s31, 0
      %p286 = por %p284, %p285
      %p287 = scmp.ne.s32.totalorder %s276, %s279
      %p288 = scmp.eq.s32.totalorder %s36, 1
      %p289 = por %p287, %p288
      %p290 = scmp.ne.s32.totalorder %s279, %s280
      %p291 = scmp.eq.s32.totalorder %s36, 0
      %p292 = por %p290, %p291
      %p293 = scmp.ne.s32.totalorder %s279, %s280
      %p294 = scmp.eq.s32.totalorder %s37, 1
      %p295 = por %p293, %p294
      %p297 = scmp.ne.s32.totalorder %s280, %s296
      %p298 = scmp.eq.s32.totalorder %s37, 0
      %p299 = por %p297, %p298
      %s300 = ssub.s32 %s31, %s38
      %p301 = scmp.eq.s32.totalorder %s300, 0
      %s303 = sadd.s32 %s302, 1
      %s304 = scalar_select %p301, %s302, %s303
      %p307 = pneg %p301
      %p308 = scmp.eq.s32.totalorder %s31, 1
      %p309 = por %p307, %p308
      %p310 = scmp.ne.s32.totalorder %s302, %s305
      %p311 = scmp.eq.s32.totalorder %s31, 0
      %p312 = por %p310, %p311
      %p313 = scmp.ne.s32.totalorder %s302, %s305
      %p314 = scmp.eq.s32.totalorder %s36, 1
      %p315 = por %p313, %p314
      %p316 = scmp.ne.s32.totalorder %s305, %s306
      %p317 = scmp.eq.s32.totalorder %s36, 0
      %p318 = por %p316, %p317
      %p319 = scmp.ne.s32.totalorder %s305, %s306
      %p320 = scmp.eq.s32.totalorder %s37, 1
      %p321 = por %p319, %p320
      %p323 = scmp.ne.s32.totalorder %s306, %s322
      %p324 = scmp.eq.s32.totalorder %s37, 0
      %p325 = por %p323, %p324
      %s327 = sadd.s32 %s326, 1
      %p330 = scmp.eq.s32.totalorder %s31, 1
      %p331 = scmp.ne.s32.totalorder %s326, %s328
      %p332 = scmp.eq.s32.totalorder %s31, 0
      %p333 = por %p331, %p332
      %p334 = scmp.ne.s32.totalorder %s326, %s328
      %p335 = scmp.eq.s32.totalorder %s36, 1
      %p336 = por %p334, %p335
      %p337 = scmp.ne.s32.totalorder %s328, %s329
      %p338 = scmp.eq.s32.totalorder %s36, 0
      %p339 = por %p337, %p338
      %p340 = scmp.ne.s32.totalorder %s328, %s329
      %p341 = scmp.eq.s32.totalorder %s37, 1
      %p342 = por %p340, %p341
      %p344 = scmp.ne.s32.totalorder %s329, %s343
      %p345 = scmp.eq.s32.totalorder %s37, 0
      %p346 = por %p344, %p345
      %p347 = scmp.le.s32.totalorder 1, %s31
      %p348 = scmp.lt.s32.totalorder %s31, 3
      %p349 = pnand %p347, %p348
      %p350 = pneg %p349
      // Predicated region
      $region9: #{tpu_custom_call.1} parent=5 // pred_check
        _
      $region10: #{tpu_custom_call.1} parent=5 // pred_check_branch
        %352 = sbr.rel (%p349) target = $region12
      $region11: #{tpu_custom_call.1} parent=5 // pred_region
        %s353 = ssub.s32 %s31, 1
        // Predicated region
        $region13: #{tpu_custom_call.1} parent=11 // pred_check
          %p354 = pneg %p52
        $region14: #{tpu_custom_call.1} parent=11 // pred_check_branch
          %356 = sbr.rel (%p354) target = $region16
        $region15: #{tpu_custom_call.1} parent=11 // pred_region
          _
        $region16: #{tpu_custom_call.1} parent=11 // pred_fallthru
          _
        // Predicated region
        $region17: #{tpu_custom_call.1} parent=11 // pred_check
          %p357 = pneg %p73
        $region18: #{tpu_custom_call.1} parent=11 // pred_check_branch
          %359 = sbr.rel (%p357) target = $region20
        $region19: #{tpu_custom_call.1} parent=11 // pred_region
          _
        $region20: #{tpu_custom_call.1} parent=11 // pred_fallthru
          _
        // Predicated region
        $region21: #{tpu_custom_call.1} parent=11 // pred_check
          %p360 = pneg %p94
        $region22: #{tpu_custom_call.1} parent=11 // pred_check_branch
          %362 = sbr.rel (%p360) target = $region24
        $region23: #{tpu_custom_call.1} parent=11 // pred_region
          _
        $region24: #{tpu_custom_call.1} parent=11 // pred_fallthru
          _
        // Predicated region
        $region25: #{tpu_custom_call.1} parent=11 // pred_check
          %p363 = pneg %p115
        $region26: #{tpu_custom_call.1} parent=11 // pred_check_branch
          %365 = sbr.rel (%p363) target = $region28
        $region27: #{tpu_custom_call.1} parent=11 // pred_region
          _
        $region28: #{tpu_custom_call.1} parent=11 // pred_fallthru
          _
        // Predicated region
        $region29: #{tpu_custom_call.1} parent=11 // pred_check
          %p366 = pneg %p136
        $region30: #{tpu_custom_call.1} parent=11 // pred_check_branch
          %368 = sbr.rel (%p366) target = $region32
        $region31: #{tpu_custom_call.1} parent=11 // pred_region
          _
        $region32: #{tpu_custom_call.1} parent=11 // pred_fallthru
          _
      $region12: #{tpu_custom_call.1} parent=5 // pred_fallthru
        _
      %p369 = scmp.lt.s32.totalorder %s31, 2
      // Predicated region
      $region33: #{tpu_custom_call.1} parent=5 // pred_check
        %p370 = pneg %p369
      $region34: #{tpu_custom_call.1} parent=5 // pred_check_branch
        %372 = sbr.rel (%p370) target = $region36
      $region35: #{tpu_custom_call.1} parent=5 // pred_region
        // Predicated region
        $region37: #{tpu_custom_call.1} parent=35 // pred_check
          %p373 = pneg %p156
        $region38: #{tpu_custom_call.1} parent=35 // pred_check_branch
          %375 = sbr.rel (%p373) target = $region40
        $region39: #{tpu_custom_call.1} parent=35 // pred_region
          %p376 = scmp.lt.s32.totalorder %s31, 1
          %s377 = scalar_select %p376, %s31, 1
          %s378 = smul.addr %s377, 4
          %s379 = smul.addr %s378, 4
          %s380 = scalar_lea.vmem %s5, %s379
        $region40: #{tpu_custom_call.1} parent=35 // pred_fallthru
          _
        // Predicated region
        $region41: #{tpu_custom_call.1} parent=35 // pred_check
          %p381 = pneg %p182
        $region42: #{tpu_custom_call.1} parent=35 // pred_check_branch
          %383 = sbr.rel (%p381) target = $region44
        $region43: #{tpu_custom_call.1} parent=35 // pred_region
          %s384 = sand.u32 %s172, 1
          %s385 = scalar_lea.sflag [#allocation4], %s384
          %s386 = sand.u32 %s172, 1
          %s387 = smul.addr %s386, 16
          %s388 = scalar_lea.vmem [#allocation3], %s387
          %390 = vsyncadd %s385, 0
          %s391 = smul.addr %s31, 4
          %s392 = smul.addr %s391, 4
          %s393 = scalar_lea.hbm %s6, %s392
          %s394 = sshll.u32 %s393, 4
          %s395 = int_to_ptr.hbm [resolvable:$true] %s394
          %s396 = sshll.u32 %s388, 4
          %s397 = int_to_ptr.vmem [resolvable:$true] %s396
          %402 = dma.hbm_to_vmem [thread:$0]  %s395, 256, %s397, %s385, 64, 64, 4
        $region44: #{tpu_custom_call.1} parent=35 // pred_fallthru
          _
        // Predicated region
        $region45: #{tpu_custom_call.1} parent=35 // pred_check
          %p403 = pneg %p208
        $region46: #{tpu_custom_call.1} parent=35 // pred_check_branch
          %405 = sbr.rel (%p403) target = $region48
        $region47: #{tpu_custom_call.1} parent=35 // pred_region
          %s406 = sand.u32 %s31, 1
          %s407 = scalar_lea.sflag [#allocation7], %s406
          %s408 = sand.u32 %s198, 1
          %s409 = smul.addr %s408, 16
          %s410 = scalar_lea.vmem [#allocation6], %s409
          %412 = vsyncadd %s407, 0
          %s413 = smul.addr %s31, 4
          %s414 = smul.addr %s413, 4
          %s415 = scalar_lea.hbm %s7, %s414
          %s416 = sshll.u32 %s415, 4
          %s417 = int_to_ptr.hbm [resolvable:$true] %s416
          %s418 = sshll.u32 %s410, 4
          %s419 = int_to_ptr.vmem [resolvable:$true] %s418
          %424 = dma.hbm_to_vmem [thread:$0]  %s417, 256, %s419, %s407, 64, 64, 4
        $region48: #{tpu_custom_call.1} parent=35 // pred_fallthru
          _
        // Predicated region
        $region49: #{tpu_custom_call.1} parent=35 // pred_check
          %p425 = pneg %p234
        $region50: #{tpu_custom_call.1} parent=35 // pred_check_branch
          %427 = sbr.rel (%p425) target = $region52
        $region51: #{tpu_custom_call.1} parent=35 // pred_region
          %s428 = sand.u32 %s31, 1
          %s429 = scalar_lea.sflag [#allocation7], %s428
          %s430 = sand.u32 %s224, 1
          %s431 = smul.addr %s430, 16
          %s432 = scalar_lea.vmem [#allocation8], %s431
          %434 = vsyncadd %s429, 0
          %s435 = smul.addr %s31, 4
          %s436 = smul.addr %s435, 4
          %s437 = scalar_lea.hbm %s8, %s436
          %s438 = sshll.u32 %s437, 4
          %s439 = int_to_ptr.hbm [resolvable:$true] %s438
          %s440 = sshll.u32 %s432, 4
          %s441 = int_to_ptr.vmem [resolvable:$true] %s440
          %446 = dma.hbm_to_vmem [thread:$0]  %s439, 256, %s441, %s429, 64, 64, 4
        $region52: #{tpu_custom_call.1} parent=35 // pred_fallthru
          _
        // Predicated region
        $region53: #{tpu_custom_call.1} parent=35 // pred_check
          %p447 = pneg %p260
        $region54: #{tpu_custom_call.1} parent=35 // pred_check_branch
          %449 = sbr.rel (%p447) target = $region56
        $region55: #{tpu_custom_call.1} parent=35 // pred_region
          %s450 = sand.u32 %s31, 1
          %s451 = scalar_lea.sflag [#allocation10], %s450
          %s452 = sand.u32 %s250, 1
          %s453 = smul.addr %s452, 256
          %s454 = scalar_lea.vmem [#allocation9], %s453
          %456 = vsyncadd %s451, 0
          %s457 = smul.addr %s31, 64
          %s458 = smul.addr %s457, 4
          %s459 = scalar_lea.hbm %s9, %s458
          %s460 = sshll.u32 %s459, 4
          %s461 = int_to_ptr.hbm [resolvable:$true] %s460
          %s462 = sshll.u32 %s454, 4
          %s463 = int_to_ptr.vmem [resolvable:$true] %s462
          %468 = dma.hbm_to_vmem [thread:$0]  %s461, 4096, %s463, %s451, 1024, 1024, 64
        $region56: #{tpu_custom_call.1} parent=35 // pred_fallthru
          _
        // Predicated region
        $region57: #{tpu_custom_call.1} parent=35 // pred_check
          %p469 = pneg %p286
        $region58: #{tpu_custom_call.1} parent=35 // pred_check_branch
          %471 = sbr.rel (%p469) target = $region60
        $region59: #{tpu_custom_call.1} parent=35 // pred_region
          %s472 = sand.u32 %s31, 1
          %s473 = scalar_lea.sflag [#allocation10], %s472
          %s474 = sand.u32 %s276, 1
          %s475 = smul.addr %s474, 256
          %s476 = scalar_lea.vmem [#allocation11], %s475
          %478 = vsyncadd %s473, 0
          %s479 = smul.addr %s31, 64
          %s480 = smul.addr %s479, 4
          %s481 = scalar_lea.hbm %s10, %s480
          %s482 = sshll.u32 %s481, 4
          %s483 = int_to_ptr.hbm [resolvable:$true] %s482
          %s484 = sshll.u32 %s476, 4
          %s485 = int_to_ptr.vmem [resolvable:$true] %s484
          %490 = dma.hbm_to_vmem [thread:$0]  %s483, 4096, %s485, %s473, 1024, 1024, 64
        $region60: #{tpu_custom_call.1} parent=35 // pred_fallthru
          _
        // Predicated region
        $region61: #{tpu_custom_call.1} parent=35 // pred_check
          %p491 = pneg %p312
        $region62: #{tpu_custom_call.1} parent=35 // pred_check_branch
          %493 = sbr.rel (%p491) target = $region64
        $region63: #{tpu_custom_call.1} parent=35 // pred_region
          %s494 = sand.u32 %s302, 1
          %s495 = scalar_lea.sflag [#allocation13], %s494
          %s496 = sand.u32 %s302, 1
          %s497 = smul.addr %s496, 128
          %s498 = scalar_lea.vmem [#allocation12], %s497
          %500 = vsyncadd %s495, 0
          %s501 = smul.addr %s31, 16
          %s502 = smul.addr %s501, 8
          %s503 = scalar_lea.hbm %s11, %s502
          %s505 = sshll.u32 %s503, 4
          %s506 = int_to_ptr.hbm [resolvable:$true] %s505
          %s507 = sshll.u32 %s498, 4
          %s508 = int_to_ptr.vmem [resolvable:$true] %s507
          %510 = dma.hbm_to_vmem [thread:$0]  %s506, 2048, %s508, %s495
        $region64: #{tpu_custom_call.1} parent=35 // pred_fallthru
          _
      $region36: #{tpu_custom_call.1} parent=5 // pred_fallthru
        _
      %p511 = scmp.le.s32.totalorder 1, %s31
      %p512 = scmp.lt.s32.totalorder %s31, 3
      %p513 = pnand %p511, %p512
      %p514 = pneg %p513
      // Predicated region
      $region65: #{tpu_custom_call.1} parent=5 // pred_check
        _
      $region66: #{tpu_custom_call.1} parent=5 // pred_check_branch
        %516 = sbr.rel (%p513) target = $region68
      $region67: #{tpu_custom_call.1} parent=5 // pred_region
        %s517 = ssub.s32 %s31, 1
        %s518 = sand.u32 %s175, 1
        %s519 = scalar_lea.sflag [#allocation4], %s518
        %s520 = sand.u32 %s175, 1
        %s521 = smul.addr %s520, 16
        %s522 = scalar_lea.vmem [#allocation3], %s521
        // Predicated region
        $region69: #{tpu_custom_call.1} parent=67 // pred_check
          %p523 = pneg %p188
        $region70: #{tpu_custom_call.1} parent=67 // pred_check_branch
          %525 = sbr.rel (%p523) target = $region72
        $region71: #{tpu_custom_call.1} parent=67 // pred_region
          %527 = dma.done %s519, 256
        $region72: #{tpu_custom_call.1} parent=67 // pred_fallthru
          _
        %s528 = sand.u32 %s36, 1
        %s529 = scalar_lea.sflag [#allocation7], %s528
        %s530 = sand.u32 %s201, 1
        %s531 = smul.addr %s530, 16
        %s532 = scalar_lea.vmem [#allocation6], %s531
        // Predicated region
        $region73: #{tpu_custom_call.1} parent=67 // pred_check
          %p533 = pneg %p214
        $region74: #{tpu_custom_call.1} parent=67 // pred_check_branch
          %535 = sbr.rel (%p533) target = $region76
        $region75: #{tpu_custom_call.1} parent=67 // pred_region
          %537 = dma.done %s529, 256
        $region76: #{tpu_custom_call.1} parent=67 // pred_fallthru
          _
        %s538 = sand.u32 %s36, 1
        %s539 = scalar_lea.sflag [#allocation7], %s538
        %s540 = sand.u32 %s227, 1
        %s541 = smul.addr %s540, 16
        %s542 = scalar_lea.vmem [#allocation8], %s541
        // Predicated region
        $region77: #{tpu_custom_call.1} parent=67 // pred_check
          %p543 = pneg %p240
        $region78: #{tpu_custom_call.1} parent=67 // pred_check_branch
          %545 = sbr.rel (%p543) target = $region80
        $region79: #{tpu_custom_call.1} parent=67 // pred_region
          %547 = dma.done %s539, 256
        $region80: #{tpu_custom_call.1} parent=67 // pred_fallthru
          _
        %s548 = sand.u32 %s36, 1
        %s549 = scalar_lea.sflag [#allocation10], %s548
        %s550 = sand.u32 %s253, 1
        %s551 = smul.addr %s550, 256
        %s552 = scalar_lea.vmem [#allocation9], %s551
        // Predicated region
        $region81: #{tpu_custom_call.1} parent=67 // pred_check
          %p553 = pneg %p266
        $region82: #{tpu_custom_call.1} parent=67 // pred_check_branch
          %555 = sbr.rel (%p553) target = $region84
        $region83: #{tpu_custom_call.1} parent=67 // pred_region
          %557 = dma.done %s549, 4096
        $region84: #{tpu_custom_call.1} parent=67 // pred_fallthru
          _
        %s558 = sand.u32 %s36, 1
        %s559 = scalar_lea.sflag [#allocation10], %s558
        %s560 = sand.u32 %s279, 1
        %s561 = smul.addr %s560, 256
        %s562 = scalar_lea.vmem [#allocation11], %s561
        // Predicated region
        $region85: #{tpu_custom_call.1} parent=67 // pred_check
          %p563 = pneg %p292
        $region86: #{tpu_custom_call.1} parent=67 // pred_check_branch
          %565 = sbr.rel (%p563) target = $region88
        $region87: #{tpu_custom_call.1} parent=67 // pred_region
          %567 = dma.done %s559, 4096
        $region88: #{tpu_custom_call.1} parent=67 // pred_fallthru
          _
        %s568 = sand.u32 %s305, 1
        %s569 = scalar_lea.sflag [#allocation13], %s568
        %s570 = sand.u32 %s305, 1
        %s571 = smul.addr %s570, 128
        %s572 = scalar_lea.vmem [#allocation12], %s571
        // Predicated region
        $region89: #{tpu_custom_call.1} parent=67 // pred_check
          %p573 = pneg %p318
        $region90: #{tpu_custom_call.1} parent=67 // pred_check_branch
          %575 = sbr.rel (%p573) target = $region92
        $region91: #{tpu_custom_call.1} parent=67 // pred_region
          %577 = dma.done %s569, 2048
        $region92: #{tpu_custom_call.1} parent=67 // pred_fallthru
          _
        %p578 = pneg %p52
        %p579 = pneg %p49
        %p580 = pneg %p73
        %p581 = pneg %p70
        %p582 = pneg %p94
        %p583 = pneg %p91
        %p584 = pneg %p115
        %p585 = pneg %p112
        %p586 = pneg %p136
        %p587 = pneg %p133
        %p588 = scmp.lt.s32.totalorder %s36, 1
        %s589 = scalar_select %p588, %s36, 1
        %s590 = smul.addr %s589, 4
        %s591 = smul.addr %s590, 4
        %s592 = scalar_lea.vmem %s5, %s591
        %p593 = pneg %p162
        %p594 = pneg %p159
        %s595 = sand.u32 %s175, 1
        %s596 = scalar_lea.sflag [#allocation4], %s595
        %s597 = sand.u32 %s175, 1
        %s598 = smul.addr %s597, 16
        %s599 = scalar_lea.vmem [#allocation3], %s598
        %p600 = pneg %p188
        %p601 = pneg %p185
        %s602 = sand.u32 %s36, 1
        %s603 = scalar_lea.sflag [#allocation7], %s602
        %s604 = sand.u32 %s201, 1
        %s605 = smul.addr %s604, 16
        %s606 = scalar_lea.vmem [#allocation6], %s605
        %p607 = pneg %p214
        %p608 = pneg %p211
        %s609 = sand.u32 %s36, 1
        %s610 = scalar_lea.sflag [#allocation7], %s609
        %s611 = sand.u32 %s227, 1
        %s612 = smul.addr %s611, 16
        %s613 = scalar_lea.vmem [#allocation8], %s612
        %p614 = pneg %p240
        %p615 = pneg %p237
        %s616 = sand.u32 %s36, 1
        %s617 = scalar_lea.sflag [#allocation10], %s616
        %s618 = sand.u32 %s253, 1
        %s619 = smul.addr %s618, 256
        %s620 = scalar_lea.vmem [#allocation9], %s619
        %p621 = pneg %p266
        %p622 = pneg %p263
        %s623 = sand.u32 %s36, 1
        %s624 = scalar_lea.sflag [#allocation10], %s623
        %s625 = sand.u32 %s279, 1
        %s626 = smul.addr %s625, 256
        %s627 = scalar_lea.vmem [#allocation11], %s626
        %p628 = pneg %p292
        %p629 = pneg %p289
        %s630 = sand.u32 %s305, 1
        %s631 = scalar_lea.sflag [#allocation13], %s630
        %s632 = sand.u32 %s305, 1
        %s633 = smul.addr %s632, 128
        %s634 = scalar_lea.vmem [#allocation12], %s633
        %p635 = pneg %p318
        %p636 = pneg %p315
        %p637 = pneg %p339
        %p638 = pneg %p336
        %p639 = scmp.lt.s32.totalorder %s36, 1
        %s640 = scalar_select %p639, %s36, 1
        %s641 = smul.addr %s640, 4
        %s642 = smul.addr %s641, 4
        %s643 = scalar_lea.vmem %s5, %s642
        %p644 = scmp.eq.s32.totalorder %s36, 0
        // Predicated region
        $region93: #{tpu_custom_call.1} parent=67 // pred_check
          %p645 = pneg %p644
        $region94: #{tpu_custom_call.1} parent=67 // pred_check_branch
          %647 = sbr.rel (%p645) target = $region96
        $region95: #{tpu_custom_call.1} parent=67 // pred_region
          %v648 = vld [vmem:[%s0] sm:$0xff]
          %v649 = vld [vmem:[%s0 + $0x8] sm:$0xff]
          %v650 = vld [vmem:[%s1] sm:$0xf]
          %v651 = vunpack.c.l.bf16 %v650
          %v652 = vld [vmem:[%s2] sm:$0x1]
          %v654 = vperm.slane %v652, 0
          %vm656 = vcmask 64512
          %v658 = vsel %vm656, %v648, 0
          %v661 = vsel %vm656, %v649, 0
          %663 = vmatpush.msra.mxu0 0.0
          %664 = vmatpush.msra.mxu0 0.0
          %665 = vmatpush.msra.mxu0 0.0
          %666 = vmatpush.msra.mxu0 0.0
          %667 = vmatpush.msra.mxu0 0.0
          %668 = vmatpush.msra.mxu0 0.0
          %669 = vmatpush.msra.mxu0 0.0
          %670 = vmatpush.msra.mxu0 0.0
          %671 = vmatpush.msra.mxu0 0.0
          %672 = vmatpush.msra.mxu0 0.0
          %673 = vmatpush.msra.mxu0 0.0
          %674 = vmatpush.msra.mxu0 0.0
          %675 = vmatpush.msra.mxu0 0.0
          %676 = vmatpush.msra.mxu0 0.0
          %677 = vmatpush.msra.mxu0 0.0
          %678 = vmatpush.msra.mxu0 %v651
          %679 = vmatmul.f32.gmra.mxu0 %v658
          %v680 = vpop.f32.mrf.mxu0
          %v681 = vadd.f32 %v654, %v680
          %682 = vmatmul.f32.gmra.mxu0 %v661
          %v683 = vpop.f32.mrf.mxu0
          %v684 = vadd.f32 %v654, %v683
          %685 = vdwg.mxu0
          %vm686 = vcmask 261120
          %687 = vst.msk [vmem:[#allocation2] sm:$0xff] %vm686, %v681
          %688 = vst.msk [vmem:[#allocation2 + $0x8] sm:$0xff] %vm686, %v684
        $region96: #{tpu_custom_call.1} parent=67 // pred_fallthru
          _
        %v689 = vld [vmem:[#allocation2] sm:$0xff]
        %v690 = vld [vmem:[#allocation2 + $0x8] sm:$0xff]
        %v691 = vld [vmem:[%s643] sm:$0xf]
        %v692 = vld [vmem:[%s643 + $0x4] sm:$0xf]
        %v693 = vld [vmem:[%s643 + $0x8] sm:$0xf]
        %v694 = vld [vmem:[%s643 + $0xc] sm:$0xf]
        %v695 = vunpack.c.l.bf16 %v691
        %v696 = vunpack.c.l.bf16 %v692
        %v697 = vunpack.c.l.bf16 %v693
        %v698 = vunpack.c.l.bf16 %v694
        %v699 = vld [vmem:[%s522] sm:$0xf]
        %v700 = vld [vmem:[%s522 + $0x4] sm:$0xf]
        %v701 = vld [vmem:[%s522 + $0x8] sm:$0xf]
        %v702 = vld [vmem:[%s522 + $0xc] sm:$0xf]
        %v703 = vunpack.c.l.bf16 %v699
        %v704 = vunpack.c.l.bf16 %v700
        %v705 = vunpack.c.l.bf16 %v701
        %v706 = vunpack.c.l.bf16 %v702
        %v707 = vld [vmem:[%s532] sm:$0xf]
        %v708 = vld [vmem:[%s532 + $0x4] sm:$0xf]
        %v709 = vld [vmem:[%s532 + $0x8] sm:$0xf]
        %v710 = vld [vmem:[%s532 + $0xc] sm:$0xf]
        %v711 = vunpack.c.l.bf16 %v707
        %v712 = vunpack.c.l.bf16 %v708
        %v713 = vunpack.c.l.bf16 %v709
        %v714 = vunpack.c.l.bf16 %v710
        %v715 = vld [vmem:[%s542] sm:$0xf]
        %v716 = vld [vmem:[%s542 + $0x4] sm:$0xf]
        %v717 = vld [vmem:[%s542 + $0x8] sm:$0xf]
        %v718 = vld [vmem:[%s542 + $0xc] sm:$0xf]
        %v719 = vunpack.c.l.bf16 %v715
        %v720 = vunpack.c.l.bf16 %v716
        %v721 = vunpack.c.l.bf16 %v717
        %v722 = vunpack.c.l.bf16 %v718
        %v723 = vld [vmem:[%s552] sm:$0xff]
        %v724 = vld [vmem:[%s552 + $0x8] sm:$0xff]
        %v725 = vld [vmem:[%s552 + $0x10] sm:$0xff]
        %v726 = vld [vmem:[%s552 + $0x18] sm:$0xff]
        %v727 = vld [vmem:[%s552 + $0x20] sm:$0xff]
        %v728 = vld [vmem:[%s552 + $0x28] sm:$0xff]
        %v729 = vld [vmem:[%s552 + $0x30] sm:$0xff]
        %v730 = vld [vmem:[%s552 + $0x38] sm:$0xff]
        %v731 = vld [vmem:[%s552 + $0x40] sm:$0xff]
        %v732 = vld [vmem:[%s552 + $0x48] sm:$0xff]
        %v733 = vld [vmem:[%s552 + $0x50] sm:$0xff]
        %v734 = vld [vmem:[%s552 + $0x58] sm:$0xff]
        %v735 = vld [vmem:[%s552 + $0x60] sm:$0xff]
        %v736 = vld [vmem:[%s552 + $0x68] sm:$0xff]
        %v737 = vld [vmem:[%s552 + $0x70] sm:$0xff]
        %v738 = vld [vmem:[%s552 + $0x78] sm:$0xff]
        %v739 = vld [vmem:[%s552 + $0x80] sm:$0xff]
        %v740 = vld [vmem:[%s552 + $0x88] sm:$0xff]
        %v741 = vld [vmem:[%s552 + $0x90] sm:$0xff]
        %v742 = vld [vmem:[%s552 + $0x98] sm:$0xff]
        %v743 = vld [vmem:[%s552 + $0xa0] sm:$0xff]
        %v744 = vld [vmem:[%s552 + $0xa8] sm:$0xff]
        %v745 = vld [vmem:[%s552 + $0xb0] sm:$0xff]
        %v746 = vld [vmem:[%s552 + $0xb8] sm:$0xff]
        %v747 = vld [vmem:[%s552 + $0xc0] sm:$0xff]
        %v748 = vld [vmem:[%s552 + $0xc8] sm:$0xff]
        %v749 = vld [vmem:[%s552 + $0xd0] sm:$0xff]
        %v750 = vld [vmem:[%s552 + $0xd8] sm:$0xff]
        %v751 = vld [vmem:[%s552 + $0xe0] sm:$0xff]
        %v752 = vld [vmem:[%s552 + $0xe8] sm:$0xff]
        %v753 = vld [vmem:[%s552 + $0xf0] sm:$0xff]
        %v754 = vld [vmem:[%s552 + $0xf8] sm:$0xff]
        %v755 = vunpack.c.l.bf16 %v723
        %v756 = vunpack.c.h.bf16 %v723
        %v757 = vunpack.c.l.bf16 %v724
        %v758 = vunpack.c.h.bf16 %v724
        %v759 = vunpack.c.l.bf16 %v725
        %v760 = vunpack.c.h.bf16 %v725
        %v761 = vunpack.c.l.bf16 %v726
        %v762 = vunpack.c.h.bf16 %v726
        %v763 = vunpack.c.l.bf16 %v727
        %v764 = vunpack.c.h.bf16 %v727
        %v765 = vunpack.c.l.bf16 %v728
        %v766 = vunpack.c.h.bf16 %v728
        %v767 = vunpack.c.l.bf16 %v729
        %v768 = vunpack.c.h.bf16 %v729
        %v769 = vunpack.c.l.bf16 %v730
        %v770 = vunpack.c.h.bf16 %v730
        %v771 = vunpack.c.l.bf16 %v731
        %v772 = vunpack.c.h.bf16 %v731
        %v773 = vunpack.c.l.bf16 %v732
        %v774 = vunpack.c.h.bf16 %v732
        %v775 = vunpack.c.l.bf16 %v733
        %v776 = vunpack.c.h.bf16 %v733
        %v777 = vunpack.c.l.bf16 %v734
        %v778 = vunpack.c.h.bf16 %v734
        %v779 = vunpack.c.l.bf16 %v735
        %v780 = vunpack.c.h.bf16 %v735
        %v781 = vunpack.c.l.bf16 %v736
        %v782 = vunpack.c.h.bf16 %v736
        %v783 = vunpack.c.l.bf16 %v737
        %v784 = vunpack.c.h.bf16 %v737
        %v785 = vunpack.c.l.bf16 %v738
        %v786 = vunpack.c.h.bf16 %v738
        %v787 = vunpack.c.l.bf16 %v739
        %v788 = vunpack.c.h.bf16 %v739
        %v789 = vunpack.c.l.bf16 %v740
        %v790 = vunpack.c.h.bf16 %v740
        %v791 = vunpack.c.l.bf16 %v741
        %v792 = vunpack.c.h.bf16 %v741
        %v793 = vunpack.c.l.bf16 %v742
        %v794 = vunpack.c.h.bf16 %v742
        %v795 = vunpack.c.l.bf16 %v743
        %v796 = vunpack.c.h.bf16 %v743
        %v797 = vunpack.c.l.bf16 %v744
        %v798 = vunpack.c.h.bf16 %v744
        %v799 = vunpack.c.l.bf16 %v745
        %v800 = vunpack.c.h.bf16 %v745
        %v801 = vunpack.c.l.bf16 %v746
        %v802 = vunpack.c.h.bf16 %v746
        %v803 = vunpack.c.l.bf16 %v747
        %v804 = vunpack.c.h.bf16 %v747
        %v805 = vunpack.c.l.bf16 %v748
        %v806 = vunpack.c.h.bf16 %v748
        %v807 = vunpack.c.l.bf16 %v749
        %v808 = vunpack.c.h.bf16 %v749
        %v809 = vunpack.c.l.bf16 %v750
        %v810 = vunpack.c.h.bf16 %v750
        %v811 = vunpack.c.l.bf16 %v751
        %v812 = vunpack.c.h.bf16 %v751
        %v813 = vunpack.c.l.bf16 %v752
        %v814 = vunpack.c.h.bf16 %v752
        %v815 = vunpack.c.l.bf16 %v753
        %v816 = vunpack.c.h.bf16 %v753
        %v817 = vunpack.c.l.bf16 %v754
        %v818 = vunpack.c.h.bf16 %v754
        %v819 = vld [vmem:[%s562] sm:$0xff]
        %v820 = vld [vmem:[%s562 + $0x8] sm:$0xff]
        %v821 = vld [vmem:[%s562 + $0x10] sm:$0xff]
        %v822 = vld [vmem:[%s562 + $0x18] sm:$0xff]
        %v823 = vld [vmem:[%s562 + $0x20] sm:$0xff]
        %v824 = vld [vmem:[%s562 + $0x28] sm:$0xff]
        %v825 = vld [vmem:[%s562 + $0x30] sm:$0xff]
        %v826 = vld [vmem:[%s562 + $0x38] sm:$0xff]
        %v827 = vld [vmem:[%s562 + $0x40] sm:$0xff]
        %v828 = vld [vmem:[%s562 + $0x48] sm:$0xff]
        %v829 = vld [vmem:[%s562 + $0x50] sm:$0xff]
        %v830 = vld [vmem:[%s562 + $0x58] sm:$0xff]
        %v831 = vld [vmem:[%s562 + $0x60] sm:$0xff]
        %v832 = vld [vmem:[%s562 + $0x68] sm:$0xff]
        %v833 = vld [vmem:[%s562 + $0x70] sm:$0xff]
        %v834 = vld [vmem:[%s562 + $0x78] sm:$0xff]
        %v835 = vld [vmem:[%s562 + $0x80] sm:$0xff]
        %v836 = vld [vmem:[%s562 + $0x88] sm:$0xff]
        %v837 = vld [vmem:[%s562 + $0x90] sm:$0xff]
        %v838 = vld [vmem:[%s562 + $0x98] sm:$0xff]
        %v839 = vld [vmem:[%s562 + $0xa0] sm:$0xff]
        %v840 = vld [vmem:[%s562 + $0xa8] sm:$0xff]
        %v841 = vld [vmem:[%s562 + $0xb0] sm:$0xff]
        %v842 = vld [vmem:[%s562 + $0xb8] sm:$0xff]
        %v843 = vld [vmem:[%s562 + $0xc0] sm:$0xff]
        %v844 = vld [vmem:[%s562 + $0xc8] sm:$0xff]
        %v845 = vld [vmem:[%s562 + $0xd0] sm:$0xff]
        %v846 = vld [vmem:[%s562 + $0xd8] sm:$0xff]
        %v847 = vld [vmem:[%s562 + $0xe0] sm:$0xff]
        %v848 = vld [vmem:[%s562 + $0xe8] sm:$0xff]
        %v849 = vld [vmem:[%s562 + $0xf0] sm:$0xff]
        %v850 = vld [vmem:[%s562 + $0xf8] sm:$0xff]
        %v851 = vunpack.c.l.bf16 %v819
        %v852 = vunpack.c.h.bf16 %v819
        %v853 = vunpack.c.l.bf16 %v820
        %v854 = vunpack.c.h.bf16 %v820
        %v855 = vunpack.c.l.bf16 %v821
        %v856 = vunpack.c.h.bf16 %v821
        %v857 = vunpack.c.l.bf16 %v822
        %v858 = vunpack.c.h.bf16 %v822
        %v859 = vunpack.c.l.bf16 %v823
        %v860 = vunpack.c.h.bf16 %v823
        %v861 = vunpack.c.l.bf16 %v824
        %v862 = vunpack.c.h.bf16 %v824
        %v863 = vunpack.c.l.bf16 %v825
        %v864 = vunpack.c.h.bf16 %v825
        %v865 = vunpack.c.l.bf16 %v826
        %v866 = vunpack.c.h.bf16 %v826
        %v867 = vunpack.c.l.bf16 %v827
        %v868 = vunpack.c.h.bf16 %v827
        %v869 = vunpack.c.l.bf16 %v828
        %v870 = vunpack.c.h.bf16 %v828
        %v871 = vunpack.c.l.bf16 %v829
        %v872 = vunpack.c.h.bf16 %v829
        %v873 = vunpack.c.l.bf16 %v830
        %v874 = vunpack.c.h.bf16 %v830
        %v875 = vunpack.c.l.bf16 %v831
        %v876 = vunpack.c.h.bf16 %v831
        %v877 = vunpack.c.l.bf16 %v832
        %v878 = vunpack.c.h.bf16 %v832
        %v879 = vunpack.c.l.bf16 %v833
        %v880 = vunpack.c.h.bf16 %v833
        %v881 = vunpack.c.l.bf16 %v834
        %v882 = vunpack.c.h.bf16 %v834
        %v883 = vunpack.c.l.bf16 %v835
        %v884 = vunpack.c.h.bf16 %v835
        %v885 = vunpack.c.l.bf16 %v836
        %v886 = vunpack.c.h.bf16 %v836
        %v887 = vunpack.c.l.bf16 %v837
        %v888 = vunpack.c.h.bf16 %v837
        %v889 = vunpack.c.l.bf16 %v838
        %v890 = vunpack.c.h.bf16 %v838
        %v891 = vunpack.c.l.bf16 %v839
        %v892 = vunpack.c.h.bf16 %v839
        %v893 = vunpack.c.l.bf16 %v840
        %v894 = vunpack.c.h.bf16 %v840
        %v895 = vunpack.c.l.bf16 %v841
        %v896 = vunpack.c.h.bf16 %v841
        %v897 = vunpack.c.l.bf16 %v842
        %v898 = vunpack.c.h.bf16 %v842
        %v899 = vunpack.c.l.bf16 %v843
        %v900 = vunpack.c.h.bf16 %v843
        %v901 = vunpack.c.l.bf16 %v844
        %v902 = vunpack.c.h.bf16 %v844
        %v903 = vunpack.c.l.bf16 %v845
        %v904 = vunpack.c.h.bf16 %v845
        %v905 = vunpack.c.l.bf16 %v846
        %v906 = vunpack.c.h.bf16 %v846
        %v907 = vunpack.c.l.bf16 %v847
        %v908 = vunpack.c.h.bf16 %v847
        %v909 = vunpack.c.l.bf16 %v848
        %v910 = vunpack.c.h.bf16 %v848
        %v911 = vunpack.c.l.bf16 %v849
        %v912 = vunpack.c.h.bf16 %v849
        %v913 = vunpack.c.l.bf16 %v850
        %v914 = vunpack.c.h.bf16 %v850
        %v915 = vld [vmem:[%s572] sm:$0xff]
        %v916 = vld [vmem:[%s572 + $0x8] sm:$0xff]
        %v917 = vld [vmem:[%s572 + $0x10] sm:$0xff]
        %v918 = vld [vmem:[%s572 + $0x18] sm:$0xff]
        %v919 = vld [vmem:[%s572 + $0x20] sm:$0xff]
        %v920 = vld [vmem:[%s572 + $0x28] sm:$0xff]
        %v921 = vld [vmem:[%s572 + $0x30] sm:$0xff]
        %v922 = vld [vmem:[%s572 + $0x38] sm:$0xff]
        %v923 = vld [vmem:[%s572 + $0x40] sm:$0xff]
        %v924 = vld [vmem:[%s572 + $0x48] sm:$0xff]
        %v925 = vld [vmem:[%s572 + $0x50] sm:$0xff]
        %v926 = vld [vmem:[%s572 + $0x58] sm:$0xff]
        %v927 = vld [vmem:[%s572 + $0x60] sm:$0xff]
        %v928 = vld [vmem:[%s572 + $0x68] sm:$0xff]
        %v929 = vld [vmem:[%s572 + $0x70] sm:$0xff]
        %v930 = vld [vmem:[%s572 + $0x78] sm:$0xff]
        %v931 = vperm.slane %v915, 1
        %vm932 = vcmask 261120
        %v934 = vsel %vm932, %v689, 0
        %v937 = vsel %vm932, %v690, 0
        %939 = vmatpush.msra.mxu0 0.0
        %940 = vmatpush.msra.mxu0 0.0
        %941 = vmatpush.msra.mxu0 0.0
        %942 = vmatpush.msra.mxu0 0.0
        %943 = vmatpush.msra.mxu0 0.0
        %944 = vmatpush.msra.mxu0 0.0
        %945 = vmatpush.msra.mxu0 0.0
        %946 = vmatpush.msra.mxu0 0.0
        %947 = vmatpush.msra.mxu0 0.0
        %948 = vmatpush.msra.mxu0 0.0
        %949 = vmatpush.msra.mxu0 0.0
        %950 = vmatpush.msra.mxu0 0.0
        %951 = vmatpush.msra.mxu0 %v698
        %952 = vmatpush.msra.mxu0 %v697
        %953 = vmatpush.msra.mxu0 %v696
        %954 = vmatpush.msra.mxu0 %v695
        %955 = vmatmul.f32.gmra.mxu0 %v934
        %v956 = vpop.f32.mrf.mxu0
        %v957 = vadd.f32 %v931, %v956
        %958 = vmatmul.f32.gmra.mxu0 %v937
        %v959 = vpop.f32.mrf.mxu0
        %v960 = vadd.f32 %v931, %v959
        %961 = vdwg.mxu0
        %963 = vrot.lane.b32.xlu0 %v931, 96
        %v964 = vpop.permute.xlu0 %963
        %966 = vmatpush.msra.mxu0 0.0
        %967 = vmatpush.msra.mxu0 0.0
        %968 = vmatpush.msra.mxu0 0.0
        %969 = vmatpush.msra.mxu0 0.0
        %970 = vmatpush.msra.mxu0 0.0
        %971 = vmatpush.msra.mxu0 0.0
        %972 = vmatpush.msra.mxu0 0.0
        %973 = vmatpush.msra.mxu0 0.0
        %974 = vmatpush.msra.mxu0 0.0
        %975 = vmatpush.msra.mxu0 0.0
        %976 = vmatpush.msra.mxu0 0.0
        %977 = vmatpush.msra.mxu0 0.0
        %978 = vmatpush.msra.mxu0 %v706
        %979 = vmatpush.msra.mxu0 %v705
        %980 = vmatpush.msra.mxu0 %v704
        %981 = vmatpush.msra.mxu0 %v703
        %982 = vmatmul.f32.gmra.mxu0 %v934
        %v983 = vpop.f32.mrf.mxu0
        %v984 = vadd.f32 %v964, %v983
        %985 = vmatmul.f32.gmra.mxu0 %v937
        %v986 = vpop.f32.mrf.mxu0
        %v987 = vadd.f32 %v964, %v986
        %988 = vdwg.mxu0
        %989 = vrot.lane.b32.xlu0 %v931, 64
        %v990 = vpop.permute.xlu0 %989
        %992 = vmatpush.msra.mxu0 0.0
        %993 = vmatpush.msra.mxu0 0.0
        %994 = vmatpush.msra.mxu0 0.0
        %995 = vmatpush.msra.mxu0 0.0
        %996 = vmatpush.msra.mxu0 0.0
        %997 = vmatpush.msra.mxu0 0.0
        %998 = vmatpush.msra.mxu0 0.0
        %999 = vmatpush.msra.mxu0 0.0
        %1000 = vmatpush.msra.mxu0 0.0
        %1001 = vmatpush.msra.mxu0 0.0
        %1002 = vmatpush.msra.mxu0 0.0
        %1003 = vmatpush.msra.mxu0 0.0
        %1004 = vmatpush.msra.mxu0 %v714
        %1005 = vmatpush.msra.mxu0 %v713
        %1006 = vmatpush.msra.mxu0 %v712
        %1007 = vmatpush.msra.mxu0 %v711
        %1008 = vmatmul.f32.gmra.mxu0 %v934
        %v1009 = vpop.f32.mrf.mxu0
        %v1010 = vadd.f32 %v990, %v1009
        %1011 = vmatmul.f32.gmra.mxu0 %v937
        %v1012 = vpop.f32.mrf.mxu0
        %v1013 = vadd.f32 %v990, %v1012
        %1014 = vdwg.mxu0
        %vm1015 = vcmask 64512
        %v1017 = vsel %vm1015, %v957, 0
        %v1020 = vsel %vm1015, %v984, 0
        %1022 = vmatpush.xpose.msra.mxu0 0.0
        %1023 = vmatpush.xpose.msra.mxu0 0.0
        %1024 = vmatpush.xpose.msra.mxu0 0.0
        %1025 = vmatpush.xpose.msra.mxu0 0.0
        %1026 = vmatpush.xpose.msra.mxu0 0.0
        %1027 = vmatpush.xpose.msra.mxu0 0.0
        %1028 = vmatpush.xpose.msra.mxu0 0.0
        %1029 = vmatpush.xpose.msra.mxu0 0.0
        %1030 = vmatpush.xpose.msra.mxu0 0.0
        %1031 = vmatpush.xpose.msra.mxu0 0.0
        %1032 = vmatpush.xpose.msra.mxu0 0.0
        %1033 = vmatpush.xpose.msra.mxu0 0.0
        %1034 = vmatpush.xpose.msra.mxu0 0.0
        %1035 = vmatpush.xpose.msra.mxu0 0.0
        %1036 = vmatpush.xpose.msra.mxu0 0.0
        %1037 = vmatpush.xpose.msra.mxu0 %v1020
        %1038 = vmatmul.f32.gmra.mxu0 %v1017
        %v1039 = vpop.f32.mrf.mxu0
        %v1040 = vadd.f32 0.0, %v1039
        %1041 = vdwg.mxu0
        %v1043 = vsel %vm1015, %v960, 0
        %v1046 = vsel %vm1015, %v987, 0
        %1048 = vmatpush.xpose.msra.mxu0 0.0
        %1049 = vmatpush.xpose.msra.mxu0 0.0
        %1050 = vmatpush.xpose.msra.mxu0 0.0
        %1051 = vmatpush.xpose.msra.mxu0 0.0
        %1052 = vmatpush.xpose.msra.mxu0 0.0
        %1053 = vmatpush.xpose.msra.mxu0 0.0
        %1054 = vmatpush.xpose.msra.mxu0 0.0
        %1055 = vmatpush.xpose.msra.mxu0 0.0
        %1056 = vmatpush.xpose.msra.mxu0 0.0
        %1057 = vmatpush.xpose.msra.mxu0 0.0
        %1058 = vmatpush.xpose.msra.mxu0 0.0
        %1059 = vmatpush.xpose.msra.mxu0 0.0
        %1060 = vmatpush.xpose.msra.mxu0 0.0
        %1061 = vmatpush.xpose.msra.mxu0 0.0
        %1062 = vmatpush.xpose.msra.mxu0 0.0
        %1063 = vmatpush.xpose.msra.mxu0 %v1046
        %1064 = vmatmul.f32.gmra.mxu0 %v1043
        %v1065 = vpop.f32.mrf.mxu0
        %v1066 = vadd.f32 0.0, %v1065
        %1067 = vdwg.mxu0
        %v1068 = vsel %vm1015, %v1040, -inf
        %1069 = vmax.xlane.f32.xlu0 %v1068
        %v1070 = vpop.xlane.xlu0 %1069
        %v1071 = vsel %vm1015, %v1066, -inf
        %1072 = vmax.xlane.f32.xlu0 %v1071
        %v1073 = vpop.xlane.xlu0 %1072
        %v1074 = vsub.f32 %v1040, %v1070
        %v1075 = vsub.f32 %v1066, %v1073
        %v1076 = vmul.f32 %v1074, 1.442695
        %v1077 = vpow.pop %v1076
        %v1078 = vmul.f32 %v1075, 1.442695
        %v1079 = vpow.pop %v1078
        %v1080 = vsel %vm1015, %v1077, 0.0
        %1081 = vadd.xlane.f32.xlu0 %v1080
        %v1082 = vpop.xlane.xlu0 %1081
        %v1083 = vsel %vm1015, %v1079, 0.0
        %1084 = vadd.xlane.f32.xlu0 %v1083
        %v1085 = vpop.xlane.xlu0 %1084
        %v1086 = vrcp.pop %v1082
        %v1087 = vmul.f32 %v1082, %v1086
        %v1088 = vsub.f32 1.0, %v1087
        %v1089 = vmul.f32 %v1086, %v1088
        %v1090 = vadd.f32 %v1086, %v1089
        %vm1091 = vweird.f32 %v1082
        %vm1092 = vweird.f32 %v1086
        %vm1093 = vmor %vm1091, %vm1092
        %v1094 = vsel %vm1093, %v1086, %v1090
        %v1095 = vand.u32 2147483647, %v1082
        %vm1096 = vcmp.eq.f32.partialorder %v1095, 8.507059e+37
        %v1097 = vand.u32 %v1082, 2147483648
        %v1098 = vor.u32 1.1754944e-38, %v1097
        %v1099 = vsel %vm1096, %v1098, %v1094
        %v1100 = vrcp.pop %v1085
        %v1101 = vmul.f32 %v1085, %v1100
        %v1102 = vsub.f32 1.0, %v1101
        %v1103 = vmul.f32 %v1100, %v1102
        %v1104 = vadd.f32 %v1100, %v1103
        %vm1105 = vweird.f32 %v1085
        %vm1106 = vweird.f32 %v1100
        %vm1107 = vmor %vm1105, %vm1106
        %v1108 = vsel %vm1107, %v1100, %v1104
        %v1109 = vand.u32 2147483647, %v1085
        %vm1110 = vcmp.eq.f32.partialorder %v1109, 8.507059e+37
        %v1111 = vand.u32 %v1085, 2147483648
        %v1112 = vor.u32 1.1754944e-38, %v1111
        %v1113 = vsel %vm1110, %v1112, %v1108
        %v1114 = vmul.f32 %v1077, %v1099
        %v1115 = vmul.f32 %v1079, %v1113
        %v1117 = vsel %vm1015, %v1114, 0
        %1119 = vmatpush.msra.mxu0 0.0
        %1120 = vmatpush.msra.mxu0 0.0
        %1121 = vmatpush.msra.mxu0 0.0
        %1122 = vmatpush.msra.mxu0 0.0
        %1123 = vmatpush.msra.mxu0 0.0
        %1124 = vmatpush.msra.mxu0 0.0
        %1125 = vmatpush.msra.mxu0 0.0
        %1126 = vmatpush.msra.mxu0 0.0
        %1127 = vmatpush.msra.mxu0 0.0
        %1128 = vmatpush.msra.mxu0 0.0
        %1129 = vmatpush.msra.mxu0 0.0
        %1130 = vmatpush.msra.mxu0 0.0
        %1131 = vmatpush.msra.mxu0 0.0
        %1132 = vmatpush.msra.mxu0 0.0
        %1133 = vmatpush.msra.mxu0 0.0
        %1134 = vmatpush.msra.mxu0 %v1010
        %1135 = vmatmul.f32.gmra.mxu0 %v1117
        %v1136 = vpop.f32.mrf.mxu0
        %v1137 = vadd.f32 0.0, %v1136
        %1138 = vdwg.mxu0
        %v1140 = vsel %vm1015, %v1115, 0
        %1142 = vmatpush.msra.mxu0 0.0
        %1143 = vmatpush.msra.mxu0 0.0
        %1144 = vmatpush.msra.mxu0 0.0
        %1145 = vmatpush.msra.mxu0 0.0
        %1146 = vmatpush.msra.mxu0 0.0
        %1147 = vmatpush.msra.mxu0 0.0
        %1148 = vmatpush.msra.mxu0 0.0
        %1149 = vmatpush.msra.mxu0 0.0
        %1150 = vmatpush.msra.mxu0 0.0
        %1151 = vmatpush.msra.mxu0 0.0
        %1152 = vmatpush.msra.mxu0 0.0
        %1153 = vmatpush.msra.mxu0 0.0
        %1154 = vmatpush.msra.mxu0 0.0
        %1155 = vmatpush.msra.mxu0 0.0
        %1156 = vmatpush.msra.mxu0 0.0
        %1157 = vmatpush.msra.mxu0 %v1013
        %1158 = vmatmul.f32.gmra.mxu0 %v1140
        %v1159 = vpop.f32.mrf.mxu0
        %v1160 = vadd.f32 0.0, %v1159
        %1161 = vdwg.mxu0
        %1162 = vrot.lane.b32.xlu0 %v957, 120
        %v1163 = vpop.permute.xlu0 %1162
        %1164 = vrot.lane.b32.xlu0 %v984, 120
        %v1165 = vpop.permute.xlu0 %1164
        %v1166 = vsel %vm1015, %v1163, 0
        %v1168 = vsel %vm1015, %v1165, 0
        %1170 = vmatpush.xpose.msra.mxu0 0.0
        %1171 = vmatpush.xpose.msra.mxu0 0.0
        %1172 = vmatpush.xpose.msra.mxu0 0.0
        %1173 = vmatpush.xpose.msra.mxu0 0.0
        %1174 = vmatpush.xpose.msra.mxu0 0.0
        %1175 = vmatpush.xpose.msra.mxu0 0.0
        %1176 = vmatpush.xpose.msra.mxu0 0.0
        %1177 = vmatpush.xpose.msra.mxu0 0.0
        %1178 = vmatpush.xpose.msra.mxu0 0.0
        %1179 = vmatpush.xpose.msra.mxu0 0.0
        %1180 = vmatpush.xpose.msra.mxu0 0.0
        %1181 = vmatpush.xpose.msra.mxu0 0.0
        %1182 = vmatpush.xpose.msra.mxu0 0.0
        %1183 = vmatpush.xpose.msra.mxu0 0.0
        %1184 = vmatpush.xpose.msra.mxu0 0.0
        %1185 = vmatpush.xpose.msra.mxu0 %v1168
        %1186 = vmatmul.f32.gmra.mxu0 %v1166
        %v1187 = vpop.f32.mrf.mxu0
        %v1188 = vadd.f32 0.0, %v1187
        %1189 = vdwg.mxu0
        %1190 = vrot.lane.b32.xlu0 %v960, 120
        %v1191 = vpop.permute.xlu0 %1190
        %1192 = vrot.lane.b32.xlu0 %v987, 120
        %v1193 = vpop.permute.xlu0 %1192
        %v1194 = vsel %vm1015, %v1191, 0
        %v1196 = vsel %vm1015, %v1193, 0
        %1198 = vmatpush.xpose.msra.mxu0 0.0
        %1199 = vmatpush.xpose.msra.mxu0 0.0
        %1200 = vmatpush.xpose.msra.mxu0 0.0
        %1201 = vmatpush.xpose.msra.mxu0 0.0
        %1202 = vmatpush.xpose.msra.mxu0 0.0
        %1203 = vmatpush.xpose.msra.mxu0 0.0
        %1204 = vmatpush.xpose.msra.mxu0 0.0
        %1205 = vmatpush.xpose.msra.mxu0 0.0
        %1206 = vmatpush.xpose.msra.mxu0 0.0
        %1207 = vmatpush.xpose.msra.mxu0 0.0
        %1208 = vmatpush.xpose.msra.mxu0 0.0
        %1209 = vmatpush.xpose.msra.mxu0 0.0
        %1210 = vmatpush.xpose.msra.mxu0 0.0
        %1211 = vmatpush.xpose.msra.mxu0 0.0
        %1212 = vmatpush.xpose.msra.mxu0 0.0
        %1213 = vmatpush.xpose.msra.mxu0 %v1196
        %1214 = vmatmul.f32.gmra.mxu0 %v1194
        %v1215 = vpop.f32.mrf.mxu0
        %v1216 = vadd.f32 0.0, %v1215
        %1217 = vdwg.mxu0
        %v1218 = vsel %vm1015, %v1188, -inf
        %1219 = vmax.xlane.f32.xlu0 %v1218
        %v1220 = vpop.xlane.xlu0 %1219
        %v1221 = vsel %vm1015, %v1216, -inf
        %1222 = vmax.xlane.f32.xlu0 %v1221
        %v1223 = vpop.xlane.xlu0 %1222
        %v1224 = vsub.f32 %v1188, %v1220
        %v1225 = vsub.f32 %v1216, %v1223
        %v1226 = vmul.f32 %v1224, 1.442695
        %v1227 = vpow.pop %v1226
        %v1228 = vmul.f32 %v1225, 1.442695
        %v1229 = vpow.pop %v1228
        %v1230 = vsel %vm1015, %v1227, 0.0
        %1231 = vadd.xlane.f32.xlu0 %v1230
        %v1232 = vpop.xlane.xlu0 %1231
        %v1233 = vsel %vm1015, %v1229, 0.0
        %1234 = vadd.xlane.f32.xlu0 %v1233
        %v1235 = vpop.xlane.xlu0 %1234
        %v1236 = vrcp.pop %v1232
        %v1237 = vmul.f32 %v1232, %v1236
        %v1238 = vsub.f32 1.0, %v1237
        %v1239 = vmul.f32 %v1236, %v1238
        %v1240 = vadd.f32 %v1236, %v1239
        %vm1241 = vweird.f32 %v1232
        %vm1242 = vweird.f32 %v1236
        %vm1243 = vmor %vm1241, %vm1242
        %v1244 = vsel %vm1243, %v1236, %v1240
        %v1245 = vand.u32 2147483647, %v1232
        %vm1246 = vcmp.eq.f32.partialorder %v1245, 8.507059e+37
        %v1247 = vand.u32 %v1232, 2147483648
        %v1248 = vor.u32 1.1754944e-38, %v1247
        %v1249 = vsel %vm1246, %v1248, %v1244
        %v1250 = vrcp.pop %v1235
        %v1251 = vmul.f32 %v1235, %v1250
        %v1252 = vsub.f32 1.0, %v1251
        %v1253 = vmul.f32 %v1250, %v1252
        %v1254 = vadd.f32 %v1250, %v1253
        %vm1255 = vweird.f32 %v1235
        %vm1256 = vweird.f32 %v1250
        %vm1257 = vmor %vm1255, %vm1256
        %v1258 = vsel %vm1257, %v1250, %v1254
        %v1259 = vand.u32 2147483647, %v1235
        %vm1260 = vcmp.eq.f32.partialorder %v1259, 8.507059e+37
        %v1261 = vand.u32 %v1235, 2147483648
        %v1262 = vor.u32 1.1754944e-38, %v1261
        %v1263 = vsel %vm1260, %v1262, %v1258
        %v1264 = vmul.f32 %v1227, %v1249
        %v1265 = vmul.f32 %v1229, %v1263
        %1267 = vrot.lane.b32.xlu0 %v1010, 120
        %v1268 = vpop.permute.xlu0 %1267
        %v1271 = vsel %vm1015, %v1264, 0
        %1273 = vmatpush.msra.mxu0 0.0
        %1274 = vmatpush.msra.mxu0 0.0
        %1275 = vmatpush.msra.mxu0 0.0
        %1276 = vmatpush.msra.mxu0 0.0
        %1277 = vmatpush.msra.mxu0 0.0
        %1278 = vmatpush.msra.mxu0 0.0
        %1279 = vmatpush.msra.mxu0 0.0
        %1280 = vmatpush.msra.mxu0 0.0
        %1281 = vmatpush.msra.mxu0 0.0
        %1282 = vmatpush.msra.mxu0 0.0
        %1283 = vmatpush.msra.mxu0 0.0
        %1284 = vmatpush.msra.mxu0 0.0
        %1285 = vmatpush.msra.mxu0 0.0
        %1286 = vmatpush.msra.mxu0 0.0
        %1287 = vmatpush.msra.mxu0 0.0
        %1288 = vmatpush.msra.mxu0 %v1268
        %1289 = vmatmul.f32.gmra.mxu0 %v1271
        %v1290 = vpop.f32.mrf.mxu0
        %v1291 = vadd.f32 0.0, %v1290
        %1292 = vdwg.mxu0
        %1294 = vrot.lane.b32.xlu0 %v1013, 120
        %v1295 = vpop.permute.xlu0 %1294
        %v1298 = vsel %vm1015, %v1265, 0
        %1300 = vmatpush.msra.mxu0 0.0
        %1301 = vmatpush.msra.mxu0 0.0
        %1302 = vmatpush.msra.mxu0 0.0
        %1303 = vmatpush.msra.mxu0 0.0
        %1304 = vmatpush.msra.mxu0 0.0
        %1305 = vmatpush.msra.mxu0 0.0
        %1306 = vmatpush.msra.mxu0 0.0
        %1307 = vmatpush.msra.mxu0 0.0
        %1308 = vmatpush.msra.mxu0 0.0
        %1309 = vmatpush.msra.mxu0 0.0
        %1310 = vmatpush.msra.mxu0 0.0
        %1311 = vmatpush.msra.mxu0 0.0
        %1312 = vmatpush.msra.mxu0 0.0
        %1313 = vmatpush.msra.mxu0 0.0
        %1314 = vmatpush.msra.mxu0 0.0
        %1315 = vmatpush.msra.mxu0 %v1295
        %1316 = vmatmul.f32.gmra.mxu0 %v1298
        %v1317 = vpop.f32.mrf.mxu0
        %v1318 = vadd.f32 0.0, %v1317
        %1319 = vdwg.mxu0
        %v1321 = vsel %vm1015, %v1291, 0
        %v1324 = vsel %vm1015, %v1318, 0
        %1326 = vmatpush.msra.mxu0 0.0
        %1327 = vmatpush.msra.mxu0 0.0
        %1328 = vmatpush.msra.mxu0 0.0
        %1329 = vmatpush.msra.mxu0 0.0
        %1330 = vmatpush.msra.mxu0 0.0
        %1331 = vmatpush.msra.mxu0 0.0
        %1332 = vmatpush.msra.mxu0 0.0
        %1333 = vmatpush.msra.mxu0 0.0
        %1334 = vmatpush.msra.mxu0 0.0
        %1335 = vmatpush.msra.mxu0 0.0
        %1336 = vmatpush.msra.mxu0 0.0
        %1337 = vmatpush.msra.mxu0 0.0
        %1338 = vmatpush.msra.mxu0 0.0
        %1339 = vmatpush.msra.mxu0 0.0
        %1340 = vmatpush.msra.mxu0 0.0
        %1341 = vmatpush.msra.mxu0 %v720
        %1342 = vmatmul.f32.gmra.mxu0 %v1321
        %v1343 = vpop.f32.mrf.mxu0
        %v1344 = vadd.f32 0.0, %v1343
        %1345 = vmatmul.f32.gmra.mxu0 %v1324
        %v1346 = vpop.f32.mrf.mxu0
        %v1347 = vadd.f32 0.0, %v1346
        %1348 = vdwg.mxu0
        %v1350 = vsel %vm1015, %v1137, 0
        %v1353 = vsel %vm1015, %v1160, 0
        %1355 = vmatpush.msra.mxu0 0.0
        %1356 = vmatpush.msra.mxu0 0.0
        %1357 = vmatpush.msra.mxu0 0.0
        %1358 = vmatpush.msra.mxu0 0.0
        %1359 = vmatpush.msra.mxu0 0.0
        %1360 = vmatpush.msra.mxu0 0.0
        %1361 = vmatpush.msra.mxu0 0.0
        %1362 = vmatpush.msra.mxu0 0.0
        %1363 = vmatpush.msra.mxu0 0.0
        %1364 = vmatpush.msra.mxu0 0.0
        %1365 = vmatpush.msra.mxu0 0.0
        %1366 = vmatpush.msra.mxu0 0.0
        %1367 = vmatpush.msra.mxu0 0.0
        %1368 = vmatpush.msra.mxu0 0.0
        %1369 = vmatpush.msra.mxu0 0.0
        %1370 = vmatpush.msra.mxu0 %v719
        %1371 = vmatmul.f32.gmra.mxu0 %v1350
        %v1372 = vpop.f32.mrf.mxu0
        %v1373 = vadd.f32 %v1344, %v1372
        %1374 = vmatmul.f32.gmra.mxu0 %v1353
        %v1375 = vpop.f32.mrf.mxu0
        %v1376 = vadd.f32 %v1347, %v1375
        %1377 = vdwg.mxu0
        %1378 = vrot.lane.b32.xlu0 %v957, 112
        %v1379 = vpop.permute.xlu0 %1378
        %1380 = vrot.lane.b32.xlu0 %v984, 112
        %v1381 = vpop.permute.xlu0 %1380
        %v1382 = vsel %vm1015, %v1379, 0
        %v1384 = vsel %vm1015, %v1381, 0
        %1386 = vmatpush.xpose.msra.mxu0 0.0
        %1387 = vmatpush.xpose.msra.mxu0 0.0
        %1388 = vmatpush.xpose.msra.mxu0 0.0
        %1389 = vmatpush.xpose.msra.mxu0 0.0
        %1390 = vmatpush.xpose.msra.mxu0 0.0
        %1391 = vmatpush.xpose.msra.mxu0 0.0
        %1392 = vmatpush.xpose.msra.mxu0 0.0
        %1393 = vmatpush.xpose.msra.mxu0 0.0
        %1394 = vmatpush.xpose.msra.mxu0 0.0
        %1395 = vmatpush.xpose.msra.mxu0 0.0
        %1396 = vmatpush.xpose.msra.mxu0 0.0
        %1397 = vmatpush.xpose.msra.mxu0 0.0
        %1398 = vmatpush.xpose.msra.mxu0 0.0
        %1399 = vmatpush.xpose.msra.mxu0 0.0
        %1400 = vmatpush.xpose.msra.mxu0 0.0
        %1401 = vmatpush.xpose.msra.mxu0 %v1384
        %1402 = vmatmul.f32.gmra.mxu0 %v1382
        %v1403 = vpop.f32.mrf.mxu0
        %v1404 = vadd.f32 0.0, %v1403
        %1405 = vdwg.mxu0
        %1406 = vrot.lane.b32.xlu0 %v960, 112
        %v1407 = vpop.permute.xlu0 %1406
        %1408 = vrot.lane.b32.xlu0 %v987, 112
        %v1409 = vpop.permute.xlu0 %1408
        %v1410 = vsel %vm1015, %v1407, 0
        %v1412 = vsel %vm1015, %v1409, 0
        %1414 = vmatpush.xpose.msra.mxu0 0.0
        %1415 = vmatpush.xpose.msra.mxu0 0.0
        %1416 = vmatpush.xpose.msra.mxu0 0.0
        %1417 = vmatpush.xpose.msra.mxu0 0.0
        %1418 = vmatpush.xpose.msra.mxu0 0.0
        %1419 = vmatpush.xpose.msra.mxu0 0.0
        %1420 = vmatpush.xpose.msra.mxu0 0.0
        %1421 = vmatpush.xpose.msra.mxu0 0.0
        %1422 = vmatpush.xpose.msra.mxu0 0.0
        %1423 = vmatpush.xpose.msra.mxu0 0.0
        %1424 = vmatpush.xpose.msra.mxu0 0.0
        %1425 = vmatpush.xpose.msra.mxu0 0.0
        %1426 = vmatpush.xpose.msra.mxu0 0.0
        %1427 = vmatpush.xpose.msra.mxu0 0.0
        %1428 = vmatpush.xpose.msra.mxu0 0.0
        %1429 = vmatpush.xpose.msra.mxu0 %v1412
        %1430 = vmatmul.f32.gmra.mxu0 %v1410
        %v1431 = vpop.f32.mrf.mxu0
        %v1432 = vadd.f32 0.0, %v1431
        %1433 = vdwg.mxu0
        %v1434 = vsel %vm1015, %v1404, -inf
        %1435 = vmax.xlane.f32.xlu0 %v1434
        %v1436 = vpop.xlane.xlu0 %1435
        %v1437 = vsel %vm1015, %v1432, -inf
        %1438 = vmax.xlane.f32.xlu0 %v1437
        %v1439 = vpop.xlane.xlu0 %1438
        %v1440 = vsub.f32 %v1404, %v1436
        %v1441 = vsub.f32 %v1432, %v1439
        %v1442 = vmul.f32 %v1440, 1.442695
        %v1443 = vpow.pop %v1442
        %v1444 = vmul.f32 %v1441, 1.442695
        %v1445 = vpow.pop %v1444
        %v1446 = vsel %vm1015, %v1443, 0.0
        %1447 = vadd.xlane.f32.xlu0 %v1446
        %v1448 = vpop.xlane.xlu0 %1447
        %v1449 = vsel %vm1015, %v1445, 0.0
        %1450 = vadd.xlane.f32.xlu0 %v1449
        %v1451 = vpop.xlane.xlu0 %1450
        %v1452 = vrcp.pop %v1448
        %v1453 = vmul.f32 %v1448, %v1452
        %v1454 = vsub.f32 1.0, %v1453
        %v1455 = vmul.f32 %v1452, %v1454
        %v1456 = vadd.f32 %v1452, %v1455
        %vm1457 = vweird.f32 %v1448
        %vm1458 = vweird.f32 %v1452
        %vm1459 = vmor %vm1457, %vm1458
        %v1460 = vsel %vm1459, %v1452, %v1456
        %v1461 = vand.u32 2147483647, %v1448
        %vm1462 = vcmp.eq.f32.partialorder %v1461, 8.507059e+37
        %v1463 = vand.u32 %v1448, 2147483648
        %v1464 = vor.u32 1.1754944e-38, %v1463
        %v1465 = vsel %vm1462, %v1464, %v1460
        %v1466 = vrcp.pop %v1451
        %v1467 = vmul.f32 %v1451, %v1466
        %v1468 = vsub.f32 1.0, %v1467
        %v1469 = vmul.f32 %v1466, %v1468
        %v1470 = vadd.f32 %v1466, %v1469
        %vm1471 = vweird.f32 %v1451
        %vm1472 = vweird.f32 %v1466
        %vm1473 = vmor %vm1471, %vm1472
        %v1474 = vsel %vm1473, %v1466, %v1470
        %v1475 = vand.u32 2147483647, %v1451
        %vm1476 = vcmp.eq.f32.partialorder %v1475, 8.507059e+37
        %v1477 = vand.u32 %v1451, 2147483648
        %v1478 = vor.u32 1.1754944e-38, %v1477
        %v1479 = vsel %vm1476, %v1478, %v1474
        %v1480 = vmul.f32 %v1443, %v1465
        %v1481 = vmul.f32 %v1445, %v1479
        %1482 = vrot.lane.b32.xlu0 %v1010, 112
        %v1483 = vpop.permute.xlu0 %1482
        %v1486 = vsel %vm1015, %v1480, 0
        %1488 = vmatpush.msra.mxu0 0.0
        %1489 = vmatpush.msra.mxu0 0.0
        %1490 = vmatpush.msra.mxu0 0.0
        %1491 = vmatpush.msra.mxu0 0.0
        %1492 = vmatpush.msra.mxu0 0.0
        %1493 = vmatpush.msra.mxu0 0.0
        %1494 = vmatpush.msra.mxu0 0.0
        %1495 = vmatpush.msra.mxu0 0.0
        %1496 = vmatpush.msra.mxu0 0.0
        %1497 = vmatpush.msra.mxu0 0.0
        %1498 = vmatpush.msra.mxu0 0.0
        %1499 = vmatpush.msra.mxu0 0.0
        %1500 = vmatpush.msra.mxu0 0.0
        %1501 = vmatpush.msra.mxu0 0.0
        %1502 = vmatpush.msra.mxu0 0.0
        %1503 = vmatpush.msra.mxu0 %v1483
        %1504 = vmatmul.f32.gmra.mxu0 %v1486
        %v1505 = vpop.f32.mrf.mxu0
        %v1506 = vadd.f32 0.0, %v1505
        %1507 = vdwg.mxu0
        %1508 = vrot.lane.b32.xlu0 %v1013, 112
        %v1509 = vpop.permute.xlu0 %1508
        %v1512 = vsel %vm1015, %v1481, 0
        %1514 = vmatpush.msra.mxu0 0.0
        %1515 = vmatpush.msra.mxu0 0.0
        %1516 = vmatpush.msra.mxu0 0.0
        %1517 = vmatpush.msra.mxu0 0.0
        %1518 = vmatpush.msra.mxu0 0.0
        %1519 = vmatpush.msra.mxu0 0.0
        %1520 = vmatpush.msra.mxu0 0.0
        %1521 = vmatpush.msra.mxu0 0.0
        %1522 = vmatpush.msra.mxu0 0.0
        %1523 = vmatpush.msra.mxu0 0.0
        %1524 = vmatpush.msra.mxu0 0.0
        %1525 = vmatpush.msra.mxu0 0.0
        %1526 = vmatpush.msra.mxu0 0.0
        %1527 = vmatpush.msra.mxu0 0.0
        %1528 = vmatpush.msra.mxu0 0.0
        %1529 = vmatpush.msra.mxu0 %v1509
        %1530 = vmatmul.f32.gmra.mxu0 %v1512
        %v1531 = vpop.f32.mrf.mxu0
        %v1532 = vadd.f32 0.0, %v1531
        %1533 = vdwg.mxu0
        %v1535 = vsel %vm1015, %v1506, 0
        %v1538 = vsel %vm1015, %v1532, 0
        %1540 = vmatpush.msra.mxu0 0.0
        %1541 = vmatpush.msra.mxu0 0.0
        %1542 = vmatpush.msra.mxu0 0.0
        %1543 = vmatpush.msra.mxu0 0.0
        %1544 = vmatpush.msra.mxu0 0.0
        %1545 = vmatpush.msra.mxu0 0.0
        %1546 = vmatpush.msra.mxu0 0.0
        %1547 = vmatpush.msra.mxu0 0.0
        %1548 = vmatpush.msra.mxu0 0.0
        %1549 = vmatpush.msra.mxu0 0.0
        %1550 = vmatpush.msra.mxu0 0.0
        %1551 = vmatpush.msra.mxu0 0.0
        %1552 = vmatpush.msra.mxu0 0.0
        %1553 = vmatpush.msra.mxu0 0.0
        %1554 = vmatpush.msra.mxu0 0.0
        %1555 = vmatpush.msra.mxu0 %v721
        %1556 = vmatmul.f32.gmra.mxu0 %v1535
        %v1557 = vpop.f32.mrf.mxu0
        %v1558 = vadd.f32 0.0, %v1557
        %1559 = vmatmul.f32.gmra.mxu0 %v1538
        %v1560 = vpop.f32.mrf.mxu0
        %v1561 = vadd.f32 0.0, %v1560
        %1562 = vdwg.mxu0
        %v1563 = vadd.f32 %v1373, %v1558
        %v1564 = vadd.f32 %v1376, %v1561
        %1565 = vrot.lane.b32.xlu0 %v957, 104
        %v1566 = vpop.permute.xlu0 %1565
        %1567 = vrot.lane.b32.xlu0 %v984, 104
        %v1568 = vpop.permute.xlu0 %1567
        %v1569 = vsel %vm1015, %v1566, 0
        %v1571 = vsel %vm1015, %v1568, 0
        %1573 = vmatpush.xpose.msra.mxu0 0.0
        %1574 = vmatpush.xpose.msra.mxu0 0.0
        %1575 = vmatpush.xpose.msra.mxu0 0.0
        %1576 = vmatpush.xpose.msra.mxu0 0.0
        %1577 = vmatpush.xpose.msra.mxu0 0.0
        %1578 = vmatpush.xpose.msra.mxu0 0.0
        %1579 = vmatpush.xpose.msra.mxu0 0.0
        %1580 = vmatpush.xpose.msra.mxu0 0.0
        %1581 = vmatpush.xpose.msra.mxu0 0.0
        %1582 = vmatpush.xpose.msra.mxu0 0.0
        %1583 = vmatpush.xpose.msra.mxu0 0.0
        %1584 = vmatpush.xpose.msra.mxu0 0.0
        %1585 = vmatpush.xpose.msra.mxu0 0.0
        %1586 = vmatpush.xpose.msra.mxu0 0.0
        %1587 = vmatpush.xpose.msra.mxu0 0.0
        %1588 = vmatpush.xpose.msra.mxu0 %v1571
        %1589 = vmatmul.f32.gmra.mxu0 %v1569
        %v1590 = vpop.f32.mrf.mxu0
        %v1591 = vadd.f32 0.0, %v1590
        %1592 = vdwg.mxu0
        %1593 = vrot.lane.b32.xlu0 %v960, 104
        %v1594 = vpop.permute.xlu0 %1593
        %1595 = vrot.lane.b32.xlu0 %v987, 104
        %v1596 = vpop.permute.xlu0 %1595
        %v1597 = vsel %vm1015, %v1594, 0
        %v1599 = vsel %vm1015, %v1596, 0
        %1601 = vmatpush.xpose.msra.mxu0 0.0
        %1602 = vmatpush.xpose.msra.mxu0 0.0
        %1603 = vmatpush.xpose.msra.mxu0 0.0
        %1604 = vmatpush.xpose.msra.mxu0 0.0
        %1605 = vmatpush.xpose.msra.mxu0 0.0
        %1606 = vmatpush.xpose.msra.mxu0 0.0
        %1607 = vmatpush.xpose.msra.mxu0 0.0
        %1608 = vmatpush.xpose.msra.mxu0 0.0
        %1609 = vmatpush.xpose.msra.mxu0 0.0
        %1610 = vmatpush.xpose.msra.mxu0 0.0
        %1611 = vmatpush.xpose.msra.mxu0 0.0
        %1612 = vmatpush.xpose.msra.mxu0 0.0
        %1613 = vmatpush.xpose.msra.mxu0 0.0
        %1614 = vmatpush.xpose.msra.mxu0 0.0
        %1615 = vmatpush.xpose.msra.mxu0 0.0
        %1616 = vmatpush.xpose.msra.mxu0 %v1599
        %1617 = vmatmul.f32.gmra.mxu0 %v1597
        %v1618 = vpop.f32.mrf.mxu0
        %v1619 = vadd.f32 0.0, %v1618
        %1620 = vdwg.mxu0
        %v1621 = vsel %vm1015, %v1591, -inf
        %1622 = vmax.xlane.f32.xlu0 %v1621
        %v1623 = vpop.xlane.xlu0 %1622
        %v1624 = vsel %vm1015, %v1619, -inf
        %1625 = vmax.xlane.f32.xlu0 %v1624
        %v1626 = vpop.xlane.xlu0 %1625
        %v1627 = vsub.f32 %v1591, %v1623
        %v1628 = vsub.f32 %v1619, %v1626
        %v1629 = vmul.f32 %v1627, 1.442695
        %v1630 = vpow.pop %v1629
        %v1631 = vmul.f32 %v1628, 1.442695
        %v1632 = vpow.pop %v1631
        %v1633 = vsel %vm1015, %v1630, 0.0
        %1634 = vadd.xlane.f32.xlu0 %v1633
        %v1635 = vpop.xlane.xlu0 %1634
        %v1636 = vsel %vm1015, %v1632, 0.0
        %1637 = vadd.xlane.f32.xlu0 %v1636
        %v1638 = vpop.xlane.xlu0 %1637
        %v1639 = vrcp.pop %v1635
        %v1640 = vmul.f32 %v1635, %v1639
        %v1641 = vsub.f32 1.0, %v1640
        %v1642 = vmul.f32 %v1639, %v1641
        %v1643 = vadd.f32 %v1639, %v1642
        %vm1644 = vweird.f32 %v1635
        %vm1645 = vweird.f32 %v1639
        %vm1646 = vmor %vm1644, %vm1645
        %v1647 = vsel %vm1646, %v1639, %v1643
        %v1648 = vand.u32 2147483647, %v1635
        %vm1649 = vcmp.eq.f32.partialorder %v1648, 8.507059e+37
        %v1650 = vand.u32 %v1635, 2147483648
        %v1651 = vor.u32 1.1754944e-38, %v1650
        %v1652 = vsel %vm1649, %v1651, %v1647
        %v1653 = vrcp.pop %v1638
        %v1654 = vmul.f32 %v1638, %v1653
        %v1655 = vsub.f32 1.0, %v1654
        %v1656 = vmul.f32 %v1653, %v1655
        %v1657 = vadd.f32 %v1653, %v1656
        %vm1658 = vweird.f32 %v1638
        %vm1659 = vweird.f32 %v1653
        %vm1660 = vmor %vm1658, %vm1659
        %v1661 = vsel %vm1660, %v1653, %v1657
        %v1662 = vand.u32 2147483647, %v1638
        %vm1663 = vcmp.eq.f32.partialorder %v1662, 8.507059e+37
        %v1664 = vand.u32 %v1638, 2147483648
        %v1665 = vor.u32 1.1754944e-38, %v1664
        %v1666 = vsel %vm1663, %v1665, %v1661
        %v1667 = vmul.f32 %v1630, %v1652
        %v1668 = vmul.f32 %v1632, %v1666
        %1669 = vrot.lane.b32.xlu0 %v1010, 104
        %v1670 = vpop.permute.xlu0 %1669
        %v1673 = vsel %vm1015, %v1667, 0
        %1675 = vmatpush.msra.mxu0 0.0
        %1676 = vmatpush.msra.mxu0 0.0
        %1677 = vmatpush.msra.mxu0 0.0
        %1678 = vmatpush.msra.mxu0 0.0
        %1679 = vmatpush.msra.mxu0 0.0
        %1680 = vmatpush.msra.mxu0 0.0
        %1681 = vmatpush.msra.mxu0 0.0
        %1682 = vmatpush.msra.mxu0 0.0
        %1683 = vmatpush.msra.mxu0 0.0
        %1684 = vmatpush.msra.mxu0 0.0
        %1685 = vmatpush.msra.mxu0 0.0
        %1686 = vmatpush.msra.mxu0 0.0
        %1687 = vmatpush.msra.mxu0 0.0
        %1688 = vmatpush.msra.mxu0 0.0
        %1689 = vmatpush.msra.mxu0 0.0
        %1690 = vmatpush.msra.mxu0 %v1670
        %1691 = vmatmul.f32.gmra.mxu0 %v1673
        %v1692 = vpop.f32.mrf.mxu0
        %v1693 = vadd.f32 0.0, %v1692
        %1694 = vdwg.mxu0
        %1695 = vrot.lane.b32.xlu0 %v1013, 104
        %v1696 = vpop.permute.xlu0 %1695
        %v1699 = vsel %vm1015, %v1668, 0
        %1701 = vmatpush.msra.mxu0 0.0
        %1702 = vmatpush.msra.mxu0 0.0
        %1703 = vmatpush.msra.mxu0 0.0
        %1704 = vmatpush.msra.mxu0 0.0
        %1705 = vmatpush.msra.mxu0 0.0
        %1706 = vmatpush.msra.mxu0 0.0
        %1707 = vmatpush.msra.mxu0 0.0
        %1708 = vmatpush.msra.mxu0 0.0
        %1709 = vmatpush.msra.mxu0 0.0
        %1710 = vmatpush.msra.mxu0 0.0
        %1711 = vmatpush.msra.mxu0 0.0
        %1712 = vmatpush.msra.mxu0 0.0
        %1713 = vmatpush.msra.mxu0 0.0
        %1714 = vmatpush.msra.mxu0 0.0
        %1715 = vmatpush.msra.mxu0 0.0
        %1716 = vmatpush.msra.mxu0 %v1696
        %1717 = vmatmul.f32.gmra.mxu0 %v1699
        %v1718 = vpop.f32.mrf.mxu0
        %v1719 = vadd.f32 0.0, %v1718
        %1720 = vdwg.mxu0
        %v1722 = vsel %vm1015, %v1693, 0
        %v1725 = vsel %vm1015, %v1719, 0
        %1727 = vmatpush.msra.mxu0 0.0
        %1728 = vmatpush.msra.mxu0 0.0
        %1729 = vmatpush.msra.mxu0 0.0
        %1730 = vmatpush.msra.mxu0 0.0
        %1731 = vmatpush.msra.mxu0 0.0
        %1732 = vmatpush.msra.mxu0 0.0
        %1733 = vmatpush.msra.mxu0 0.0
        %1734 = vmatpush.msra.mxu0 0.0
        %1735 = vmatpush.msra.mxu0 0.0
        %1736 = vmatpush.msra.mxu0 0.0
        %1737 = vmatpush.msra.mxu0 0.0
        %1738 = vmatpush.msra.mxu0 0.0
        %1739 = vmatpush.msra.mxu0 0.0
        %1740 = vmatpush.msra.mxu0 0.0
        %1741 = vmatpush.msra.mxu0 0.0
        %1742 = vmatpush.msra.mxu0 %v722
        %1743 = vmatmul.f32.gmra.mxu0 %v1722
        %v1744 = vpop.f32.mrf.mxu0
        %v1745 = vadd.f32 0.0, %v1744
        %1746 = vmatmul.f32.gmra.mxu0 %v1725
        %v1747 = vpop.f32.mrf.mxu0
        %v1748 = vadd.f32 0.0, %v1747
        %1749 = vdwg.mxu0
        %v1750 = vadd.f32 %v1563, %v1745
        %v1751 = vadd.f32 %v1564, %v1748
        %1752 = vrot.lane.b32.xlu0 %v931, 32
        %v1753 = vpop.permute.xlu0 %1752
        %v1755 = vadd.f32 %v1750, %v1753
        %v1756 = vadd.f32 %v1751, %v1753
        %v1757 = vadd.f32 %v689, %v1755
        %v1758 = vadd.f32 %v690, %v1756
        %v1759 = vsel %vm932, %v1757, 0.0
        %1760 = vadd.xlane.f32.xlu0 %v1759
        %v1761 = vpop.xlane.xlu0 %1760
        %v1762 = vsel %vm932, %v1758, 0.0
        %1763 = vadd.xlane.f32.xlu0 %v1762
        %v1764 = vpop.xlane.xlu0 %1763
        %v1765 = vrcp.pop 32.0
        %v1766 = vmul.f32 32.0, %v1765
        %v1767 = vsub.f32 1.0, %v1766
        %v1768 = vmul.f32 %v1765, %v1767
        %v1769 = vadd.f32 %v1765, %v1768
        %vm1770 = vweird.f32 %v1765
        %v1771 = vsel %vm1770, %v1765, %v1769
        %v1772 = vmul.f32 %v1761, %v1771
        %v1773 = vmul.f32 %v1764, %v1771
        %v1774 = vsub.f32 %v1757, %v1772
        %v1775 = vsub.f32 %v1758, %v1773
        %v1776 = vmul.f32 %v1774, %v1774
        %v1777 = vmul.f32 %v1775, %v1775
        %v1778 = vsel %vm932, %v1776, 0.0
        %1779 = vadd.xlane.f32.xlu0 %v1778
        %v1780 = vpop.xlane.xlu0 %1779
        %v1781 = vsel %vm932, %v1777, 0.0
        %1782 = vadd.xlane.f32.xlu0 %v1781
        %v1783 = vpop.xlane.xlu0 %1782
        %v1784 = vmul.f32 %v1780, %v1771
        %v1785 = vmul.f32 %v1783, %v1771
        %v1786 = vadd.f32 %v1784, 1e-05
        %v1787 = vadd.f32 %v1785, 1e-05
        %v1788 = vrsqrt.pop %v1786
        %v1789 = vmul.f32 %v1788, %v1786
        %v1790 = vmul.f32 %v1789, %v1788
        %v1791 = vmul.f32 0.5, %v1790
        %v1792 = vsub.f32 1.5, %v1791
        %v1793 = vmul.f32 %v1788, %v1792
        %vm1794 = vweird.f32 %v1786
        %vm1795 = vweird.f32 %v1788
        %vm1796 = vmor %vm1794, %vm1795
        %v1797 = vsel %vm1796, %v1788, %v1793
        %v1798 = vrsqrt.pop %v1787
        %v1799 = vmul.f32 %v1798, %v1787
        %v1800 = vmul.f32 %v1799, %v1798
        %v1801 = vmul.f32 0.5, %v1800
        %v1802 = vsub.f32 1.5, %v1801
        %v1803 = vmul.f32 %v1798, %v1802
        %vm1804 = vweird.f32 %v1787
        %vm1805 = vweird.f32 %v1798
        %vm1806 = vmor %vm1804, %vm1805
        %v1807 = vsel %vm1806, %v1798, %v1803
        %v1808 = vmul.f32 %v1774, %v1797
        %v1809 = vmul.f32 %v1775, %v1807
        %v1810 = vperm.slane %v915, 2
        %v1811 = vmul.f32 %v1808, %v1810
        %v1812 = vmul.f32 %v1809, %v1810
        %1814 = vrot.lane.b32.xlu0 %v1810, 96
        %v1815 = vpop.permute.xlu0 %1814
        %v1817 = vadd.f32 %v1811, %v1815
        %v1818 = vadd.f32 %v1812, %v1815
        %v1819 = vperm.slane %v915, 0
        %v1820 = vperm.slane %v916, 0
        %v1821 = vperm.slane %v917, 0
        %v1822 = vperm.slane %v918, 0
        %v1823 = vperm.slane %v919, 0
        %v1824 = vperm.slane %v920, 0
        %v1825 = vperm.slane %v921, 0
        %v1826 = vperm.slane %v922, 0
        %v1827 = vperm.slane %v923, 0
        %v1828 = vperm.slane %v924, 0
        %v1829 = vperm.slane %v925, 0
        %v1830 = vperm.slane %v926, 0
        %v1831 = vperm.slane %v927, 0
        %v1832 = vperm.slane %v928, 0
        %v1833 = vperm.slane %v929, 0
        %v1834 = vperm.slane %v930, 0
        %v1836 = vsel %vm932, %v1817, 0
        %v1839 = vsel %vm932, %v1818, 0
        %1841 = vmatpush.msra.mxu0 0.0
        %1842 = vmatpush.msra.mxu0 0.0
        %1843 = vmatpush.msra.mxu0 0.0
        %1844 = vmatpush.msra.mxu0 0.0
        %1845 = vmatpush.msra.mxu0 0.0
        %1846 = vmatpush.msra.mxu0 0.0
        %1847 = vmatpush.msra.mxu0 0.0
        %1848 = vmatpush.msra.mxu0 0.0
        %1849 = vmatpush.msra.mxu0 0.0
        %1850 = vmatpush.msra.mxu0 0.0
        %1851 = vmatpush.msra.mxu0 0.0
        %1852 = vmatpush.msra.mxu0 0.0
        %1853 = vmatpush.msra.mxu0 %v803
        %1854 = vmatpush.msra.mxu0 %v787
        %1855 = vmatpush.msra.mxu0 %v771
        %1856 = vmatpush.msra.mxu0 %v755
        %1857 = vmatmul.f32.gmra.mxu0 %v1836
        %v1858 = vpop.f32.mrf.mxu0
        %v1859 = vadd.f32 %v1819, %v1858
        %1860 = vmatmul.f32.gmra.mxu0 %v1839
        %v1861 = vpop.f32.mrf.mxu0
        %v1862 = vadd.f32 %v1819, %v1861
        %1863 = vdwg.mxu0
        %1864 = vmatpush.msra.mxu0 0.0
        %1865 = vmatpush.msra.mxu0 0.0
        %1866 = vmatpush.msra.mxu0 0.0
        %1867 = vmatpush.msra.mxu0 0.0
        %1868 = vmatpush.msra.mxu0 0.0
        %1869 = vmatpush.msra.mxu0 0.0
        %1870 = vmatpush.msra.mxu0 0.0
        %1871 = vmatpush.msra.mxu0 0.0
        %1872 = vmatpush.msra.mxu0 0.0
        %1873 = vmatpush.msra.mxu0 0.0
        %1874 = vmatpush.msra.mxu0 0.0
        %1875 = vmatpush.msra.mxu0 0.0
        %1876 = vmatpush.msra.mxu0 %v804
        %1877 = vmatpush.msra.mxu0 %v788
        %1878 = vmatpush.msra.mxu0 %v772
        %1879 = vmatpush.msra.mxu0 %v756
        %1880 = vmatmul.f32.gmra.mxu0 %v1836
        %v1881 = vpop.f32.mrf.mxu0
        %v1882 = vadd.f32 %v1820, %v1881
        %1883 = vmatmul.f32.gmra.mxu0 %v1839
        %v1884 = vpop.f32.mrf.mxu0
        %v1885 = vadd.f32 %v1820, %v1884
        %1886 = vdwg.mxu0
        %1887 = vmatpush.msra.mxu0 0.0
        %1888 = vmatpush.msra.mxu0 0.0
        %1889 = vmatpush.msra.mxu0 0.0
        %1890 = vmatpush.msra.mxu0 0.0
        %1891 = vmatpush.msra.mxu0 0.0
        %1892 = vmatpush.msra.mxu0 0.0
        %1893 = vmatpush.msra.mxu0 0.0
        %1894 = vmatpush.msra.mxu0 0.0
        %1895 = vmatpush.msra.mxu0 0.0
        %1896 = vmatpush.msra.mxu0 0.0
        %1897 = vmatpush.msra.mxu0 0.0
        %1898 = vmatpush.msra.mxu0 0.0
        %1899 = vmatpush.msra.mxu0 %v805
        %1900 = vmatpush.msra.mxu0 %v789
        %1901 = vmatpush.msra.mxu0 %v773
        %1902 = vmatpush.msra.mxu0 %v757
        %1903 = vmatmul.f32.gmra.mxu0 %v1836
        %v1904 = vpop.f32.mrf.mxu0
        %v1905 = vadd.f32 %v1821, %v1904
        %1906 = vmatmul.f32.gmra.mxu0 %v1839
        %v1907 = vpop.f32.mrf.mxu0
        %v1908 = vadd.f32 %v1821, %v1907
        %1909 = vdwg.mxu0
        %1910 = vmatpush.msra.mxu0 0.0
        %1911 = vmatpush.msra.mxu0 0.0
        %1912 = vmatpush.msra.mxu0 0.0
        %1913 = vmatpush.msra.mxu0 0.0
        %1914 = vmatpush.msra.mxu0 0.0
        %1915 = vmatpush.msra.mxu0 0.0
        %1916 = vmatpush.msra.mxu0 0.0
        %1917 = vmatpush.msra.mxu0 0.0
        %1918 = vmatpush.msra.mxu0 0.0
        %1919 = vmatpush.msra.mxu0 0.0
        %1920 = vmatpush.msra.mxu0 0.0
        %1921 = vmatpush.msra.mxu0 0.0
        %1922 = vmatpush.msra.mxu0 %v806
        %1923 = vmatpush.msra.mxu0 %v790
        %1924 = vmatpush.msra.mxu0 %v774
        %1925 = vmatpush.msra.mxu0 %v758
        %1926 = vmatmul.f32.gmra.mxu0 %v1836
        %v1927 = vpop.f32.mrf.mxu0
        %v1928 = vadd.f32 %v1822, %v1927
        %1929 = vmatmul.f32.gmra.mxu0 %v1839
        %v1930 = vpop.f32.mrf.mxu0
        %v1931 = vadd.f32 %v1822, %v1930
        %1932 = vdwg.mxu0
        %1933 = vmatpush.msra.mxu0 0.0
        %1934 = vmatpush.msra.mxu0 0.0
        %1935 = vmatpush.msra.mxu0 0.0
        %1936 = vmatpush.msra.mxu0 0.0
        %1937 = vmatpush.msra.mxu0 0.0
        %1938 = vmatpush.msra.mxu0 0.0
        %1939 = vmatpush.msra.mxu0 0.0
        %1940 = vmatpush.msra.mxu0 0.0
        %1941 = vmatpush.msra.mxu0 0.0
        %1942 = vmatpush.msra.mxu0 0.0
        %1943 = vmatpush.msra.mxu0 0.0
        %1944 = vmatpush.msra.mxu0 0.0
        %1945 = vmatpush.msra.mxu0 %v807
        %1946 = vmatpush.msra.mxu0 %v791
        %1947 = vmatpush.msra.mxu0 %v775
        %1948 = vmatpush.msra.mxu0 %v759
        %1949 = vmatmul.f32.gmra.mxu0 %v1836
        %v1950 = vpop.f32.mrf.mxu0
        %v1951 = vadd.f32 %v1823, %v1950
        %1952 = vmatmul.f32.gmra.mxu0 %v1839
        %v1953 = vpop.f32.mrf.mxu0
        %v1954 = vadd.f32 %v1823, %v1953
        %1955 = vdwg.mxu0
        %1956 = vmatpush.msra.mxu0 0.0
        %1957 = vmatpush.msra.mxu0 0.0
        %1958 = vmatpush.msra.mxu0 0.0
        %1959 = vmatpush.msra.mxu0 0.0
        %1960 = vmatpush.msra.mxu0 0.0
        %1961 = vmatpush.msra.mxu0 0.0
        %1962 = vmatpush.msra.mxu0 0.0
        %1963 = vmatpush.msra.mxu0 0.0
        %1964 = vmatpush.msra.mxu0 0.0
        %1965 = vmatpush.msra.mxu0 0.0
        %1966 = vmatpush.msra.mxu0 0.0
        %1967 = vmatpush.msra.mxu0 0.0
        %1968 = vmatpush.msra.mxu0 %v808
        %1969 = vmatpush.msra.mxu0 %v792
        %1970 = vmatpush.msra.mxu0 %v776
        %1971 = vmatpush.msra.mxu0 %v760
        %1972 = vmatmul.f32.gmra.mxu0 %v1836
        %v1973 = vpop.f32.mrf.mxu0
        %v1974 = vadd.f32 %v1824, %v1973
        %1975 = vmatmul.f32.gmra.mxu0 %v1839
        %v1976 = vpop.f32.mrf.mxu0
        %v1977 = vadd.f32 %v1824, %v1976
        %1978 = vdwg.mxu0
        %1979 = vmatpush.msra.mxu0 0.0
        %1980 = vmatpush.msra.mxu0 0.0
        %1981 = vmatpush.msra.mxu0 0.0
        %1982 = vmatpush.msra.mxu0 0.0
        %1983 = vmatpush.msra.mxu0 0.0
        %1984 = vmatpush.msra.mxu0 0.0
        %1985 = vmatpush.msra.mxu0 0.0
        %1986 = vmatpush.msra.mxu0 0.0
        %1987 = vmatpush.msra.mxu0 0.0
        %1988 = vmatpush.msra.mxu0 0.0
        %1989 = vmatpush.msra.mxu0 0.0
        %1990 = vmatpush.msra.mxu0 0.0
        %1991 = vmatpush.msra.mxu0 %v809
        %1992 = vmatpush.msra.mxu0 %v793
        %1993 = vmatpush.msra.mxu0 %v777
        %1994 = vmatpush.msra.mxu0 %v761
        %1995 = vmatmul.f32.gmra.mxu0 %v1836
        %v1996 = vpop.f32.mrf.mxu0
        %v1997 = vadd.f32 %v1825, %v1996
        %1998 = vmatmul.f32.gmra.mxu0 %v1839
        %v1999 = vpop.f32.mrf.mxu0
        %v2000 = vadd.f32 %v1825, %v1999
        %2001 = vdwg.mxu0
        %2002 = vmatpush.msra.mxu0 0.0
        %2003 = vmatpush.msra.mxu0 0.0
        %2004 = vmatpush.msra.mxu0 0.0
        %2005 = vmatpush.msra.mxu0 0.0
        %2006 = vmatpush.msra.mxu0 0.0
        %2007 = vmatpush.msra.mxu0 0.0
        %2008 = vmatpush.msra.mxu0 0.0
        %2009 = vmatpush.msra.mxu0 0.0
        %2010 = vmatpush.msra.mxu0 0.0
        %2011 = vmatpush.msra.mxu0 0.0
        %2012 = vmatpush.msra.mxu0 0.0
        %2013 = vmatpush.msra.mxu0 0.0
        %2014 = vmatpush.msra.mxu0 %v810
        %2015 = vmatpush.msra.mxu0 %v794
        %2016 = vmatpush.msra.mxu0 %v778
        %2017 = vmatpush.msra.mxu0 %v762
        %2018 = vmatmul.f32.gmra.mxu0 %v1836
        %v2019 = vpop.f32.mrf.mxu0
        %v2020 = vadd.f32 %v1826, %v2019
        %2021 = vmatmul.f32.gmra.mxu0 %v1839
        %v2022 = vpop.f32.mrf.mxu0
        %v2023 = vadd.f32 %v1826, %v2022
        %2024 = vdwg.mxu0
        %2025 = vmatpush.msra.mxu0 0.0
        %2026 = vmatpush.msra.mxu0 0.0
        %2027 = vmatpush.msra.mxu0 0.0
        %2028 = vmatpush.msra.mxu0 0.0
        %2029 = vmatpush.msra.mxu0 0.0
        %2030 = vmatpush.msra.mxu0 0.0
        %2031 = vmatpush.msra.mxu0 0.0
        %2032 = vmatpush.msra.mxu0 0.0
        %2033 = vmatpush.msra.mxu0 0.0
        %2034 = vmatpush.msra.mxu0 0.0
        %2035 = vmatpush.msra.mxu0 0.0
        %2036 = vmatpush.msra.mxu0 0.0
        %2037 = vmatpush.msra.mxu0 %v811
        %2038 = vmatpush.msra.mxu0 %v795
        %2039 = vmatpush.msra.mxu0 %v779
        %2040 = vmatpush.msra.mxu0 %v763
        %2041 = vmatmul.f32.gmra.mxu0 %v1836
        %v2042 = vpop.f32.mrf.mxu0
        %v2043 = vadd.f32 %v1827, %v2042
        %2044 = vmatmul.f32.gmra.mxu0 %v1839
        %v2045 = vpop.f32.mrf.mxu0
        %v2046 = vadd.f32 %v1827, %v2045
        %2047 = vdwg.mxu0
        %2048 = vmatpush.msra.mxu0 0.0
        %2049 = vmatpush.msra.mxu0 0.0
        %2050 = vmatpush.msra.mxu0 0.0
        %2051 = vmatpush.msra.mxu0 0.0
        %2052 = vmatpush.msra.mxu0 0.0
        %2053 = vmatpush.msra.mxu0 0.0
        %2054 = vmatpush.msra.mxu0 0.0
        %2055 = vmatpush.msra.mxu0 0.0
        %2056 = vmatpush.msra.mxu0 0.0
        %2057 = vmatpush.msra.mxu0 0.0
        %2058 = vmatpush.msra.mxu0 0.0
        %2059 = vmatpush.msra.mxu0 0.0
        %2060 = vmatpush.msra.mxu0 %v812
        %2061 = vmatpush.msra.mxu0 %v796
        %2062 = vmatpush.msra.mxu0 %v780
        %2063 = vmatpush.msra.mxu0 %v764
        %2064 = vmatmul.f32.gmra.mxu0 %v1836
        %v2065 = vpop.f32.mrf.mxu0
        %v2066 = vadd.f32 %v1828, %v2065
        %2067 = vmatmul.f32.gmra.mxu0 %v1839
        %v2068 = vpop.f32.mrf.mxu0
        %v2069 = vadd.f32 %v1828, %v2068
        %2070 = vdwg.mxu0
        %2071 = vmatpush.msra.mxu0 0.0
        %2072 = vmatpush.msra.mxu0 0.0
        %2073 = vmatpush.msra.mxu0 0.0
        %2074 = vmatpush.msra.mxu0 0.0
        %2075 = vmatpush.msra.mxu0 0.0
        %2076 = vmatpush.msra.mxu0 0.0
        %2077 = vmatpush.msra.mxu0 0.0
        %2078 = vmatpush.msra.mxu0 0.0
        %2079 = vmatpush.msra.mxu0 0.0
        %2080 = vmatpush.msra.mxu0 0.0
        %2081 = vmatpush.msra.mxu0 0.0
        %2082 = vmatpush.msra.mxu0 0.0
        %2083 = vmatpush.msra.mxu0 %v813
        %2084 = vmatpush.msra.mxu0 %v797
        %2085 = vmatpush.msra.mxu0 %v781
        %2086 = vmatpush.msra.mxu0 %v765
        %2087 = vmatmul.f32.gmra.mxu0 %v1836
        %v2088 = vpop.f32.mrf.mxu0
        %v2089 = vadd.f32 %v1829, %v2088
        %2090 = vmatmul.f32.gmra.mxu0 %v1839
        %v2091 = vpop.f32.mrf.mxu0
        %v2092 = vadd.f32 %v1829, %v2091
        %2093 = vdwg.mxu0
        %2094 = vmatpush.msra.mxu0 0.0
        %2095 = vmatpush.msra.mxu0 0.0
        %2096 = vmatpush.msra.mxu0 0.0
        %2097 = vmatpush.msra.mxu0 0.0
        %2098 = vmatpush.msra.mxu0 0.0
        %2099 = vmatpush.msra.mxu0 0.0
        %2100 = vmatpush.msra.mxu0 0.0
        %2101 = vmatpush.msra.mxu0 0.0
        %2102 = vmatpush.msra.mxu0 0.0
        %2103 = vmatpush.msra.mxu0 0.0
        %2104 = vmatpush.msra.mxu0 0.0
        %2105 = vmatpush.msra.mxu0 0.0
        %2106 = vmatpush.msra.mxu0 %v814
        %2107 = vmatpush.msra.mxu0 %v798
        %2108 = vmatpush.msra.mxu0 %v782
        %2109 = vmatpush.msra.mxu0 %v766
        %2110 = vmatmul.f32.gmra.mxu0 %v1836
        %v2111 = vpop.f32.mrf.mxu0
        %v2112 = vadd.f32 %v1830, %v2111
        %2113 = vmatmul.f32.gmra.mxu0 %v1839
        %v2114 = vpop.f32.mrf.mxu0
        %v2115 = vadd.f32 %v1830, %v2114
        %2116 = vdwg.mxu0
        %2117 = vmatpush.msra.mxu0 0.0
        %2118 = vmatpush.msra.mxu0 0.0
        %2119 = vmatpush.msra.mxu0 0.0
        %2120 = vmatpush.msra.mxu0 0.0
        %2121 = vmatpush.msra.mxu0 0.0
        %2122 = vmatpush.msra.mxu0 0.0
        %2123 = vmatpush.msra.mxu0 0.0
        %2124 = vmatpush.msra.mxu0 0.0
        %2125 = vmatpush.msra.mxu0 0.0
        %2126 = vmatpush.msra.mxu0 0.0
        %2127 = vmatpush.msra.mxu0 0.0
        %2128 = vmatpush.msra.mxu0 0.0
        %2129 = vmatpush.msra.mxu0 %v815
        %2130 = vmatpush.msra.mxu0 %v799
        %2131 = vmatpush.msra.mxu0 %v783
        %2132 = vmatpush.msra.mxu0 %v767
        %2133 = vmatmul.f32.gmra.mxu0 %v1836
        %v2134 = vpop.f32.mrf.mxu0
        %v2135 = vadd.f32 %v1831, %v2134
        %2136 = vmatmul.f32.gmra.mxu0 %v1839
        %v2137 = vpop.f32.mrf.mxu0
        %v2138 = vadd.f32 %v1831, %v2137
        %2139 = vdwg.mxu0
        %2140 = vmatpush.msra.mxu0 0.0
        %2141 = vmatpush.msra.mxu0 0.0
        %2142 = vmatpush.msra.mxu0 0.0
        %2143 = vmatpush.msra.mxu0 0.0
        %2144 = vmatpush.msra.mxu0 0.0
        %2145 = vmatpush.msra.mxu0 0.0
        %2146 = vmatpush.msra.mxu0 0.0
        %2147 = vmatpush.msra.mxu0 0.0
        %2148 = vmatpush.msra.mxu0 0.0
        %2149 = vmatpush.msra.mxu0 0.0
        %2150 = vmatpush.msra.mxu0 0.0
        %2151 = vmatpush.msra.mxu0 0.0
        %2152 = vmatpush.msra.mxu0 %v816
        %2153 = vmatpush.msra.mxu0 %v800
        %2154 = vmatpush.msra.mxu0 %v784
        %2155 = vmatpush.msra.mxu0 %v768
        %2156 = vmatmul.f32.gmra.mxu0 %v1836
        %v2157 = vpop.f32.mrf.mxu0
        %v2158 = vadd.f32 %v1832, %v2157
        %2159 = vmatmul.f32.gmra.mxu0 %v1839
        %v2160 = vpop.f32.mrf.mxu0
        %v2161 = vadd.f32 %v1832, %v2160
        %2162 = vdwg.mxu0
        %2163 = vmatpush.msra.mxu0 0.0
        %2164 = vmatpush.msra.mxu0 0.0
        %2165 = vmatpush.msra.mxu0 0.0
        %2166 = vmatpush.msra.mxu0 0.0
        %2167 = vmatpush.msra.mxu0 0.0
        %2168 = vmatpush.msra.mxu0 0.0
        %2169 = vmatpush.msra.mxu0 0.0
        %2170 = vmatpush.msra.mxu0 0.0
        %2171 = vmatpush.msra.mxu0 0.0
        %2172 = vmatpush.msra.mxu0 0.0
        %2173 = vmatpush.msra.mxu0 0.0
        %2174 = vmatpush.msra.mxu0 0.0
        %2175 = vmatpush.msra.mxu0 %v817
        %2176 = vmatpush.msra.mxu0 %v801
        %2177 = vmatpush.msra.mxu0 %v785
        %2178 = vmatpush.msra.mxu0 %v769
        %2179 = vmatmul.f32.gmra.mxu0 %v1836
        %v2180 = vpop.f32.mrf.mxu0
        %v2181 = vadd.f32 %v1833, %v2180
        %2182 = vmatmul.f32.gmra.mxu0 %v1839
        %v2183 = vpop.f32.mrf.mxu0
        %v2184 = vadd.f32 %v1833, %v2183
        %2185 = vdwg.mxu0
        %2186 = vmatpush.msra.mxu0 0.0
        %2187 = vmatpush.msra.mxu0 0.0
        %2188 = vmatpush.msra.mxu0 0.0
        %2189 = vmatpush.msra.mxu0 0.0
        %2190 = vmatpush.msra.mxu0 0.0
        %2191 = vmatpush.msra.mxu0 0.0
        %2192 = vmatpush.msra.mxu0 0.0
        %2193 = vmatpush.msra.mxu0 0.0
        %2194 = vmatpush.msra.mxu0 0.0
        %2195 = vmatpush.msra.mxu0 0.0
        %2196 = vmatpush.msra.mxu0 0.0
        %2197 = vmatpush.msra.mxu0 0.0
        %2198 = vmatpush.msra.mxu0 %v818
        %2199 = vmatpush.msra.mxu0 %v802
        %2200 = vmatpush.msra.mxu0 %v786
        %2201 = vmatpush.msra.mxu0 %v770
        %2202 = vmatmul.f32.gmra.mxu0 %v1836
        %v2203 = vpop.f32.mrf.mxu0
        %v2204 = vadd.f32 %v1834, %v2203
        %2205 = vmatmul.f32.gmra.mxu0 %v1839
        %v2206 = vpop.f32.mrf.mxu0
        %v2207 = vadd.f32 %v1834, %v2206
        %2208 = vdwg.mxu0
        %v2209 = vmax.f32 %v1859, 0.0
        %v2210 = vmax.f32 %v1882, 0.0
        %v2211 = vmax.f32 %v1905, 0.0
        %v2212 = vmax.f32 %v1928, 0.0
        %v2213 = vmax.f32 %v1951, 0.0
        %v2214 = vmax.f32 %v1974, 0.0
        %v2215 = vmax.f32 %v1997, 0.0
        %v2216 = vmax.f32 %v2020, 0.0
        %v2217 = vmax.f32 %v2043, 0.0
        %v2218 = vmax.f32 %v2066, 0.0
        %v2219 = vmax.f32 %v2089, 0.0
        %v2220 = vmax.f32 %v2112, 0.0
        %v2221 = vmax.f32 %v2135, 0.0
        %v2222 = vmax.f32 %v2158, 0.0
        %v2223 = vmax.f32 %v2181, 0.0
        %v2224 = vmax.f32 %v2204, 0.0
        %v2225 = vmax.f32 %v1862, 0.0
        %v2226 = vmax.f32 %v1885, 0.0
        %v2227 = vmax.f32 %v1908, 0.0
        %v2228 = vmax.f32 %v1931, 0.0
        %v2229 = vmax.f32 %v1954, 0.0
        %v2230 = vmax.f32 %v1977, 0.0
        %v2231 = vmax.f32 %v2000, 0.0
        %v2232 = vmax.f32 %v2023, 0.0
        %v2233 = vmax.f32 %v2046, 0.0
        %v2234 = vmax.f32 %v2069, 0.0
        %v2235 = vmax.f32 %v2092, 0.0
        %v2236 = vmax.f32 %v2115, 0.0
        %v2237 = vmax.f32 %v2138, 0.0
        %v2238 = vmax.f32 %v2161, 0.0
        %v2239 = vmax.f32 %v2184, 0.0
        %v2240 = vmax.f32 %v2207, 0.0
        %2241 = vrot.lane.b32.xlu0 %v1810, 64
        %v2242 = vpop.permute.xlu0 %2241
        %2244 = vmatpush.xpose.msra.mxu0 0.0
        %2245 = vmatpush.xpose.msra.mxu0 0.0
        %2246 = vmatpush.xpose.msra.mxu0 0.0
        %2247 = vmatpush.xpose.msra.mxu0 0.0
        %2248 = vmatpush.xpose.msra.mxu0 0.0
        %2249 = vmatpush.xpose.msra.mxu0 0.0
        %2250 = vmatpush.xpose.msra.mxu0 0.0
        %2251 = vmatpush.xpose.msra.mxu0 0.0
        %2252 = vmatpush.xpose.msra.mxu0 0.0
        %2253 = vmatpush.xpose.msra.mxu0 0.0
        %2254 = vmatpush.xpose.msra.mxu0 0.0
        %2255 = vmatpush.xpose.msra.mxu0 0.0
        %2256 = vmatpush.xpose.msra.mxu0 %v899
        %2257 = vmatpush.xpose.msra.mxu0 %v883
        %2258 = vmatpush.xpose.msra.mxu0 %v867
        %2259 = vmatpush.xpose.msra.mxu0 %v851
        %2260 = vmatmul.f32.gmra.mxu0 %v2209
        %v2261 = vpop.f32.mrf.mxu0
        %v2262 = vadd.f32 %v2242, %v2261
        %2263 = vmatmul.f32.gmra.mxu0 %v2225
        %v2264 = vpop.f32.mrf.mxu0
        %v2265 = vadd.f32 %v2242, %v2264
        %2266 = vdwg.mxu0
        %2267 = vmatpush.xpose.msra.mxu0 0.0
        %2268 = vmatpush.xpose.msra.mxu0 0.0
        %2269 = vmatpush.xpose.msra.mxu0 0.0
        %2270 = vmatpush.xpose.msra.mxu0 0.0
        %2271 = vmatpush.xpose.msra.mxu0 0.0
        %2272 = vmatpush.xpose.msra.mxu0 0.0
        %2273 = vmatpush.xpose.msra.mxu0 0.0
        %2274 = vmatpush.xpose.msra.mxu0 0.0
        %2275 = vmatpush.xpose.msra.mxu0 0.0
        %2276 = vmatpush.xpose.msra.mxu0 0.0
        %2277 = vmatpush.xpose.msra.mxu0 0.0
        %2278 = vmatpush.xpose.msra.mxu0 0.0
        %2279 = vmatpush.xpose.msra.mxu0 %v900
        %2280 = vmatpush.xpose.msra.mxu0 %v884
        %2281 = vmatpush.xpose.msra.mxu0 %v868
        %2282 = vmatpush.xpose.msra.mxu0 %v852
        %2283 = vmatmul.f32.gmra.mxu0 %v2210
        %v2284 = vpop.f32.mrf.mxu0
        %v2285 = vadd.f32 %v2262, %v2284
        %2286 = vmatmul.f32.gmra.mxu0 %v2226
        %v2287 = vpop.f32.mrf.mxu0
        %v2288 = vadd.f32 %v2265, %v2287
        %2289 = vdwg.mxu0
        %2290 = vmatpush.xpose.msra.mxu0 0.0
        %2291 = vmatpush.xpose.msra.mxu0 0.0
        %2292 = vmatpush.xpose.msra.mxu0 0.0
        %2293 = vmatpush.xpose.msra.mxu0 0.0
        %2294 = vmatpush.xpose.msra.mxu0 0.0
        %2295 = vmatpush.xpose.msra.mxu0 0.0
        %2296 = vmatpush.xpose.msra.mxu0 0.0
        %2297 = vmatpush.xpose.msra.mxu0 0.0
        %2298 = vmatpush.xpose.msra.mxu0 0.0
        %2299 = vmatpush.xpose.msra.mxu0 0.0
        %2300 = vmatpush.xpose.msra.mxu0 0.0
        %2301 = vmatpush.xpose.msra.mxu0 0.0
        %2302 = vmatpush.xpose.msra.mxu0 %v901
        %2303 = vmatpush.xpose.msra.mxu0 %v885
        %2304 = vmatpush.xpose.msra.mxu0 %v869
        %2305 = vmatpush.xpose.msra.mxu0 %v853
        %2306 = vmatmul.f32.gmra.mxu0 %v2211
        %v2307 = vpop.f32.mrf.mxu0
        %v2308 = vadd.f32 %v2285, %v2307
        %2309 = vmatmul.f32.gmra.mxu0 %v2227
        %v2310 = vpop.f32.mrf.mxu0
        %v2311 = vadd.f32 %v2288, %v2310
        %2312 = vdwg.mxu0
        %2313 = vmatpush.xpose.msra.mxu0 0.0
        %2314 = vmatpush.xpose.msra.mxu0 0.0
        %2315 = vmatpush.xpose.msra.mxu0 0.0
        %2316 = vmatpush.xpose.msra.mxu0 0.0
        %2317 = vmatpush.xpose.msra.mxu0 0.0
        %2318 = vmatpush.xpose.msra.mxu0 0.0
        %2319 = vmatpush.xpose.msra.mxu0 0.0
        %2320 = vmatpush.xpose.msra.mxu0 0.0
        %2321 = vmatpush.xpose.msra.mxu0 0.0
        %2322 = vmatpush.xpose.msra.mxu0 0.0
        %2323 = vmatpush.xpose.msra.mxu0 0.0
        %2324 = vmatpush.xpose.msra.mxu0 0.0
        %2325 = vmatpush.xpose.msra.mxu0 %v902
        %2326 = vmatpush.xpose.msra.mxu0 %v886
        %2327 = vmatpush.xpose.msra.mxu0 %v870
        %2328 = vmatpush.xpose.msra.mxu0 %v854
        %2329 = vmatmul.f32.gmra.mxu0 %v2212
        %v2330 = vpop.f32.mrf.mxu0
        %v2331 = vadd.f32 %v2308, %v2330
        %2332 = vmatmul.f32.gmra.mxu0 %v2228
        %v2333 = vpop.f32.mrf.mxu0
        %v2334 = vadd.f32 %v2311, %v2333
        %2335 = vdwg.mxu0
        %2336 = vmatpush.xpose.msra.mxu0 0.0
        %2337 = vmatpush.xpose.msra.mxu0 0.0
        %2338 = vmatpush.xpose.msra.mxu0 0.0
        %2339 = vmatpush.xpose.msra.mxu0 0.0
        %2340 = vmatpush.xpose.msra.mxu0 0.0
        %2341 = vmatpush.xpose.msra.mxu0 0.0
        %2342 = vmatpush.xpose.msra.mxu0 0.0
        %2343 = vmatpush.xpose.msra.mxu0 0.0
        %2344 = vmatpush.xpose.msra.mxu0 0.0
        %2345 = vmatpush.xpose.msra.mxu0 0.0
        %2346 = vmatpush.xpose.msra.mxu0 0.0
        %2347 = vmatpush.xpose.msra.mxu0 0.0
        %2348 = vmatpush.xpose.msra.mxu0 %v903
        %2349 = vmatpush.xpose.msra.mxu0 %v887
        %2350 = vmatpush.xpose.msra.mxu0 %v871
        %2351 = vmatpush.xpose.msra.mxu0 %v855
        %2352 = vmatmul.f32.gmra.mxu0 %v2213
        %v2353 = vpop.f32.mrf.mxu0
        %v2354 = vadd.f32 %v2331, %v2353
        %2355 = vmatmul.f32.gmra.mxu0 %v2229
        %v2356 = vpop.f32.mrf.mxu0
        %v2357 = vadd.f32 %v2334, %v2356
        %2358 = vdwg.mxu0
        %2359 = vmatpush.xpose.msra.mxu0 0.0
        %2360 = vmatpush.xpose.msra.mxu0 0.0
        %2361 = vmatpush.xpose.msra.mxu0 0.0
        %2362 = vmatpush.xpose.msra.mxu0 0.0
        %2363 = vmatpush.xpose.msra.mxu0 0.0
        %2364 = vmatpush.xpose.msra.mxu0 0.0
        %2365 = vmatpush.xpose.msra.mxu0 0.0
        %2366 = vmatpush.xpose.msra.mxu0 0.0
        %2367 = vmatpush.xpose.msra.mxu0 0.0
        %2368 = vmatpush.xpose.msra.mxu0 0.0
        %2369 = vmatpush.xpose.msra.mxu0 0.0
        %2370 = vmatpush.xpose.msra.mxu0 0.0
        %2371 = vmatpush.xpose.msra.mxu0 %v904
        %2372 = vmatpush.xpose.msra.mxu0 %v888
        %2373 = vmatpush.xpose.msra.mxu0 %v872
        %2374 = vmatpush.xpose.msra.mxu0 %v856
        %2375 = vmatmul.f32.gmra.mxu0 %v2214
        %v2376 = vpop.f32.mrf.mxu0
        %v2377 = vadd.f32 %v2354, %v2376
        %2378 = vmatmul.f32.gmra.mxu0 %v2230
        %v2379 = vpop.f32.mrf.mxu0
        %v2380 = vadd.f32 %v2357, %v2379
        %2381 = vdwg.mxu0
        %2382 = vmatpush.xpose.msra.mxu0 0.0
        %2383 = vmatpush.xpose.msra.mxu0 0.0
        %2384 = vmatpush.xpose.msra.mxu0 0.0
        %2385 = vmatpush.xpose.msra.mxu0 0.0
        %2386 = vmatpush.xpose.msra.mxu0 0.0
        %2387 = vmatpush.xpose.msra.mxu0 0.0
        %2388 = vmatpush.xpose.msra.mxu0 0.0
        %2389 = vmatpush.xpose.msra.mxu0 0.0
        %2390 = vmatpush.xpose.msra.mxu0 0.0
        %2391 = vmatpush.xpose.msra.mxu0 0.0
        %2392 = vmatpush.xpose.msra.mxu0 0.0
        %2393 = vmatpush.xpose.msra.mxu0 0.0
        %2394 = vmatpush.xpose.msra.mxu0 %v905
        %2395 = vmatpush.xpose.msra.mxu0 %v889
        %2396 = vmatpush.xpose.msra.mxu0 %v873
        %2397 = vmatpush.xpose.msra.mxu0 %v857
        %2398 = vmatmul.f32.gmra.mxu0 %v2215
        %v2399 = vpop.f32.mrf.mxu0
        %v2400 = vadd.f32 %v2377, %v2399
        %2401 = vmatmul.f32.gmra.mxu0 %v2231
        %v2402 = vpop.f32.mrf.mxu0
        %v2403 = vadd.f32 %v2380, %v2402
        %2404 = vdwg.mxu0
        %2405 = vmatpush.xpose.msra.mxu0 0.0
        %2406 = vmatpush.xpose.msra.mxu0 0.0
        %2407 = vmatpush.xpose.msra.mxu0 0.0
        %2408 = vmatpush.xpose.msra.mxu0 0.0
        %2409 = vmatpush.xpose.msra.mxu0 0.0
        %2410 = vmatpush.xpose.msra.mxu0 0.0
        %2411 = vmatpush.xpose.msra.mxu0 0.0
        %2412 = vmatpush.xpose.msra.mxu0 0.0
        %2413 = vmatpush.xpose.msra.mxu0 0.0
        %2414 = vmatpush.xpose.msra.mxu0 0.0
        %2415 = vmatpush.xpose.msra.mxu0 0.0
        %2416 = vmatpush.xpose.msra.mxu0 0.0
        %2417 = vmatpush.xpose.msra.mxu0 %v906
        %2418 = vmatpush.xpose.msra.mxu0 %v890
        %2419 = vmatpush.xpose.msra.mxu0 %v874
        %2420 = vmatpush.xpose.msra.mxu0 %v858
        %2421 = vmatmul.f32.gmra.mxu0 %v2216
        %v2422 = vpop.f32.mrf.mxu0
        %v2423 = vadd.f32 %v2400, %v2422
        %2424 = vmatmul.f32.gmra.mxu0 %v2232
        %v2425 = vpop.f32.mrf.mxu0
        %v2426 = vadd.f32 %v2403, %v2425
        %2427 = vdwg.mxu0
        %2428 = vmatpush.xpose.msra.mxu0 0.0
        %2429 = vmatpush.xpose.msra.mxu0 0.0
        %2430 = vmatpush.xpose.msra.mxu0 0.0
        %2431 = vmatpush.xpose.msra.mxu0 0.0
        %2432 = vmatpush.xpose.msra.mxu0 0.0
        %2433 = vmatpush.xpose.msra.mxu0 0.0
        %2434 = vmatpush.xpose.msra.mxu0 0.0
        %2435 = vmatpush.xpose.msra.mxu0 0.0
        %2436 = vmatpush.xpose.msra.mxu0 0.0
        %2437 = vmatpush.xpose.msra.mxu0 0.0
        %2438 = vmatpush.xpose.msra.mxu0 0.0
        %2439 = vmatpush.xpose.msra.mxu0 0.0
        %2440 = vmatpush.xpose.msra.mxu0 %v907
        %2441 = vmatpush.xpose.msra.mxu0 %v891
        %2442 = vmatpush.xpose.msra.mxu0 %v875
        %2443 = vmatpush.xpose.msra.mxu0 %v859
        %2444 = vmatmul.f32.gmra.mxu0 %v2217
        %v2445 = vpop.f32.mrf.mxu0
        %v2446 = vadd.f32 %v2423, %v2445
        %2447 = vmatmul.f32.gmra.mxu0 %v2233
        %v2448 = vpop.f32.mrf.mxu0
        %v2449 = vadd.f32 %v2426, %v2448
        %2450 = vdwg.mxu0
        %2451 = vmatpush.xpose.msra.mxu0 0.0
        %2452 = vmatpush.xpose.msra.mxu0 0.0
        %2453 = vmatpush.xpose.msra.mxu0 0.0
        %2454 = vmatpush.xpose.msra.mxu0 0.0
        %2455 = vmatpush.xpose.msra.mxu0 0.0
        %2456 = vmatpush.xpose.msra.mxu0 0.0
        %2457 = vmatpush.xpose.msra.mxu0 0.0
        %2458 = vmatpush.xpose.msra.mxu0 0.0
        %2459 = vmatpush.xpose.msra.mxu0 0.0
        %2460 = vmatpush.xpose.msra.mxu0 0.0
        %2461 = vmatpush.xpose.msra.mxu0 0.0
        %2462 = vmatpush.xpose.msra.mxu0 0.0
        %2463 = vmatpush.xpose.msra.mxu0 %v908
        %2464 = vmatpush.xpose.msra.mxu0 %v892
        %2465 = vmatpush.xpose.msra.mxu0 %v876
        %2466 = vmatpush.xpose.msra.mxu0 %v860
        %2467 = vmatmul.f32.gmra.mxu0 %v2218
        %v2468 = vpop.f32.mrf.mxu0
        %v2469 = vadd.f32 %v2446, %v2468
        %2470 = vmatmul.f32.gmra.mxu0 %v2234
        %v2471 = vpop.f32.mrf.mxu0
        %v2472 = vadd.f32 %v2449, %v2471
        %2473 = vdwg.mxu0
        %2474 = vmatpush.xpose.msra.mxu0 0.0
        %2475 = vmatpush.xpose.msra.mxu0 0.0
        %2476 = vmatpush.xpose.msra.mxu0 0.0
        %2477 = vmatpush.xpose.msra.mxu0 0.0
        %2478 = vmatpush.xpose.msra.mxu0 0.0
        %2479 = vmatpush.xpose.msra.mxu0 0.0
        %2480 = vmatpush.xpose.msra.mxu0 0.0
        %2481 = vmatpush.xpose.msra.mxu0 0.0
        %2482 = vmatpush.xpose.msra.mxu0 0.0
        %2483 = vmatpush.xpose.msra.mxu0 0.0
        %2484 = vmatpush.xpose.msra.mxu0 0.0
        %2485 = vmatpush.xpose.msra.mxu0 0.0
        %2486 = vmatpush.xpose.msra.mxu0 %v909
        %2487 = vmatpush.xpose.msra.mxu0 %v893
        %2488 = vmatpush.xpose.msra.mxu0 %v877
        %2489 = vmatpush.xpose.msra.mxu0 %v861
        %2490 = vmatmul.f32.gmra.mxu0 %v2219
        %v2491 = vpop.f32.mrf.mxu0
        %v2492 = vadd.f32 %v2469, %v2491
        %2493 = vmatmul.f32.gmra.mxu0 %v2235
        %v2494 = vpop.f32.mrf.mxu0
        %v2495 = vadd.f32 %v2472, %v2494
        %2496 = vdwg.mxu0
        %2497 = vmatpush.xpose.msra.mxu0 0.0
        %2498 = vmatpush.xpose.msra.mxu0 0.0
        %2499 = vmatpush.xpose.msra.mxu0 0.0
        %2500 = vmatpush.xpose.msra.mxu0 0.0
        %2501 = vmatpush.xpose.msra.mxu0 0.0
        %2502 = vmatpush.xpose.msra.mxu0 0.0
        %2503 = vmatpush.xpose.msra.mxu0 0.0
        %2504 = vmatpush.xpose.msra.mxu0 0.0
        %2505 = vmatpush.xpose.msra.mxu0 0.0
        %2506 = vmatpush.xpose.msra.mxu0 0.0
        %2507 = vmatpush.xpose.msra.mxu0 0.0
        %2508 = vmatpush.xpose.msra.mxu0 0.0
        %2509 = vmatpush.xpose.msra.mxu0 %v910
        %2510 = vmatpush.xpose.msra.mxu0 %v894
        %2511 = vmatpush.xpose.msra.mxu0 %v878
        %2512 = vmatpush.xpose.msra.mxu0 %v862
        %2513 = vmatmul.f32.gmra.mxu0 %v2220
        %v2514 = vpop.f32.mrf.mxu0
        %v2515 = vadd.f32 %v2492, %v2514
        %2516 = vmatmul.f32.gmra.mxu0 %v2236
        %v2517 = vpop.f32.mrf.mxu0
        %v2518 = vadd.f32 %v2495, %v2517
        %2519 = vdwg.mxu0
        %2520 = vmatpush.xpose.msra.mxu0 0.0
        %2521 = vmatpush.xpose.msra.mxu0 0.0
        %2522 = vmatpush.xpose.msra.mxu0 0.0
        %2523 = vmatpush.xpose.msra.mxu0 0.0
        %2524 = vmatpush.xpose.msra.mxu0 0.0
        %2525 = vmatpush.xpose.msra.mxu0 0.0
        %2526 = vmatpush.xpose.msra.mxu0 0.0
        %2527 = vmatpush.xpose.msra.mxu0 0.0
        %2528 = vmatpush.xpose.msra.mxu0 0.0
        %2529 = vmatpush.xpose.msra.mxu0 0.0
        %2530 = vmatpush.xpose.msra.mxu0 0.0
        %2531 = vmatpush.xpose.msra.mxu0 0.0
        %2532 = vmatpush.xpose.msra.mxu0 %v911
        %2533 = vmatpush.xpose.msra.mxu0 %v895
        %2534 = vmatpush.xpose.msra.mxu0 %v879
        %2535 = vmatpush.xpose.msra.mxu0 %v863
        %2536 = vmatmul.f32.gmra.mxu0 %v2221
        %v2537 = vpop.f32.mrf.mxu0
        %v2538 = vadd.f32 %v2515, %v2537
        %2539 = vmatmul.f32.gmra.mxu0 %v2237
        %v2540 = vpop.f32.mrf.mxu0
        %v2541 = vadd.f32 %v2518, %v2540
        %2542 = vdwg.mxu0
        %2543 = vmatpush.xpose.msra.mxu0 0.0
        %2544 = vmatpush.xpose.msra.mxu0 0.0
        %2545 = vmatpush.xpose.msra.mxu0 0.0
        %2546 = vmatpush.xpose.msra.mxu0 0.0
        %2547 = vmatpush.xpose.msra.mxu0 0.0
        %2548 = vmatpush.xpose.msra.mxu0 0.0
        %2549 = vmatpush.xpose.msra.mxu0 0.0
        %2550 = vmatpush.xpose.msra.mxu0 0.0
        %2551 = vmatpush.xpose.msra.mxu0 0.0
        %2552 = vmatpush.xpose.msra.mxu0 0.0
        %2553 = vmatpush.xpose.msra.mxu0 0.0
        %2554 = vmatpush.xpose.msra.mxu0 0.0
        %2555 = vmatpush.xpose.msra.mxu0 %v912
        %2556 = vmatpush.xpose.msra.mxu0 %v896
        %2557 = vmatpush.xpose.msra.mxu0 %v880
        %2558 = vmatpush.xpose.msra.mxu0 %v864
        %2559 = vmatmul.f32.gmra.mxu0 %v2222
        %v2560 = vpop.f32.mrf.mxu0
        %v2561 = vadd.f32 %v2538, %v2560
        %2562 = vmatmul.f32.gmra.mxu0 %v2238
        %v2563 = vpop.f32.mrf.mxu0
        %v2564 = vadd.f32 %v2541, %v2563
        %2565 = vdwg.mxu0
        %2566 = vmatpush.xpose.msra.mxu0 0.0
        %2567 = vmatpush.xpose.msra.mxu0 0.0
        %2568 = vmatpush.xpose.msra.mxu0 0.0
        %2569 = vmatpush.xpose.msra.mxu0 0.0
        %2570 = vmatpush.xpose.msra.mxu0 0.0
        %2571 = vmatpush.xpose.msra.mxu0 0.0
        %2572 = vmatpush.xpose.msra.mxu0 0.0
        %2573 = vmatpush.xpose.msra.mxu0 0.0
        %2574 = vmatpush.xpose.msra.mxu0 0.0
        %2575 = vmatpush.xpose.msra.mxu0 0.0
        %2576 = vmatpush.xpose.msra.mxu0 0.0
        %2577 = vmatpush.xpose.msra.mxu0 0.0
        %2578 = vmatpush.xpose.msra.mxu0 %v913
        %2579 = vmatpush.xpose.msra.mxu0 %v897
        %2580 = vmatpush.xpose.msra.mxu0 %v881
        %2581 = vmatpush.xpose.msra.mxu0 %v865
        %2582 = vmatmul.f32.gmra.mxu0 %v2223
        %v2583 = vpop.f32.mrf.mxu0
        %v2584 = vadd.f32 %v2561, %v2583
        %2585 = vmatmul.f32.gmra.mxu0 %v2239
        %v2586 = vpop.f32.mrf.mxu0
        %v2587 = vadd.f32 %v2564, %v2586
        %2588 = vdwg.mxu0
        %2589 = vmatpush.xpose.msra.mxu0 0.0
        %2590 = vmatpush.xpose.msra.mxu0 0.0
        %2591 = vmatpush.xpose.msra.mxu0 0.0
        %2592 = vmatpush.xpose.msra.mxu0 0.0
        %2593 = vmatpush.xpose.msra.mxu0 0.0
        %2594 = vmatpush.xpose.msra.mxu0 0.0
        %2595 = vmatpush.xpose.msra.mxu0 0.0
        %2596 = vmatpush.xpose.msra.mxu0 0.0
        %2597 = vmatpush.xpose.msra.mxu0 0.0
        %2598 = vmatpush.xpose.msra.mxu0 0.0
        %2599 = vmatpush.xpose.msra.mxu0 0.0
        %2600 = vmatpush.xpose.msra.mxu0 0.0
        %2601 = vmatpush.xpose.msra.mxu0 %v914
        %2602 = vmatpush.xpose.msra.mxu0 %v898
        %2603 = vmatpush.xpose.msra.mxu0 %v882
        %2604 = vmatpush.xpose.msra.mxu0 %v866
        %2605 = vmatmul.f32.gmra.mxu0 %v2224
        %v2606 = vpop.f32.mrf.mxu0
        %v2607 = vadd.f32 %v2584, %v2606
        %2608 = vmatmul.f32.gmra.mxu0 %v2240
        %v2609 = vpop.f32.mrf.mxu0
        %v2610 = vadd.f32 %v2587, %v2609
        %2611 = vdwg.mxu0
        %v2612 = vadd.f32 %v1817, %v2607
        %v2613 = vadd.f32 %v1818, %v2610
        %v2614 = vsel %vm932, %v2612, 0.0
        %2615 = vadd.xlane.f32.xlu0 %v2614
        %v2616 = vpop.xlane.xlu0 %2615
        %v2617 = vsel %vm932, %v2613, 0.0
        %2618 = vadd.xlane.f32.xlu0 %v2617
        %v2619 = vpop.xlane.xlu0 %2618
        %v2620 = vmul.f32 %v2616, %v1771
        %v2621 = vmul.f32 %v2619, %v1771
        %v2622 = vsub.f32 %v2612, %v2620
        %v2623 = vsub.f32 %v2613, %v2621
        %v2624 = vmul.f32 %v2622, %v2622
        %v2625 = vmul.f32 %v2623, %v2623
        %v2626 = vsel %vm932, %v2624, 0.0
        %2627 = vadd.xlane.f32.xlu0 %v2626
        %v2628 = vpop.xlane.xlu0 %2627
        %v2629 = vsel %vm932, %v2625, 0.0
        %2630 = vadd.xlane.f32.xlu0 %v2629
        %v2631 = vpop.xlane.xlu0 %2630
        %v2632 = vmul.f32 %v2628, %v1771
        %v2633 = vmul.f32 %v2631, %v1771
        %v2634 = vadd.f32 %v2632, 1e-05
        %v2635 = vadd.f32 %v2633, 1e-05
        %v2636 = vrsqrt.pop %v2634
        %v2637 = vmul.f32 %v2636, %v2634
        %v2638 = vmul.f32 %v2637, %v2636
        %v2639 = vmul.f32 0.5, %v2638
        %v2640 = vsub.f32 1.5, %v2639
        %v2641 = vmul.f32 %v2636, %v2640
        %vm2642 = vweird.f32 %v2634
        %vm2643 = vweird.f32 %v2636
        %vm2644 = vmor %vm2642, %vm2643
        %v2645 = vsel %vm2644, %v2636, %v2641
        %v2646 = vrsqrt.pop %v2635
        %v2647 = vmul.f32 %v2646, %v2635
        %v2648 = vmul.f32 %v2647, %v2646
        %v2649 = vmul.f32 0.5, %v2648
        %v2650 = vsub.f32 1.5, %v2649
        %v2651 = vmul.f32 %v2646, %v2650
        %vm2652 = vweird.f32 %v2635
        %vm2653 = vweird.f32 %v2646
        %vm2654 = vmor %vm2652, %vm2653
        %v2655 = vsel %vm2654, %v2646, %v2651
        %v2656 = vmul.f32 %v2622, %v2645
        %v2657 = vmul.f32 %v2623, %v2655
        %2658 = vrot.lane.b32.xlu0 %v1810, 32
        %v2659 = vpop.permute.xlu0 %2658
        %v2661 = vmul.f32 %v2656, %v2659
        %v2662 = vmul.f32 %v2657, %v2659
        %v2663 = vperm.slane %v915, 3
        %v2664 = vadd.f32 %v2661, %v2663
        %v2665 = vadd.f32 %v2662, %v2663
        %2666 = vst.msk [vmem:[#allocation2] sm:$0xff] %vm932, %v2664
        %2667 = vst.msk [vmem:[#allocation2 + $0x8] sm:$0xff] %vm932, %v2665
        %p2668 = scmp.eq.s32.totalorder %s36, 1
        // Predicated region
        $region97: #{tpu_custom_call.1} parent=67 // pred_check
          %p2669 = pneg %p2668
        $region98: #{tpu_custom_call.1} parent=67 // pred_check_branch
          %2671 = sbr.rel (%p2669) target = $region100
        $region99: #{tpu_custom_call.1} parent=67 // pred_region
          %v2672 = vld [vmem:[%s3] sm:$0xf]
          %v2673 = vld [vmem:[%s3 + $0x4] sm:$0xf]
          %v2674 = vld [vmem:[%s3 + $0x8] sm:$0xf]
          %v2675 = vld [vmem:[%s3 + $0xc] sm:$0xf]
          %v2676 = vunpack.c.l.bf16 %v2672
          %v2677 = vunpack.c.l.bf16 %v2673
          %v2678 = vunpack.c.l.bf16 %v2674
          %v2679 = vunpack.c.l.bf16 %v2675
          %v2680 = vld [vmem:[%s4] sm:$0x1]
          %v2682 = vperm.slane %v2680, 0
          %v2686 = vrot.slane %v2664, 7
          %v2687 = vrot.slane %v2665, 6
          %vm2688 = vcmask 1041409
          %v2689 = vsel %vm2688, %v2687, %v2686
          %v2690 = vsel %vm932, %v2689, 0
          %2692 = vmatpush.msra.mxu0 0.0
          %2693 = vmatpush.msra.mxu0 0.0
          %2694 = vmatpush.msra.mxu0 0.0
          %2695 = vmatpush.msra.mxu0 0.0
          %2696 = vmatpush.msra.mxu0 0.0
          %2697 = vmatpush.msra.mxu0 0.0
          %2698 = vmatpush.msra.mxu0 0.0
          %2699 = vmatpush.msra.mxu0 0.0
          %2700 = vmatpush.msra.mxu0 0.0
          %2701 = vmatpush.msra.mxu0 0.0
          %2702 = vmatpush.msra.mxu0 0.0
          %2703 = vmatpush.msra.mxu0 0.0
          %2704 = vmatpush.msra.mxu0 %v2679
          %2705 = vmatpush.msra.mxu0 %v2678
          %2706 = vmatpush.msra.mxu0 %v2677
          %2707 = vmatpush.msra.mxu0 %v2676
          %2708 = vmatmul.f32.gmra.mxu0 %v2690
          %v2709 = vpop.f32.mrf.mxu0
          %v2710 = vadd.f32 %v2682, %v2709
          %2711 = vdwg.mxu0
          %v2712 = vxor.u32 %v2710, 2147483648
          %v2713 = vmul.f32 %v2712, 1.442695
          %v2714 = vpow.pop %v2713
          %v2715 = vadd.f32 %v2714, 1.0
          %v2716 = vrcp.pop %v2715
          %v2717 = vmul.f32 %v2715, %v2716
          %v2718 = vsub.f32 1.0, %v2717
          %v2719 = vmul.f32 %v2716, %v2718
          %v2720 = vadd.f32 %v2716, %v2719
          %vm2721 = vweird.f32 %v2715
          %vm2722 = vweird.f32 %v2716
          %vm2723 = vmor %vm2721, %vm2722
          %v2724 = vsel %vm2723, %v2716, %v2720
          %v2725 = vand.u32 2147483647, %v2715
          %vm2726 = vcmp.eq.f32.partialorder %v2725, 8.507059e+37
          %v2727 = vand.u32 %v2715, 2147483648
          %v2728 = vor.u32 1.1754944e-38, %v2727
          %v2729 = vsel %vm2726, %v2728, %v2724
          %v2730 = vmul.f32 1.0, %v2729
          %vm2731 = vcmask 25600
          %2732 = vst.msk [vmem:[#allocation14] sm:$0x3] %vm2731, %v2730
        $region100: #{tpu_custom_call.1} parent=67 // pred_fallthru
          _
        // Predicated region
        $region101: #{tpu_custom_call.1} parent=67 // pred_check
          %p2733 = pneg %p336
        $region102: #{tpu_custom_call.1} parent=67 // pred_check_branch
          %2735 = sbr.rel (%p2733) target = $region104
        $region103: #{tpu_custom_call.1} parent=67 // pred_region
          %2737 = vsyncadd [#allocation5], 0
          %s2739 = sshll.u32 [#allocation14], 4
          %s2740 = int_to_ptr.vmem [resolvable:$true] %s2739
          %s2741 = sshll.u32 %s12, 4
          %s2742 = int_to_ptr.hbm [resolvable:$true] %s2741
          %2744 = dma.vmem_to_hbm [thread:$0]  %s2740, 32, %s2742, [#allocation5]
        $region104: #{tpu_custom_call.1} parent=67 // pred_fallthru
          _
        // Predicated region
        $region105: #{tpu_custom_call.1} parent=67 // pred_check
          %p2745 = pneg %p336
        $region106: #{tpu_custom_call.1} parent=67 // pred_check_branch
          %2747 = sbr.rel (%p2745) target = $region108
        $region107: #{tpu_custom_call.1} parent=67 // pred_region
          %2749 = dma.done [#allocation5], 32
        $region108: #{tpu_custom_call.1} parent=67 // pred_fallthru
          _
      $region68: #{tpu_custom_call.1} parent=5 // pred_fallthru
        _
      %p2750 = scmp.le.s32.totalorder 2, %s31
      // Predicated region
      $region109: #{tpu_custom_call.1} parent=5 // pred_check
        %p2751 = pneg %p2750
      $region110: #{tpu_custom_call.1} parent=5 // pred_check_branch
        %2753 = sbr.rel (%p2751) target = $region112
      $region111: #{tpu_custom_call.1} parent=5 // pred_region
        %s2754 = ssub.s32 %s31, 2
      $region112: #{tpu_custom_call.1} parent=5 // pred_fallthru
        _
    $region6: #{tpu_custom_call.1} parent=1 // loop_footer
      %s35 = sadd.s32 1, %s31
    $region7: #{tpu_custom_call.1} parent=1 // loop_footer_branch
      %30 = sbr.rel target = $region3
    $region8: #{tpu_custom_call.1} parent=1 // loop_exit
      _
    %2755 = vsyncpa [#allocation4], 1
    %s2756 = scalar_lea.sflag [#allocation4], 1
    %2757 = vsyncpa %s2756, 1
    %2758 = vsyncpa [#allocation7], 1
    %s2759 = scalar_lea.sflag [#allocation7], 1
    %2760 = vsyncpa %s2759, 1
    %2761 = vsyncpa [#allocation10], 1
    %s2762 = scalar_lea.sflag [#allocation10], 1
    %2763 = vsyncpa %s2762, 1
    %2764 = vsyncpa [#allocation13], 1
    %s2765 = scalar_lea.sflag [#allocation13], 1
    %2766 = vsyncpa %s2765, 1
    %2767 = vsyncpa [#allocation5], 1
    %s2768 = scalar_lea.sflag [#allocation5], 1
    %2769 = vsyncpa %s2768, 1

</llo_original>
